<compile_context>
chip_gen: v5e
topology: v5e:2x2
jax: 0.10.0
libtpu: 0.0.40
codegen_flags: <defaults>
</compile_context>

<pallas_src>
import math
import jax
import jax.numpy as jnp
from jax.experimental import pallas as pl
from jax.experimental.pallas import tpu as pltpu

W = 128            # hidden width (feat & rgb MLPs)
KPAD = 32          # lane padding for the encoded inputs (27 / 15 real lanes)
L_3D = 4
L_VIEW = 2
DIN3 = 3 + 6 * L_3D      # 27
DINV = 3 + 6 * L_VIEW    # 15
NOUT = 4                 # rgb (3) + density (1)
MAX_TM = 2048            # upper bound on rows per grid step


def _choose_tm(m, max_tm=MAX_TM, min_steps=4, min_tm=128):
    """Biggest row tile that still leaves >= min_steps grid steps (pipeline
    overlap + v7x 2-TC sharding), capped so VMEM stays comfortable on v5e."""
    tm = min(max_tm, max(min_tm, m // min_steps))
    tm = max(8, (tm // 8) * 8)          # sublane multiple
    return tm


# ----------------------------- Pallas kernel --------------------------------

def nerf_mlp_kernel(pts_ref, ray_ref,
                    w0, b0, w1, b1, w2a, w2b, b2,
                    w3, b3, w3d,
                    wr0a, wr0b, br0, wr1t, bias4,
                    out_ref):
    x = pts_ref[...]        # (TM, 32) bf16 padded points_enc
    r = ray_ref[...]        # (TM, 32) bf16 padded ray_enc
    bf16 = jnp.bfloat16

    def mm(a, w_ref):
        return jnp.dot(a, w_ref[...], preferred_element_type=jnp.float32)

    def lane_dot(a_f32, w_row):         # (TM,128)*(1,128) -> (TM,1), VPU+XLU
        return jnp.sum(a_f32 * w_row, axis=-1, keepdims=True)

    # mlp_feat layers 0 / 1
    f = jnp.maximum(mm(x, w0) + b0[...], 0.0)
    f = jnp.maximum(mm(f.astype(bf16), w1) + b1[...], 0.0)
    # mlp_feat layer 2 (skip: cat([feat, points_enc]) @ W == f@W2a + x@W2b)
    f = jnp.maximum(mm(f.astype(bf16), w2a) + mm(x, w2b) + b2[...], 0.0)
    # density head = column 0 of the last feat layer, taken pre-ReLU:
    # VPU multiply + XLU lane reduction (no MXU pass); bias lives in bias4[3].
    dens = lane_dot(f, w3d[...])                                     # (TM,1)
    # mlp_feat layer 3 (feature head) + ReLU
    f = jnp.maximum(mm(f.astype(bf16), w3) + b3[...], 0.0)
    # mlp_rgb layer 0 (view-dep: cat([feat, ray_enc]) @ W == f@Wr0a + r@Wr0b)
    h = jnp.maximum(mm(f.astype(bf16), wr0a) + mm(r, wr0b) + br0[...], 0.0)
    # mlp_rgb layer 1 (128 -> 3): VPU column dots instead of a padded MXU pass
    wt = wr1t[...]                                                   # (3,128) f32
    heads = jnp.concatenate(
        [lane_dot(h, wt[0:1, :]),
         lane_dot(h, wt[1:2, :]),
         lane_dot(h, wt[2:3, :]),
         dens], axis=-1) + bias4[...]                                # (TM, 4)

    # activations in-kernel (EUP slot is idle): sigmoid(rgb), softplus(density)
    sig = 1.0 / (1.0 + jnp.exp(-heads))
    sp = jnp.maximum(heads, 0.0) + jnp.log(1.0 + jnp.exp(-jnp.abs(heads)))
    lane = jax.lax.broadcasted_iota(jnp.int32, heads.shape, 1)       # tiny (TM,4)
    out_ref[...] = jnp.where(lane < 3, sig, sp)


# ------------------------------- glue / wrapper ------------------------------

def positional_encoding(x, L):
    # matches NeRF.positional_encoding
    shape = x.shape
    freq = (2.0 ** jnp.arange(L, dtype=jnp.float32)) * jnp.pi        # (L,)
    spectrum = x[..., None] * freq                                   # (..., 3, L)
    enc = jnp.stack([jnp.sin(spectrum), jnp.cos(spectrum)], axis=-2)  # (...,3,2,L)
    return enc.reshape(*shape[:-1], -1)                              # (..., 6L)


def _pad_cols(x, target):
    return jnp.pad(x, [(0, 0)] * (x.ndim - 1) + [(0, target - x.shape[-1])])


def nerf_forward(points_3D, ray_unit, params):
    """points_3D, ray_unit: (..., 3) float32. Returns (rgb (...,3), density (...))."""
    lead = points_3D.shape[:-1]
    pts_enc = jnp.concatenate(
        [points_3D, positional_encoding(points_3D, L_3D)], axis=-1)   # (..., 27)
    ray_enc = jnp.concatenate(
        [ray_unit, positional_encoding(ray_unit, L_VIEW)], axis=-1)   # (..., 15)

    pts_flat = _pad_cols(pts_enc.reshape(-1, DIN3), KPAD).astype(jnp.bfloat16)
    ray_flat = _pad_cols(ray_enc.reshape(-1, DINV), KPAD).astype(jnp.bfloat16)
    M = pts_flat.shape[0]
    TM = _choose_tm(M)
    Mp = ((M + TM - 1) // TM) * TM
    if Mp != M:
        pts_flat = jnp.pad(pts_flat, ((0, Mp - M), (0, 0)))
        ray_flat = jnp.pad(ray_flat, ((0, Mp - M), (0, 0)))

    row_spec = pl.BlockSpec((TM, KPAD), lambda i: (i, 0))

    p = params
    weight_args = [p["W0p"], p["b0"], p["W1"], p["b1"],
                   p["W2a"], p["W2bp"], p["b2"],
                   p["W3"], p["b3"], p["w3d"],
                   p["Wr0a"], p["Wr0bp"], p["br0"], p["Wr1t"], p["bias4"]]
    # whole-array blocks, constant index_map -> resident across the row grid
    weight_specs = [pl.BlockSpec(a.shape, lambda i: (0, 0)) for a in weight_args]

    out_pad = pl.pallas_call(
        nerf_mlp_kernel,
        out_shape=jax.ShapeDtypeStruct((Mp, NOUT), jnp.float32),
        grid_spec=pltpu.PrefetchScalarGridSpec(
            num_scalar_prefetch=0,
            grid=(Mp // TM,),
            in_specs=[row_spec, row_spec] + weight_specs,
            out_specs=pl.BlockSpec((TM, NOUT), lambda i: (i, 0)),
        ),
        compiler_params=pltpu.CompilerParams(
            dimension_semantics=("parallel",)),
    )(pts_flat, ray_flat, *weight_args)

    out = out_pad[:M]                                   # (M, 4): activated rgb+density
    rgb = out[:, :3].reshape(*lead, 3)
    density = out[:, 3].reshape(*lead)
    return rgb, density


# --------------------------- parameter construction --------------------------

def xavier_uniform(key, shape_in_out, gain=1.0):
    fan_in, fan_out = shape_in_out
    bound = gain * math.sqrt(6.0 / (fan_in + fan_out))
    return jax.random.uniform(key, (fan_in, fan_out), jnp.float32, -bound, bound)


def make_params(key):
    relu_gain = math.sqrt(2.0)
    ks = jax.random.split(key, 8)
    bf16 = jnp.bfloat16

    # unpadded ("torch-shaped", stored as (in, out)) f32 weights
    w0 = xavier_uniform(ks[0], (DIN3, W), relu_gain)
    w1 = xavier_uniform(ks[1], (W, W), relu_gain)
    w2 = xavier_uniform(ks[2], (W + DIN3, W), relu_gain)        # skip layer
    # last feat layer: out = 1 (density, gain 1) + W (feat, relu gain)
    w3_dens = xavier_uniform(ks[3], (W, 1), 1.0)
    w3_feat = xavier_uniform(ks[4], (W, W), relu_gain)
    w3full = jnp.concatenate([w3_dens, w3_feat], axis=1)        # (W, W+1)
    wr0 = xavier_uniform(ks[5], (W + DINV, W), relu_gain)
    wr1 = xavier_uniform(ks[6], (W, 3), 1.0)
    b0 = jnp.zeros((W,)); b1 = jnp.zeros((W,)); b2 = jnp.zeros((W,))
    b3full = jnp.zeros((W + 1,)); br0 = jnp.zeros((W,)); br1 = jnp.zeros((3,))

    raw = dict(w0=w0, w1=w1, w2=w2, w3full=w3full, wr0=wr0, wr1=wr1,
               b0=b0, b1=b1, b2=b2, b3full=b3full, br0=br0, br1=br1)

    # kernel-friendly versions: matmul weights in bf16, small-K inputs padded
    # to 32 lanes, biases kept f32, density / rgb head columns as f32 rows.
    W0p = jnp.zeros((KPAD, W)).at[:DIN3].set(w0).astype(bf16)
    W2a = w2[:W].astype(bf16)
    W2bp = jnp.zeros((KPAD, W)).at[:DIN3].set(w2[W:]).astype(bf16)
    W3 = w3full[:, 1:].astype(bf16)
    w3d_row = w3full[:, 0].reshape(1, W)                       # f32, VPU density head
    Wr0a = wr0[:W].astype(bf16)
    Wr0bp = jnp.zeros((KPAD, W)).at[:DINV].set(wr0[W:]).astype(bf16)
    Wr1t = wr1.T                                               # (3, W) f32, VPU rgb head
    # lanes 0..2 = rgb bias, lane 3 = density bias
    bias4 = jnp.concatenate([br1, b3full[:1]]).reshape(1, NOUT)

    padded = dict(
        W0p=W0p, b0=b0.reshape(1, W),
        W1=w1.astype(bf16), b1=b1.reshape(1, W),
        W2a=W2a, W2bp=W2bp, b2=b2.reshape(1, W),
        W3=W3, b3=b3full[1:].reshape(1, W), w3d=w3d_row,
        Wr0a=Wr0a, Wr0bp=Wr0bp, br0=br0.reshape(1, W),
        Wr1t=Wr1t, bias4=bias4,
    )
    return raw, padded


# --------------------------- pure-JAX f32 reference --------------------------

def ref_forward(points_3D, ray_unit, raw):
    lead = points_3D.shape[:-1]
    pts_enc = jnp.concatenate(
        [points_3D, positional_encoding(points_3D, L_3D)], axis=-1).reshape(-1, DIN3)
    ray_enc = jnp.concatenate(
        [ray_unit, positional_encoding(ray_unit, L_VIEW)], axis=-1).reshape(-1, DINV)
    f = jnp.maximum(pts_enc @ raw["w0"] + raw["b0"], 0.0)
    f = jnp.maximum(f @ raw["w1"] + raw["b1"], 0.0)
    f = jnp.maximum(jnp.concatenate([f, pts_enc], -1) @ raw["w2"] + raw["b2"], 0.0)
    out = f @ raw["w3full"] + raw["b3full"]
    density = jax.nn.softplus(out[:, 0])
    f = jnp.maximum(out[:, 1:], 0.0)
    h = jnp.maximum(jnp.concatenate([f, ray_enc], -1) @ raw["wr0"] + raw["br0"], 0.0)
    rgb = jax.nn.sigmoid(h @ raw["wr1"] + raw["br1"])
    return rgb.reshape(*lead, 3), density.reshape(*lead)


# ------------------------------------ main -----------------------------------

if __name__ == "__main__":
    key = jax.random.PRNGKey(0)
    k_pts, k_ray, k_par = jax.random.split(key, 3)

    # (batch, rays, samples, 3) -> M = 2*16*32 = 1024 points
    # adaptive TM = 256 -> 4 grid steps of 256 rows
    B, R, N = 2, 16, 32
    points_3D = jax.random.uniform(k_pts, (B, R, N, 3), jnp.float32, -1.0, 1.0)
    ray = jax.random.normal(k_ray, (B, R, N, 3), jnp.float32)
    ray_unit = ray / jnp.linalg.norm(ray, axis=-1, keepdims=True)

    raw, padded = make_params(k_par)

    rgb, density = nerf_forward(points_3D, ray_unit, padded)
    jax.block_until_ready((rgb, density))

    rgb_ref, dens_ref = ref_forward(points_3D, ray_unit, raw)
    assert rgb.shape == (B, R, N, 3) and density.shape == (B, R, N)
    # tolerance accounts for bf16 matmul operands in the kernel vs f32 reference
    assert jnp.allclose(rgb, rgb_ref, atol=5e-2, rtol=5e-2), \
        float(jnp.max(jnp.abs(rgb - rgb_ref)))
    assert jnp.allclose(density, dens_ref, atol=5e-2, rtol=5e-2), \
        float(jnp.max(jnp.abs(density - dens_ref)))

    print("KERNEL_OK")
</pallas_src>

<mosaic_0001>
module attributes {stable_mosaic.version = 11 : i64} {
  func.func @nerf_mlp_kernel(%arg0: i32, %arg1: memref<256x32xbf16, #tpu.memory_space<vmem>>, %arg2: memref<256x32xbf16, #tpu.memory_space<vmem>>, %arg3: memref<32x128xbf16, #tpu.memory_space<vmem>>, %arg4: memref<1x128xf32, #tpu.memory_space<vmem>>, %arg5: memref<128x128xbf16, #tpu.memory_space<vmem>>, %arg6: memref<1x128xf32, #tpu.memory_space<vmem>>, %arg7: memref<128x128xbf16, #tpu.memory_space<vmem>>, %arg8: memref<32x128xbf16, #tpu.memory_space<vmem>>, %arg9: memref<1x128xf32, #tpu.memory_space<vmem>>, %arg10: memref<128x128xbf16, #tpu.memory_space<vmem>>, %arg11: memref<1x128xf32, #tpu.memory_space<vmem>>, %arg12: memref<1x128xf32, #tpu.memory_space<vmem>>, %arg13: memref<128x128xbf16, #tpu.memory_space<vmem>>, %arg14: memref<32x128xbf16, #tpu.memory_space<vmem>>, %arg15: memref<1x128xf32, #tpu.memory_space<vmem>>, %arg16: memref<3x128xf32, #tpu.memory_space<vmem>>, %arg17: memref<1x4xf32, #tpu.memory_space<vmem>>, %arg18: memref<256x4xf32, #tpu.memory_space<vmem>>) attributes {dimension_semantics = [#tpu.dimension_semantics<parallel>], iteration_bounds = array<i64: 4>, scalar_prefetch = 0 : i64, scratch_operands = 0 : i64, tpu.core_type = #tpu.core_type<tc>, window_params = [{transform_indices = @transform_0, window_bounds = array<i64: 256, 32>}, {transform_indices = @transform_1, window_bounds = array<i64: 256, 32>}, {pipeline_mode = #tpu.pipeline_mode<synchronous>, transform_indices = @transform_2, window_bounds = array<i64: 32, 128>}, {pipeline_mode = #tpu.pipeline_mode<synchronous>, transform_indices = @transform_3, window_bounds = array<i64: 1, 128>}, {pipeline_mode = #tpu.pipeline_mode<synchronous>, transform_indices = @transform_4, window_bounds = array<i64: 128, 128>}, {pipeline_mode = #tpu.pipeline_mode<synchronous>, transform_indices = @transform_5, window_bounds = array<i64: 1, 128>}, {pipeline_mode = #tpu.pipeline_mode<synchronous>, transform_indices = @transform_6, window_bounds = array<i64: 128, 128>}, {pipeline_mode = #tpu.pipeline_mode<synchronous>, transform_indices = @transform_7, window_bounds = array<i64: 32, 128>}, {pipeline_mode = #tpu.pipeline_mode<synchronous>, transform_indices = @transform_8, window_bounds = array<i64: 1, 128>}, {pipeline_mode = #tpu.pipeline_mode<synchronous>, transform_indices = @transform_9, window_bounds = array<i64: 128, 128>}, {pipeline_mode = #tpu.pipeline_mode<synchronous>, transform_indices = @transform_10, window_bounds = array<i64: 1, 128>}, {pipeline_mode = #tpu.pipeline_mode<synchronous>, transform_indices = @transform_11, window_bounds = array<i64: 1, 128>}, {pipeline_mode = #tpu.pipeline_mode<synchronous>, transform_indices = @transform_12, window_bounds = array<i64: 128, 128>}, {pipeline_mode = #tpu.pipeline_mode<synchronous>, transform_indices = @transform_13, window_bounds = array<i64: 32, 128>}, {pipeline_mode = #tpu.pipeline_mode<synchronous>, transform_indices = @transform_14, window_bounds = array<i64: 1, 128>}, {pipeline_mode = #tpu.pipeline_mode<synchronous>, transform_indices = @transform_15, window_bounds = array<i64: 3, 128>}, {pipeline_mode = #tpu.pipeline_mode<synchronous>, transform_indices = @transform_16, window_bounds = array<i64: 1, 4>}, {transform_indices = @transform_17, window_bounds = array<i64: 256, 4>}]} {
    %c0 = arith.constant 0 : index
    %c0_0 = arith.constant 0 : index
    %0 = vector.load %arg1[%c0, %c0_0] : memref<256x32xbf16, #tpu.memory_space<vmem>>, vector<256x32xbf16>
    %c0_1 = arith.constant 0 : index
    %c0_2 = arith.constant 0 : index
    %1 = vector.load %arg2[%c0_1, %c0_2] : memref<256x32xbf16, #tpu.memory_space<vmem>>, vector<256x32xbf16>
    %c0_3 = arith.constant 0 : index
    %c0_4 = arith.constant 0 : index
    %2 = vector.load %arg3[%c0_3, %c0_4] : memref<32x128xbf16, #tpu.memory_space<vmem>>, vector<32x128xbf16>
    %cst = arith.constant dense<0.000000e+00> : vector<256x128xf32>
    %3 = tpu.matmul %0, %2, %cst {dimension_numbers = #tpu.dot_dimension_numbers<[1], [0], [0], [1], [0, 0, 1, 1], [], []>} : vector<256x32xbf16>, vector<32x128xbf16>, vector<256x128xf32> -> vector<256x128xf32>
    %c0_5 = arith.constant 0 : index
    %c0_6 = arith.constant 0 : index
    %4 = vector.load %arg4[%c0_5, %c0_6] : memref<1x128xf32, #tpu.memory_space<vmem>>, vector<1x128xf32>
    %5 = vector.broadcast %4 : vector<1x128xf32> to vector<256x128xf32>
    %6 = arith.addf %3, %5 : vector<256x128xf32>
    %cst_7 = arith.constant 0.000000e+00 : f32
    %7 = vector.broadcast %cst_7 : f32 to vector<256x128xf32>
    %8 = arith.maximumf %6, %7 : vector<256x128xf32>
    %9 = arith.truncf %8 : vector<256x128xf32> to vector<256x128xbf16>
    %c0_8 = arith.constant 0 : index
    %c0_9 = arith.constant 0 : index
    %10 = vector.load %arg5[%c0_8, %c0_9] : memref<128x128xbf16, #tpu.memory_space<vmem>>, vector<128x128xbf16>
    %cst_10 = arith.constant dense<0.000000e+00> : vector<256x128xf32>
    %11 = tpu.matmul %9, %10, %cst_10 {dimension_numbers = #tpu.dot_dimension_numbers<[1], [0], [0], [1], [0, 0, 1, 1], [], []>} : vector<256x128xbf16>, vector<128x128xbf16>, vector<256x128xf32> -> vector<256x128xf32>
    %c0_11 = arith.constant 0 : index
    %c0_12 = arith.constant 0 : index
    %12 = vector.load %arg6[%c0_11, %c0_12] : memref<1x128xf32, #tpu.memory_space<vmem>>, vector<1x128xf32>
    %13 = vector.broadcast %12 : vector<1x128xf32> to vector<256x128xf32>
    %14 = arith.addf %11, %13 : vector<256x128xf32>
    %cst_13 = arith.constant 0.000000e+00 : f32
    %15 = vector.broadcast %cst_13 : f32 to vector<256x128xf32>
    %16 = arith.maximumf %14, %15 : vector<256x128xf32>
    %17 = arith.truncf %16 : vector<256x128xf32> to vector<256x128xbf16>
    %c0_14 = arith.constant 0 : index
    %c0_15 = arith.constant 0 : index
    %18 = vector.load %arg7[%c0_14, %c0_15] : memref<128x128xbf16, #tpu.memory_space<vmem>>, vector<128x128xbf16>
    %cst_16 = arith.constant dense<0.000000e+00> : vector<256x128xf32>
    %19 = tpu.matmul %17, %18, %cst_16 {dimension_numbers = #tpu.dot_dimension_numbers<[1], [0], [0], [1], [0, 0, 1, 1], [], []>} : vector<256x128xbf16>, vector<128x128xbf16>, vector<256x128xf32> -> vector<256x128xf32>
    %c0_17 = arith.constant 0 : index
    %c0_18 = arith.constant 0 : index
    %20 = vector.load %arg8[%c0_17, %c0_18] : memref<32x128xbf16, #tpu.memory_space<vmem>>, vector<32x128xbf16>
    %cst_19 = arith.constant dense<0.000000e+00> : vector<256x128xf32>
    %21 = tpu.matmul %0, %20, %cst_19 {dimension_numbers = #tpu.dot_dimension_numbers<[1], [0], [0], [1], [0, 0, 1, 1], [], []>} : vector<256x32xbf16>, vector<32x128xbf16>, vector<256x128xf32> -> vector<256x128xf32>
    %22 = arith.addf %19, %21 : vector<256x128xf32>
    %c0_20 = arith.constant 0 : index
    %c0_21 = arith.constant 0 : index
    %23 = vector.load %arg9[%c0_20, %c0_21] : memref<1x128xf32, #tpu.memory_space<vmem>>, vector<1x128xf32>
    %24 = vector.broadcast %23 : vector<1x128xf32> to vector<256x128xf32>
    %25 = arith.addf %22, %24 : vector<256x128xf32>
    %cst_22 = arith.constant 0.000000e+00 : f32
    %26 = vector.broadcast %cst_22 : f32 to vector<256x128xf32>
    %27 = arith.maximumf %25, %26 : vector<256x128xf32>
    %c0_23 = arith.constant 0 : index
    %c0_24 = arith.constant 0 : index
    %28 = vector.load %arg12[%c0_23, %c0_24] : memref<1x128xf32, #tpu.memory_space<vmem>>, vector<1x128xf32>
    %29 = vector.broadcast %28 : vector<1x128xf32> to vector<256x128xf32>
    %30 = arith.mulf %27, %29 : vector<256x128xf32>
    %cst_25 = arith.constant dense<0.000000e+00> : vector<256xf32>
    %31 = vector.multi_reduction <add>, %30, %cst_25 [1] : vector<256x128xf32> to vector<256xf32>
    %32 = vector.shape_cast %31 : vector<256xf32> to vector<256x1xf32>
    %33 = arith.truncf %27 : vector<256x128xf32> to vector<256x128xbf16>
    %c0_26 = arith.constant 0 : index
    %c0_27 = arith.constant 0 : index
    %34 = vector.load %arg10[%c0_26, %c0_27] : memref<128x128xbf16, #tpu.memory_space<vmem>>, vector<128x128xbf16>
    %cst_28 = arith.constant dense<0.000000e+00> : vector<256x128xf32>
    %35 = tpu.matmul %33, %34, %cst_28 {dimension_numbers = #tpu.dot_dimension_numbers<[1], [0], [0], [1], [0, 0, 1, 1], [], []>} : vector<256x128xbf16>, vector<128x128xbf16>, vector<256x128xf32> -> vector<256x128xf32>
    %c0_29 = arith.constant 0 : index
    %c0_30 = arith.constant 0 : index
    %36 = vector.load %arg11[%c0_29, %c0_30] : memref<1x128xf32, #tpu.memory_space<vmem>>, vector<1x128xf32>
    %37 = vector.broadcast %36 : vector<1x128xf32> to vector<256x128xf32>
    %38 = arith.addf %35, %37 : vector<256x128xf32>
    %cst_31 = arith.constant 0.000000e+00 : f32
    %39 = vector.broadcast %cst_31 : f32 to vector<256x128xf32>
    %40 = arith.maximumf %38, %39 : vector<256x128xf32>
    %41 = arith.truncf %40 : vector<256x128xf32> to vector<256x128xbf16>
    %c0_32 = arith.constant 0 : index
    %c0_33 = arith.constant 0 : index
    %42 = vector.load %arg13[%c0_32, %c0_33] : memref<128x128xbf16, #tpu.memory_space<vmem>>, vector<128x128xbf16>
    %cst_34 = arith.constant dense<0.000000e+00> : vector<256x128xf32>
    %43 = tpu.matmul %41, %42, %cst_34 {dimension_numbers = #tpu.dot_dimension_numbers<[1], [0], [0], [1], [0, 0, 1, 1], [], []>} : vector<256x128xbf16>, vector<128x128xbf16>, vector<256x128xf32> -> vector<256x128xf32>
    %c0_35 = arith.constant 0 : index
    %c0_36 = arith.constant 0 : index
    %44 = vector.load %arg14[%c0_35, %c0_36] : memref<32x128xbf16, #tpu.memory_space<vmem>>, vector<32x128xbf16>
    %cst_37 = arith.constant dense<0.000000e+00> : vector<256x128xf32>
    %45 = tpu.matmul %1, %44, %cst_37 {dimension_numbers = #tpu.dot_dimension_numbers<[1], [0], [0], [1], [0, 0, 1, 1], [], []>} : vector<256x32xbf16>, vector<32x128xbf16>, vector<256x128xf32> -> vector<256x128xf32>
    %46 = arith.addf %43, %45 : vector<256x128xf32>
    %c0_38 = arith.constant 0 : index
    %c0_39 = arith.constant 0 : index
    %47 = vector.load %arg15[%c0_38, %c0_39] : memref<1x128xf32, #tpu.memory_space<vmem>>, vector<1x128xf32>
    %48 = vector.broadcast %47 : vector<1x128xf32> to vector<256x128xf32>
    %49 = arith.addf %46, %48 : vector<256x128xf32>
    %cst_40 = arith.constant 0.000000e+00 : f32
    %50 = vector.broadcast %cst_40 : f32 to vector<256x128xf32>
    %51 = arith.maximumf %49, %50 : vector<256x128xf32>
    %c0_41 = arith.constant 0 : index
    %c0_42 = arith.constant 0 : index
    %52 = vector.load %arg16[%c0_41, %c0_42] : memref<3x128xf32, #tpu.memory_space<vmem>>, vector<3x128xf32>
    %53 = vector.extract_strided_slice %52 {offsets = [0, 0], sizes = [1, 128], strides = [1, 1]} : vector<3x128xf32> to vector<1x128xf32>
    %54 = vector.broadcast %53 : vector<1x128xf32> to vector<256x128xf32>
    %55 = arith.mulf %51, %54 : vector<256x128xf32>
    %cst_43 = arith.constant dense<0.000000e+00> : vector<256xf32>
    %56 = vector.multi_reduction <add>, %55, %cst_43 [1] : vector<256x128xf32> to vector<256xf32>
    %57 = vector.shape_cast %56 : vector<256xf32> to vector<256x1xf32>
    %58 = vector.extract_strided_slice %52 {offsets = [1, 0], sizes = [1, 128], strides = [1, 1]} : vector<3x128xf32> to vector<1x128xf32>
    %59 = vector.broadcast %58 : vector<1x128xf32> to vector<256x128xf32>
    %60 = arith.mulf %51, %59 : vector<256x128xf32>
    %cst_44 = arith.constant dense<0.000000e+00> : vector<256xf32>
    %61 = vector.multi_reduction <add>, %60, %cst_44 [1] : vector<256x128xf32> to vector<256xf32>
    %62 = vector.shape_cast %61 : vector<256xf32> to vector<256x1xf32>
    %63 = vector.extract_strided_slice %52 {offsets = [2, 0], sizes = [1, 128], strides = [1, 1]} : vector<3x128xf32> to vector<1x128xf32>
    %64 = vector.broadcast %63 : vector<1x128xf32> to vector<256x128xf32>
    %65 = arith.mulf %51, %64 : vector<256x128xf32>
    %cst_45 = arith.constant dense<0.000000e+00> : vector<256xf32>
    %66 = vector.multi_reduction <add>, %65, %cst_45 [1] : vector<256x128xf32> to vector<256xf32>
    %67 = vector.shape_cast %66 : vector<256xf32> to vector<256x1xf32>
    %68 = tpu.concatenate %57, %62, %67, %32 in 1 : vector<256x1xf32>, vector<256x1xf32>, vector<256x1xf32>, vector<256x1xf32> -> vector<256x4xf32>
    %c0_46 = arith.constant 0 : index
    %c0_47 = arith.constant 0 : index
    %69 = vector.load %arg17[%c0_46, %c0_47] : memref<1x4xf32, #tpu.memory_space<vmem>>, vector<1x4xf32>
    %70 = vector.broadcast %69 : vector<1x4xf32> to vector<256x4xf32>
    %71 = arith.addf %68, %70 : vector<256x4xf32>
    %cst_48 = arith.constant 0.000000e+00 : f32
    %72 = vector.broadcast %cst_48 : f32 to vector<256x4xf32>
    %73 = arith.subf %72, %71 : vector<256x4xf32>
    %74 = math.exp %73 : vector<256x4xf32>
    %cst_49 = arith.constant 1.000000e+00 : f32
    %75 = vector.broadcast %cst_49 : f32 to vector<256x4xf32>
    %76 = arith.addf %75, %74 : vector<256x4xf32>
    %cst_50 = arith.constant 1.000000e+00 : f32
    %77 = vector.broadcast %cst_50 : f32 to vector<256x4xf32>
    %78 = arith.divf %77, %76 : vector<256x4xf32>
    %cst_51 = arith.constant 0.000000e+00 : f32
    %79 = vector.broadcast %cst_51 : f32 to vector<256x4xf32>
    %80 = arith.maximumf %71, %79 : vector<256x4xf32>
    %81 = math.absf %71 : vector<256x4xf32>
    %cst_52 = arith.constant 0.000000e+00 : f32
    %82 = vector.broadcast %cst_52 : f32 to vector<256x4xf32>
    %83 = arith.subf %82, %81 : vector<256x4xf32>
    %84 = math.exp %83 : vector<256x4xf32>
    %cst_53 = arith.constant 1.000000e+00 : f32
    %85 = vector.broadcast %cst_53 : f32 to vector<256x4xf32>
    %86 = arith.addf %85, %84 : vector<256x4xf32>
    %87 = math.log %86 : vector<256x4xf32>
    %88 = arith.addf %80, %87 : vector<256x4xf32>
    %89 = tpu.iota {dimensions = array<i32: 1>} : vector<256x4xi32>
    %c3_i32 = arith.constant 3 : i32
    %90 = vector.broadcast %c3_i32 : i32 to vector<256x4xi32>
    %91 = arith.cmpi slt, %89, %90 : vector<256x4xi32>
    %92 = arith.select %91, %78, %88 : vector<256x4xi1>, vector<256x4xf32>
    %c0_54 = arith.constant 0 : index
    %c0_55 = arith.constant 0 : index
    %93 = vector.load %arg18[%c0_54, %c0_55] : memref<256x4xf32, #tpu.memory_space<vmem>>, vector<256x4xf32>
    tpu.vector_store %arg18[%c0_54, %c0_55], %92 {strides = array<i32>} : memref<256x4xf32, #tpu.memory_space<vmem>>, vector<256x4xf32>,
    return
  }
  func.func @transform_0(%arg0: i32) -> (i32, i32) {
    %c0_i32 = arith.constant 0 : i32
    %c0_i32_0 = arith.constant 0 : i32
    return %arg0, %c0_i32 : i32, i32
  }
  func.func @transform_1(%arg0: i32) -> (i32, i32) {
    %c0_i32 = arith.constant 0 : i32
    %c0_i32_0 = arith.constant 0 : i32
    return %arg0, %c0_i32 : i32, i32
  }
  func.func @transform_2(%arg0: i32) -> (i32, i32) {
    %c0_i32 = arith.constant 0 : i32
    %c0_i32_0 = arith.constant 0 : i32
    %c0_i32_1 = arith.constant 0 : i32
    return %c0_i32, %c0_i32_0 : i32, i32
  }
  func.func @transform_3(%arg0: i32) -> (i32, i32) {
    %c0_i32 = arith.constant 0 : i32
    %c0_i32_0 = arith.constant 0 : i32
    %c0_i32_1 = arith.constant 0 : i32
    return %c0_i32, %c0_i32_0 : i32, i32
  }
  func.func @transform_4(%arg0: i32) -> (i32, i32) {
    %c0_i32 = arith.constant 0 : i32
    %c0_i32_0 = arith.constant 0 : i32
    %c0_i32_1 = arith.constant 0 : i32
    return %c0_i32, %c0_i32_0 : i32, i32
  }
  func.func @transform_5(%arg0: i32) -> (i32, i32) {
    %c0_i32 = arith.constant 0 : i32
    %c0_i32_0 = arith.constant 0 : i32
    %c0_i32_1 = arith.constant 0 : i32
    return %c0_i32, %c0_i32_0 : i32, i32
  }
  func.func @transform_6(%arg0: i32) -> (i32, i32) {
    %c0_i32 = arith.constant 0 : i32
    %c0_i32_0 = arith.constant 0 : i32
    %c0_i32_1 = arith.constant 0 : i32
    return %c0_i32, %c0_i32_0 : i32, i32
  }
  func.func @transform_7(%arg0: i32) -> (i32, i32) {
    %c0_i32 = arith.constant 0 : i32
    %c0_i32_0 = arith.constant 0 : i32
    %c0_i32_1 = arith.constant 0 : i32
    return %c0_i32, %c0_i32_0 : i32, i32
  }
  func.func @transform_8(%arg0: i32) -> (i32, i32) {
    %c0_i32 = arith.constant 0 : i32
    %c0_i32_0 = arith.constant 0 : i32
    %c0_i32_1 = arith.constant 0 : i32
    return %c0_i32, %c0_i32_0 : i32, i32
  }
  func.func @transform_9(%arg0: i32) -> (i32, i32) {
    %c0_i32 = arith.constant 0 : i32
    %c0_i32_0 = arith.constant 0 : i32
    %c0_i32_1 = arith.constant 0 : i32
    return %c0_i32, %c0_i32_0 : i32, i32
  }
  func.func @transform_10(%arg0: i32) -> (i32, i32) {
    %c0_i32 = arith.constant 0 : i32
    %c0_i32_0 = arith.constant 0 : i32
    %c0_i32_1 = arith.constant 0 : i32
    return %c0_i32, %c0_i32_0 : i32, i32
  }
  func.func @transform_11(%arg0: i32) -> (i32, i32) {
    %c0_i32 = arith.constant 0 : i32
    %c0_i32_0 = arith.constant 0 : i32
    %c0_i32_1 = arith.constant 0 : i32
    return %c0_i32, %c0_i32_0 : i32, i32
  }
  func.func @transform_12(%arg0: i32) -> (i32, i32) {
    %c0_i32 = arith.constant 0 : i32
    %c0_i32_0 = arith.constant 0 : i32
    %c0_i32_1 = arith.constant 0 : i32
    return %c0_i32, %c0_i32_0 : i32, i32
  }
  func.func @transform_13(%arg0: i32) -> (i32, i32) {
    %c0_i32 = arith.constant 0 : i32
    %c0_i32_0 = arith.constant 0 : i32
    %c0_i32_1 = arith.constant 0 : i32
    return %c0_i32, %c0_i32_0 : i32, i32
  }
  func.func @transform_14(%arg0: i32) -> (i32, i32) {
    %c0_i32 = arith.constant 0 : i32
    %c0_i32_0 = arith.constant 0 : i32
    %c0_i32_1 = arith.constant 0 : i32
    return %c0_i32, %c0_i32_0 : i32, i32
  }
  func.func @transform_15(%arg0: i32) -> (i32, i32) {
    %c0_i32 = arith.constant 0 : i32
    %c0_i32_0 = arith.constant 0 : i32
    %c0_i32_1 = arith.constant 0 : i32
    return %c0_i32, %c0_i32_0 : i32, i32
  }
  func.func @transform_16(%arg0: i32) -> (i32, i32) {
    %c0_i32 = arith.constant 0 : i32
    %c0_i32_0 = arith.constant 0 : i32
    %c0_i32_1 = arith.constant 0 : i32
    return %c0_i32, %c0_i32_0 : i32, i32
  }
  func.func @transform_17(%arg0: i32) -> (i32, i32) {
    %c0_i32 = arith.constant 0 : i32
    %c0_i32_0 = arith.constant 0 : i32
    return %arg0, %c0_i32 : i32, i32
  }
}

</mosaic_0001>

<llo_original>
// kernel: tpu_custom_call.1
$region0: #{tpu_custom_call.1}
  #allocation0 [shape = 'u32[]', space=smem, size = 0x4, offset = 0x4, fixed_abs, tag = 'smem constant byte address 0x4 - core index']
  #allocation1 [shape = 'u32[72,128]{1,0:T(1,128)}', space=vmem, size = 0x9000, scoped, tag = 'internal scratch']
  %s0 = inlined_call_operand.vmem [shape: bf16[1024,32], index: 0, kind: input, shape index: {}]
  %s1 = inlined_call_operand.vmem [shape: bf16[1024,32], index: 1, kind: input, shape index: {}]
  %s2 = inlined_call_operand.vmem [shape: bf16[32,128], index: 2, kind: input, shape index: {}]
  %s3 = inlined_call_operand.vmem [shape: f32[1,128], index: 3, kind: input, shape index: {}]
  %s4 = inlined_call_operand.vmem [shape: bf16[128,128], index: 4, kind: input, shape index: {}]
  %s5 = inlined_call_operand.vmem [shape: f32[1,128], index: 5, kind: input, shape index: {}]
  %s6 = inlined_call_operand.vmem [shape: bf16[128,128], index: 6, kind: input, shape index: {}]
  %s7 = inlined_call_operand.vmem [shape: bf16[32,128], index: 7, kind: input, shape index: {}]
  %s8 = inlined_call_operand.vmem [shape: f32[1,128], index: 8, kind: input, shape index: {}]
  %s9 = inlined_call_operand.vmem [shape: bf16[128,128], index: 9, kind: input, shape index: {}]
  %s10 = inlined_call_operand.vmem [shape: f32[1,128], index: 10, kind: input, shape index: {}]
  %s11 = inlined_call_operand.vmem [shape: f32[1,128], index: 11, kind: input, shape index: {}]
  %s12 = inlined_call_operand.vmem [shape: bf16[128,128], index: 12, kind: input, shape index: {}]
  %s13 = inlined_call_operand.vmem [shape: bf16[32,128], index: 13, kind: input, shape index: {}]
  %s14 = inlined_call_operand.vmem [shape: f32[1,128], index: 14, kind: input, shape index: {}]
  %s15 = inlined_call_operand.vmem [shape: f32[3,128], index: 15, kind: input, shape index: {}]
  %s16 = inlined_call_operand.vmem [shape: f32[1,4], index: 16, kind: input, shape index: {}]
  %s17 = inlined_call_operand.vmem [shape: f32[1024,4], index: 17, kind: output, shape index: {}]
  %s18 = sld [smem:[#allocation0]]
  $region101: #{tpu_custom_call.1} parent=0
    _
  %s20 = ssub.s32 1, %s18
  %s21 = scalar_select 0, %s20, %s18
  loop: start=0, step=1, limit=6
  $region2: #{tpu_custom_call.1} parent=0 // loop_pre_header
    _
  $region3: #{tpu_custom_call.1} parent=0 // loop_header
    %s23 = sphi 0, %s27
    %p24 = scmp.ge.s32.totalorder %s23, 6
    %s33 = sphi 0, %s35
    %s36 = sphi 0, %s33
    %s37 = sphi 0, %s36
    %s53 = sphi 0, %s37
    %s59 = sphi 0, %s61
    %s62 = sphi 0, %s59
    %s63 = sphi 0, %s62
    %s79 = sphi 0, %s63
    %s83 = sphi 0, %s83
    %s85 = sphi 0, %s83
    %s86 = sphi 0, %s85
    %s100 = sphi 0, %s86
    %s104 = sphi 0, %s104
    %s106 = sphi 0, %s104
    %s107 = sphi 0, %s106
    %s121 = sphi 0, %s107
    %s125 = sphi 0, %s125
    %s127 = sphi 0, %s125
    %s128 = sphi 0, %s127
    %s142 = sphi 0, %s128
    %s146 = sphi 0, %s146
    %s148 = sphi 0, %s146
    %s149 = sphi 0, %s148
    %s163 = sphi 0, %s149
    %s167 = sphi 0, %s167
    %s169 = sphi 0, %s167
    %s170 = sphi 0, %s169
    %s184 = sphi 0, %s170
    %s188 = sphi 0, %s188
    %s190 = sphi 0, %s188
    %s191 = sphi 0, %s190
    %s205 = sphi 0, %s191
    %s209 = sphi 0, %s209
    %s211 = sphi 0, %s209
    %s212 = sphi 0, %s211
    %s226 = sphi 0, %s212
    %s230 = sphi 0, %s230
    %s232 = sphi 0, %s230
    %s233 = sphi 0, %s232
    %s247 = sphi 0, %s233
    %s251 = sphi 0, %s251
    %s253 = sphi 0, %s251
    %s254 = sphi 0, %s253
    %s268 = sphi 0, %s254
    %s272 = sphi 0, %s272
    %s274 = sphi 0, %s272
    %s275 = sphi 0, %s274
    %s289 = sphi 0, %s275
    %s293 = sphi 0, %s293
    %s295 = sphi 0, %s293
    %s296 = sphi 0, %s295
    %s310 = sphi 0, %s296
    %s314 = sphi 0, %s314
    %s316 = sphi 0, %s314
    %s317 = sphi 0, %s316
    %s331 = sphi 0, %s317
    %s335 = sphi 0, %s335
    %s337 = sphi 0, %s335
    %s338 = sphi 0, %s337
    %s352 = sphi 0, %s338
    %s356 = sphi 0, %s356
    %s358 = sphi 0, %s356
    %s359 = sphi 0, %s358
    %s373 = sphi 0, %s359
    %s377 = sphi 0, %s377
    %s379 = sphi 0, %s377
    %s380 = sphi 0, %s379
    %s394 = sphi 0, %s380
    %s400 = sphi 0, %s402
    %s403 = sphi 0, %s400
    %s404 = sphi 0, %s403
    %s420 = sphi 0, %s404
  $region4: #{tpu_custom_call.1} parent=0 // loop_header_branch
    %26 = sbr.rel (%p24) target = $region8
  $region5: #{tpu_custom_call.1} parent=0 // loop_body
    %s28 = ssub.s32 %s23, 1
    %s29 = ssub.s32 %s23, 2
    %s30 = sadd.s32 %s23, 1
    %s31 = ssub.s32 %s23, %s30
    %p32 = scmp.eq.s32.totalorder %s31, 0
    %s34 = sadd.s32 %s33, 1
    %s35 = scalar_select %p32, %s33, %s34
    %p38 = pneg %p32
    %p39 = scmp.eq.s32.totalorder %s23, 3
    %p40 = por %p38, %p39
    %p41 = scmp.ne.s32.totalorder %s33, %s36
    %p42 = scmp.eq.s32.totalorder %s23, 0
    %p43 = por %p41, %p42
    %p44 = scmp.ne.s32.totalorder %s33, %s36
    %p45 = scmp.eq.s32.totalorder %s28, 3
    %p46 = por %p44, %p45
    %p47 = scmp.ne.s32.totalorder %s36, %s37
    %p48 = scmp.eq.s32.totalorder %s28, 0
    %p49 = por %p47, %p48
    %p50 = scmp.ne.s32.totalorder %s36, %s37
    %p51 = scmp.eq.s32.totalorder %s29, 3
    %p52 = por %p50, %p51
    %p54 = scmp.ne.s32.totalorder %s37, %s53
    %p55 = scmp.eq.s32.totalorder %s29, 0
    %p56 = por %p54, %p55
    %s57 = ssub.s32 %s23, %s30
    %p58 = scmp.eq.s32.totalorder %s57, 0
    %s60 = sadd.s32 %s59, 1
    %s61 = scalar_select %p58, %s59, %s60
    %p64 = pneg %p58
    %p65 = scmp.eq.s32.totalorder %s23, 3
    %p66 = por %p64, %p65
    %p67 = scmp.ne.s32.totalorder %s59, %s62
    %p68 = scmp.eq.s32.totalorder %s23, 0
    %p69 = por %p67, %p68
    %p70 = scmp.ne.s32.totalorder %s59, %s62
    %p71 = scmp.eq.s32.totalorder %s28, 3
    %p72 = por %p70, %p71
    %p73 = scmp.ne.s32.totalorder %s62, %s63
    %p74 = scmp.eq.s32.totalorder %s28, 0
    %p75 = por %p73, %p74
    %p76 = scmp.ne.s32.totalorder %s62, %s63
    %p77 = scmp.eq.s32.totalorder %s29, 3
    %p78 = por %p76, %p77
    %p80 = scmp.ne.s32.totalorder %s63, %s79
    %p81 = scmp.eq.s32.totalorder %s29, 0
    %p82 = por %p80, %p81
    %s84 = sadd.s32 %s83, 1
    %p87 = scmp.eq.s32.totalorder %s23, 3
    %p88 = scmp.ne.s32.totalorder %s83, %s85
    %p89 = scmp.eq.s32.totalorder %s23, 0
    %p90 = por %p88, %p89
    %p91 = scmp.ne.s32.totalorder %s83, %s85
    %p92 = scmp.eq.s32.totalorder %s28, 3
    %p93 = por %p91, %p92
    %p94 = scmp.ne.s32.totalorder %s85, %s86
    %p95 = scmp.eq.s32.totalorder %s28, 0
    %p96 = por %p94, %p95
    %p97 = scmp.ne.s32.totalorder %s85, %s86
    %p98 = scmp.eq.s32.totalorder %s29, 3
    %p99 = por %p97, %p98
    %p101 = scmp.ne.s32.totalorder %s86, %s100
    %p102 = scmp.eq.s32.totalorder %s29, 0
    %p103 = por %p101, %p102
    %s105 = sadd.s32 %s104, 1
    %p108 = scmp.eq.s32.totalorder %s23, 3
    %p109 = scmp.ne.s32.totalorder %s104, %s106
    %p110 = scmp.eq.s32.totalorder %s23, 0
    %p111 = por %p109, %p110
    %p112 = scmp.ne.s32.totalorder %s104, %s106
    %p113 = scmp.eq.s32.totalorder %s28, 3
    %p114 = por %p112, %p113
    %p115 = scmp.ne.s32.totalorder %s106, %s107
    %p116 = scmp.eq.s32.totalorder %s28, 0
    %p117 = por %p115, %p116
    %p118 = scmp.ne.s32.totalorder %s106, %s107
    %p119 = scmp.eq.s32.totalorder %s29, 3
    %p120 = por %p118, %p119
    %p122 = scmp.ne.s32.totalorder %s107, %s121
    %p123 = scmp.eq.s32.totalorder %s29, 0
    %p124 = por %p122, %p123
    %s126 = sadd.s32 %s125, 1
    %p129 = scmp.eq.s32.totalorder %s23, 3
    %p130 = scmp.ne.s32.totalorder %s125, %s127
    %p131 = scmp.eq.s32.totalorder %s23, 0
    %p132 = por %p130, %p131
    %p133 = scmp.ne.s32.totalorder %s125, %s127
    %p134 = scmp.eq.s32.totalorder %s28, 3
    %p135 = por %p133, %p134
    %p136 = scmp.ne.s32.totalorder %s127, %s128
    %p137 = scmp.eq.s32.totalorder %s28, 0
    %p138 = por %p136, %p137
    %p139 = scmp.ne.s32.totalorder %s127, %s128
    %p140 = scmp.eq.s32.totalorder %s29, 3
    %p141 = por %p139, %p140
    %p143 = scmp.ne.s32.totalorder %s128, %s142
    %p144 = scmp.eq.s32.totalorder %s29, 0
    %p145 = por %p143, %p144
    %s147 = sadd.s32 %s146, 1
    %p150 = scmp.eq.s32.totalorder %s23, 3
    %p151 = scmp.ne.s32.totalorder %s146, %s148
    %p152 = scmp.eq.s32.totalorder %s23, 0
    %p153 = por %p151, %p152
    %p154 = scmp.ne.s32.totalorder %s146, %s148
    %p155 = scmp.eq.s32.totalorder %s28, 3
    %p156 = por %p154, %p155
    %p157 = scmp.ne.s32.totalorder %s148, %s149
    %p158 = scmp.eq.s32.totalorder %s28, 0
    %p159 = por %p157, %p158
    %p160 = scmp.ne.s32.totalorder %s148, %s149
    %p161 = scmp.eq.s32.totalorder %s29, 3
    %p162 = por %p160, %p161
    %p164 = scmp.ne.s32.totalorder %s149, %s163
    %p165 = scmp.eq.s32.totalorder %s29, 0
    %p166 = por %p164, %p165
    %s168 = sadd.s32 %s167, 1
    %p171 = scmp.eq.s32.totalorder %s23, 3
    %p172 = scmp.ne.s32.totalorder %s167, %s169
    %p173 = scmp.eq.s32.totalorder %s23, 0
    %p174 = por %p172, %p173
    %p175 = scmp.ne.s32.totalorder %s167, %s169
    %p176 = scmp.eq.s32.totalorder %s28, 3
    %p177 = por %p175, %p176
    %p178 = scmp.ne.s32.totalorder %s169, %s170
    %p179 = scmp.eq.s32.totalorder %s28, 0
    %p180 = por %p178, %p179
    %p181 = scmp.ne.s32.totalorder %s169, %s170
    %p182 = scmp.eq.s32.totalorder %s29, 3
    %p183 = por %p181, %p182
    %p185 = scmp.ne.s32.totalorder %s170, %s184
    %p186 = scmp.eq.s32.totalorder %s29, 0
    %p187 = por %p185, %p186
    %s189 = sadd.s32 %s188, 1
    %p192 = scmp.eq.s32.totalorder %s23, 3
    %p193 = scmp.ne.s32.totalorder %s188, %s190
    %p194 = scmp.eq.s32.totalorder %s23, 0
    %p195 = por %p193, %p194
    %p196 = scmp.ne.s32.totalorder %s188, %s190
    %p197 = scmp.eq.s32.totalorder %s28, 3
    %p198 = por %p196, %p197
    %p199 = scmp.ne.s32.totalorder %s190, %s191
    %p200 = scmp.eq.s32.totalorder %s28, 0
    %p201 = por %p199, %p200
    %p202 = scmp.ne.s32.totalorder %s190, %s191
    %p203 = scmp.eq.s32.totalorder %s29, 3
    %p204 = por %p202, %p203
    %p206 = scmp.ne.s32.totalorder %s191, %s205
    %p207 = scmp.eq.s32.totalorder %s29, 0
    %p208 = por %p206, %p207
    %s210 = sadd.s32 %s209, 1
    %p213 = scmp.eq.s32.totalorder %s23, 3
    %p214 = scmp.ne.s32.totalorder %s209, %s211
    %p215 = scmp.eq.s32.totalorder %s23, 0
    %p216 = por %p214, %p215
    %p217 = scmp.ne.s32.totalorder %s209, %s211
    %p218 = scmp.eq.s32.totalorder %s28, 3
    %p219 = por %p217, %p218
    %p220 = scmp.ne.s32.totalorder %s211, %s212
    %p221 = scmp.eq.s32.totalorder %s28, 0
    %p222 = por %p220, %p221
    %p223 = scmp.ne.s32.totalorder %s211, %s212
    %p224 = scmp.eq.s32.totalorder %s29, 3
    %p225 = por %p223, %p224
    %p227 = scmp.ne.s32.totalorder %s212, %s226
    %p228 = scmp.eq.s32.totalorder %s29, 0
    %p229 = por %p227, %p228
    %s231 = sadd.s32 %s230, 1
    %p234 = scmp.eq.s32.totalorder %s23, 3
    %p235 = scmp.ne.s32.totalorder %s230, %s232
    %p236 = scmp.eq.s32.totalorder %s23, 0
    %p237 = por %p235, %p236
    %p238 = scmp.ne.s32.totalorder %s230, %s232
    %p239 = scmp.eq.s32.totalorder %s28, 3
    %p240 = por %p238, %p239
    %p241 = scmp.ne.s32.totalorder %s232, %s233
    %p242 = scmp.eq.s32.totalorder %s28, 0
    %p243 = por %p241, %p242
    %p244 = scmp.ne.s32.totalorder %s232, %s233
    %p245 = scmp.eq.s32.totalorder %s29, 3
    %p246 = por %p244, %p245
    %p248 = scmp.ne.s32.totalorder %s233, %s247
    %p249 = scmp.eq.s32.totalorder %s29, 0
    %p250 = por %p248, %p249
    %s252 = sadd.s32 %s251, 1
    %p255 = scmp.eq.s32.totalorder %s23, 3
    %p256 = scmp.ne.s32.totalorder %s251, %s253
    %p257 = scmp.eq.s32.totalorder %s23, 0
    %p258 = por %p256, %p257
    %p259 = scmp.ne.s32.totalorder %s251, %s253
    %p260 = scmp.eq.s32.totalorder %s28, 3
    %p261 = por %p259, %p260
    %p262 = scmp.ne.s32.totalorder %s253, %s254
    %p263 = scmp.eq.s32.totalorder %s28, 0
    %p264 = por %p262, %p263
    %p265 = scmp.ne.s32.totalorder %s253, %s254
    %p266 = scmp.eq.s32.totalorder %s29, 3
    %p267 = por %p265, %p266
    %p269 = scmp.ne.s32.totalorder %s254, %s268
    %p270 = scmp.eq.s32.totalorder %s29, 0
    %p271 = por %p269, %p270
    %s273 = sadd.s32 %s272, 1
    %p276 = scmp.eq.s32.totalorder %s23, 3
    %p277 = scmp.ne.s32.totalorder %s272, %s274
    %p278 = scmp.eq.s32.totalorder %s23, 0
    %p279 = por %p277, %p278
    %p280 = scmp.ne.s32.totalorder %s272, %s274
    %p281 = scmp.eq.s32.totalorder %s28, 3
    %p282 = por %p280, %p281
    %p283 = scmp.ne.s32.totalorder %s274, %s275
    %p284 = scmp.eq.s32.totalorder %s28, 0
    %p285 = por %p283, %p284
    %p286 = scmp.ne.s32.totalorder %s274, %s275
    %p287 = scmp.eq.s32.totalorder %s29, 3
    %p288 = por %p286, %p287
    %p290 = scmp.ne.s32.totalorder %s275, %s289
    %p291 = scmp.eq.s32.totalorder %s29, 0
    %p292 = por %p290, %p291
    %s294 = sadd.s32 %s293, 1
    %p297 = scmp.eq.s32.totalorder %s23, 3
    %p298 = scmp.ne.s32.totalorder %s293, %s295
    %p299 = scmp.eq.s32.totalorder %s23, 0
    %p300 = por %p298, %p299
    %p301 = scmp.ne.s32.totalorder %s293, %s295
    %p302 = scmp.eq.s32.totalorder %s28, 3
    %p303 = por %p301, %p302
    %p304 = scmp.ne.s32.totalorder %s295, %s296
    %p305 = scmp.eq.s32.totalorder %s28, 0
    %p306 = por %p304, %p305
    %p307 = scmp.ne.s32.totalorder %s295, %s296
    %p308 = scmp.eq.s32.totalorder %s29, 3
    %p309 = por %p307, %p308
    %p311 = scmp.ne.s32.totalorder %s296, %s310
    %p312 = scmp.eq.s32.totalorder %s29, 0
    %p313 = por %p311, %p312
    %s315 = sadd.s32 %s314, 1
    %p318 = scmp.eq.s32.totalorder %s23, 3
    %p319 = scmp.ne.s32.totalorder %s314, %s316
    %p320 = scmp.eq.s32.totalorder %s23, 0
    %p321 = por %p319, %p320
    %p322 = scmp.ne.s32.totalorder %s314, %s316
    %p323 = scmp.eq.s32.totalorder %s28, 3
    %p324 = por %p322, %p323
    %p325 = scmp.ne.s32.totalorder %s316, %s317
    %p326 = scmp.eq.s32.totalorder %s28, 0
    %p327 = por %p325, %p326
    %p328 = scmp.ne.s32.totalorder %s316, %s317
    %p329 = scmp.eq.s32.totalorder %s29, 3
    %p330 = por %p328, %p329
    %p332 = scmp.ne.s32.totalorder %s317, %s331
    %p333 = scmp.eq.s32.totalorder %s29, 0
    %p334 = por %p332, %p333
    %s336 = sadd.s32 %s335, 1
    %p339 = scmp.eq.s32.totalorder %s23, 3
    %p340 = scmp.ne.s32.totalorder %s335, %s337
    %p341 = scmp.eq.s32.totalorder %s23, 0
    %p342 = por %p340, %p341
    %p343 = scmp.ne.s32.totalorder %s335, %s337
    %p344 = scmp.eq.s32.totalorder %s28, 3
    %p345 = por %p343, %p344
    %p346 = scmp.ne.s32.totalorder %s337, %s338
    %p347 = scmp.eq.s32.totalorder %s28, 0
    %p348 = por %p346, %p347
    %p349 = scmp.ne.s32.totalorder %s337, %s338
    %p350 = scmp.eq.s32.totalorder %s29, 3
    %p351 = por %p349, %p350
    %p353 = scmp.ne.s32.totalorder %s338, %s352
    %p354 = scmp.eq.s32.totalorder %s29, 0
    %p355 = por %p353, %p354
    %s357 = sadd.s32 %s356, 1
    %p360 = scmp.eq.s32.totalorder %s23, 3
    %p361 = scmp.ne.s32.totalorder %s356, %s358
    %p362 = scmp.eq.s32.totalorder %s23, 0
    %p363 = por %p361, %p362
    %p364 = scmp.ne.s32.totalorder %s356, %s358
    %p365 = scmp.eq.s32.totalorder %s28, 3
    %p366 = por %p364, %p365
    %p367 = scmp.ne.s32.totalorder %s358, %s359
    %p368 = scmp.eq.s32.totalorder %s28, 0
    %p369 = por %p367, %p368
    %p370 = scmp.ne.s32.totalorder %s358, %s359
    %p371 = scmp.eq.s32.totalorder %s29, 3
    %p372 = por %p370, %p371
    %p374 = scmp.ne.s32.totalorder %s359, %s373
    %p375 = scmp.eq.s32.totalorder %s29, 0
    %p376 = por %p374, %p375
    %s378 = sadd.s32 %s377, 1
    %p381 = scmp.eq.s32.totalorder %s23, 3
    %p382 = scmp.ne.s32.totalorder %s377, %s379
    %p383 = scmp.eq.s32.totalorder %s23, 0
    %p384 = por %p382, %p383
    %p385 = scmp.ne.s32.totalorder %s377, %s379
    %p386 = scmp.eq.s32.totalorder %s28, 3
    %p387 = por %p385, %p386
    %p388 = scmp.ne.s32.totalorder %s379, %s380
    %p389 = scmp.eq.s32.totalorder %s28, 0
    %p390 = por %p388, %p389
    %p391 = scmp.ne.s32.totalorder %s379, %s380
    %p392 = scmp.eq.s32.totalorder %s29, 3
    %p393 = por %p391, %p392
    %p395 = scmp.ne.s32.totalorder %s380, %s394
    %p396 = scmp.eq.s32.totalorder %s29, 0
    %p397 = por %p395, %p396
    %s398 = ssub.s32 %s23, %s30
    %p399 = scmp.eq.s32.totalorder %s398, 0
    %s401 = sadd.s32 %s400, 1
    %s402 = scalar_select %p399, %s400, %s401
    %p405 = pneg %p399
    %p406 = scmp.eq.s32.totalorder %s23, 3
    %p407 = por %p405, %p406
    %p408 = scmp.ne.s32.totalorder %s400, %s403
    %p409 = scmp.eq.s32.totalorder %s23, 0
    %p410 = por %p408, %p409
    %p411 = scmp.ne.s32.totalorder %s400, %s403
    %p412 = scmp.eq.s32.totalorder %s28, 3
    %p413 = por %p411, %p412
    %p414 = scmp.ne.s32.totalorder %s403, %s404
    %p415 = scmp.eq.s32.totalorder %s28, 0
    %p416 = por %p414, %p415
    %p417 = scmp.ne.s32.totalorder %s403, %s404
    %p418 = scmp.eq.s32.totalorder %s29, 3
    %p419 = por %p417, %p418
    %p421 = scmp.ne.s32.totalorder %s404, %s420
    %p422 = scmp.eq.s32.totalorder %s29, 0
    %p423 = por %p421, %p422
    %p424 = scmp.le.s32.totalorder 1, %s23
    %p425 = scmp.lt.s32.totalorder %s23, 5
    %p426 = pnand %p424, %p425
    %p427 = pneg %p426
    // Predicated region
    $region9: #{tpu_custom_call.1} parent=5 // pred_check
      _
    $region10: #{tpu_custom_call.1} parent=5 // pred_check_branch
      %429 = sbr.rel (%p426) target = $region12
    $region11: #{tpu_custom_call.1} parent=5 // pred_region
      %s430 = ssub.s32 %s23, 1
      // Predicated region
      $region13: #{tpu_custom_call.1} parent=11 // pred_check
        %p431 = pneg %p96
      $region14: #{tpu_custom_call.1} parent=11 // pred_check_branch
        %433 = sbr.rel (%p431) target = $region16
      $region15: #{tpu_custom_call.1} parent=11 // pred_region
        _
      $region16: #{tpu_custom_call.1} parent=11 // pred_fallthru
        _
      // Predicated region
      $region17: #{tpu_custom_call.1} parent=11 // pred_check
        %p434 = pneg %p117
      $region18: #{tpu_custom_call.1} parent=11 // pred_check_branch
        %436 = sbr.rel (%p434) target = $region20
      $region19: #{tpu_custom_call.1} parent=11 // pred_region
        _
      $region20: #{tpu_custom_call.1} parent=11 // pred_fallthru
        _
      // Predicated region
      $region21: #{tpu_custom_call.1} parent=11 // pred_check
        %p437 = pneg %p138
      $region22: #{tpu_custom_call.1} parent=11 // pred_check_branch
        %439 = sbr.rel (%p437) target = $region24
      $region23: #{tpu_custom_call.1} parent=11 // pred_region
        _
      $region24: #{tpu_custom_call.1} parent=11 // pred_fallthru
        _
      // Predicated region
      $region25: #{tpu_custom_call.1} parent=11 // pred_check
        %p440 = pneg %p159
      $region26: #{tpu_custom_call.1} parent=11 // pred_check_branch
        %442 = sbr.rel (%p440) target = $region28
      $region27: #{tpu_custom_call.1} parent=11 // pred_region
        _
      $region28: #{tpu_custom_call.1} parent=11 // pred_fallthru
        _
      // Predicated region
      $region29: #{tpu_custom_call.1} parent=11 // pred_check
        %p443 = pneg %p180
      $region30: #{tpu_custom_call.1} parent=11 // pred_check_branch
        %445 = sbr.rel (%p443) target = $region32
      $region31: #{tpu_custom_call.1} parent=11 // pred_region
        _
      $region32: #{tpu_custom_call.1} parent=11 // pred_fallthru
        _
      // Predicated region
      $region33: #{tpu_custom_call.1} parent=11 // pred_check
        %p446 = pneg %p201
      $region34: #{tpu_custom_call.1} parent=11 // pred_check_branch
        %448 = sbr.rel (%p446) target = $region36
      $region35: #{tpu_custom_call.1} parent=11 // pred_region
        _
      $region36: #{tpu_custom_call.1} parent=11 // pred_fallthru
        _
      // Predicated region
      $region37: #{tpu_custom_call.1} parent=11 // pred_check
        %p449 = pneg %p222
      $region38: #{tpu_custom_call.1} parent=11 // pred_check_branch
        %451 = sbr.rel (%p449) target = $region40
      $region39: #{tpu_custom_call.1} parent=11 // pred_region
        _
      $region40: #{tpu_custom_call.1} parent=11 // pred_fallthru
        _
      // Predicated region
      $region41: #{tpu_custom_call.1} parent=11 // pred_check
        %p452 = pneg %p243
      $region42: #{tpu_custom_call.1} parent=11 // pred_check_branch
        %454 = sbr.rel (%p452) target = $region44
      $region43: #{tpu_custom_call.1} parent=11 // pred_region
        _
      $region44: #{tpu_custom_call.1} parent=11 // pred_fallthru
        _
      // Predicated region
      $region45: #{tpu_custom_call.1} parent=11 // pred_check
        %p455 = pneg %p264
      $region46: #{tpu_custom_call.1} parent=11 // pred_check_branch
        %457 = sbr.rel (%p455) target = $region48
      $region47: #{tpu_custom_call.1} parent=11 // pred_region
        _
      $region48: #{tpu_custom_call.1} parent=11 // pred_fallthru
        _
      // Predicated region
      $region49: #{tpu_custom_call.1} parent=11 // pred_check
        %p458 = pneg %p285
      $region50: #{tpu_custom_call.1} parent=11 // pred_check_branch
        %460 = sbr.rel (%p458) target = $region52
      $region51: #{tpu_custom_call.1} parent=11 // pred_region
        _
      $region52: #{tpu_custom_call.1} parent=11 // pred_fallthru
        _
      // Predicated region
      $region53: #{tpu_custom_call.1} parent=11 // pred_check
        %p461 = pneg %p306
      $region54: #{tpu_custom_call.1} parent=11 // pred_check_branch
        %463 = sbr.rel (%p461) target = $region56
      $region55: #{tpu_custom_call.1} parent=11 // pred_region
        _
      $region56: #{tpu_custom_call.1} parent=11 // pred_fallthru
        _
      // Predicated region
      $region57: #{tpu_custom_call.1} parent=11 // pred_check
        %p464 = pneg %p327
      $region58: #{tpu_custom_call.1} parent=11 // pred_check_branch
        %466 = sbr.rel (%p464) target = $region60
      $region59: #{tpu_custom_call.1} parent=11 // pred_region
        _
      $region60: #{tpu_custom_call.1} parent=11 // pred_fallthru
        _
      // Predicated region
      $region61: #{tpu_custom_call.1} parent=11 // pred_check
        %p467 = pneg %p348
      $region62: #{tpu_custom_call.1} parent=11 // pred_check_branch
        %469 = sbr.rel (%p467) target = $region64
      $region63: #{tpu_custom_call.1} parent=11 // pred_region
        _
      $region64: #{tpu_custom_call.1} parent=11 // pred_fallthru
        _
      // Predicated region
      $region65: #{tpu_custom_call.1} parent=11 // pred_check
        %p470 = pneg %p369
      $region66: #{tpu_custom_call.1} parent=11 // pred_check_branch
        %472 = sbr.rel (%p470) target = $region68
      $region67: #{tpu_custom_call.1} parent=11 // pred_region
        _
      $region68: #{tpu_custom_call.1} parent=11 // pred_fallthru
        _
      // Predicated region
      $region69: #{tpu_custom_call.1} parent=11 // pred_check
        %p473 = pneg %p390
      $region70: #{tpu_custom_call.1} parent=11 // pred_check_branch
        %475 = sbr.rel (%p473) target = $region72
      $region71: #{tpu_custom_call.1} parent=11 // pred_region
        _
      $region72: #{tpu_custom_call.1} parent=11 // pred_fallthru
        _
    $region12: #{tpu_custom_call.1} parent=5 // pred_fallthru
      _
    %p476 = scmp.lt.s32.totalorder %s23, 4
    // Predicated region
    $region73: #{tpu_custom_call.1} parent=5 // pred_check
      %p477 = pneg %p476
    $region74: #{tpu_custom_call.1} parent=5 // pred_check_branch
      %479 = sbr.rel (%p477) target = $region76
    $region75: #{tpu_custom_call.1} parent=5 // pred_region
      // Predicated region
      $region77: #{tpu_custom_call.1} parent=75 // pred_check
        %p480 = pneg %p43
      $region78: #{tpu_custom_call.1} parent=75 // pred_check_branch
        %482 = sbr.rel (%p480) target = $region80
      $region79: #{tpu_custom_call.1} parent=75 // pred_region
        %s483 = smul.u32 32, %s23
        %p484 = scmp.lt.s32.totalorder %s483, 127
        %s485 = scalar_select %p484, %s483, 127
        %s486 = smul.addr %s485, 4
        %s487 = scalar_lea.vmem %s0, %s486
        %s488 = smul.u32 32, %s23
      $region80: #{tpu_custom_call.1} parent=75 // pred_fallthru
        _
      // Predicated region
      $region81: #{tpu_custom_call.1} parent=75 // pred_check
        %p489 = pneg %p69
      $region82: #{tpu_custom_call.1} parent=75 // pred_check_branch
        %491 = sbr.rel (%p489) target = $region84
      $region83: #{tpu_custom_call.1} parent=75 // pred_region
        %s492 = smul.u32 32, %s23
        %p493 = scmp.lt.s32.totalorder %s492, 127
        %s494 = scalar_select %p493, %s492, 127
        %s495 = smul.addr %s494, 4
        %s496 = scalar_lea.vmem %s1, %s495
        %s497 = smul.u32 32, %s23
      $region84: #{tpu_custom_call.1} parent=75 // pred_fallthru
        _
    $region76: #{tpu_custom_call.1} parent=5 // pred_fallthru
      _
    %p498 = scmp.le.s32.totalorder 1, %s23
    %p499 = scmp.lt.s32.totalorder %s23, 5
    %p500 = pnand %p498, %p499
    %p501 = pneg %p500
    // Predicated region
    $region85: #{tpu_custom_call.1} parent=5 // pred_check
      _
    $region86: #{tpu_custom_call.1} parent=5 // pred_check_branch
      %503 = sbr.rel (%p500) target = $region88
    $region87: #{tpu_custom_call.1} parent=5 // pred_region
      %s504 = ssub.s32 %s23, 1
      %s505 = smul.u32 32, %s28
      %p506 = scmp.lt.s32.totalorder %s505, 127
      %s507 = scalar_select %p506, %s505, 127
      %s508 = smul.addr %s507, 4
      %s509 = scalar_lea.vmem %s0, %s508
      %p510 = pneg %p49
      %p511 = pneg %p46
      %s512 = smul.u32 32, %s28
      %p513 = scmp.lt.s32.totalorder %s512, 127
      %s514 = scalar_select %p513, %s512, 127
      %s515 = smul.addr %s514, 4
      %s516 = scalar_lea.vmem %s1, %s515
      %p517 = pneg %p75
      %p518 = pneg %p72
      %p519 = pneg %p96
      %p520 = pneg %p93
      %p521 = pneg %p117
      %p522 = pneg %p114
      %p523 = pneg %p138
      %p524 = pneg %p135
      %p525 = pneg %p159
      %p526 = pneg %p156
      %p527 = pneg %p180
      %p528 = pneg %p177
      %p529 = pneg %p201
      %p530 = pneg %p198
      %p531 = pneg %p222
      %p532 = pneg %p219
      %p533 = pneg %p243
      %p534 = pneg %p240
      %p535 = pneg %p264
      %p536 = pneg %p261
      %p537 = pneg %p285
      %p538 = pneg %p282
      %p539 = pneg %p306
      %p540 = pneg %p303
      %p541 = pneg %p327
      %p542 = pneg %p324
      %p543 = pneg %p348
      %p544 = pneg %p345
      %p545 = pneg %p369
      %p546 = pneg %p366
      %p547 = pneg %p390
      %p548 = pneg %p387
      %p549 = pneg %p416
      %p550 = pneg %p413
      %s551 = smul.u32 32, %s28
      %p552 = scmp.lt.s32.totalorder %s551, 127
      %s553 = scalar_select %p552, %s551, 127
      %s554 = smul.addr %s553, 8
      %s555 = scalar_lea.vmem %s17, %s554
      %s556 = smul.u32 32, %s28
      %p557 = scmp.lt.s32.totalorder %s556, 127
      %s558 = scalar_select %p557, %s556, 127
      %s559 = smul.addr %s558, 4
      %s560 = scalar_lea.vmem %s0, %s559
      %s561 = smul.u32 32, %s28
      %s562 = smul.u32 32, %s28
      %p563 = scmp.lt.s32.totalorder %s562, 127
      %s564 = scalar_select %p563, %s562, 127
      %s565 = smul.addr %s564, 4
      %s566 = scalar_lea.vmem %s1, %s565
      %s567 = smul.u32 32, %s28
      %s568 = smul.u32 32, %s28
      %p569 = scmp.lt.s32.totalorder %s568, 127
      %s570 = scalar_select %p569, %s568, 127
      %s571 = smul.addr %s570, 8
      %s572 = scalar_lea.vmem %s17, %s571
      %s573 = smul.u32 32, %s28
      %v575 = vld [vmem:[%s560] sm:$0xf]
      %v576 = vld [vmem:[%s560 + $0x4] sm:$0xf]
      %v577 = vld [vmem:[%s560 + $0x8] sm:$0xf]
      %v578 = vld [vmem:[%s560 + $0xc] sm:$0xf]
      %v579 = vld [vmem:[%s560 + $0x10] sm:$0xf]
      %v580 = vld [vmem:[%s560 + $0x14] sm:$0xf]
      %v581 = vld [vmem:[%s560 + $0x18] sm:$0xf]
      %v582 = vld [vmem:[%s560 + $0x1c] sm:$0xf]
      %v583 = vld [vmem:[%s560 + $0x20] sm:$0xf]
      %v584 = vld [vmem:[%s560 + $0x24] sm:$0xf]
      %v585 = vld [vmem:[%s560 + $0x28] sm:$0xf]
      %v586 = vld [vmem:[%s560 + $0x2c] sm:$0xf]
      %v587 = vld [vmem:[%s560 + $0x30] sm:$0xf]
      %v588 = vld [vmem:[%s560 + $0x34] sm:$0xf]
      %v589 = vld [vmem:[%s560 + $0x38] sm:$0xf]
      %v590 = vld [vmem:[%s560 + $0x3c] sm:$0xf]
      %v591 = vld [vmem:[%s560 + $0x40] sm:$0xf]
      %v592 = vld [vmem:[%s560 + $0x44] sm:$0xf]
      %v593 = vld [vmem:[%s560 + $0x48] sm:$0xf]
      %v594 = vld [vmem:[%s560 + $0x4c] sm:$0xf]
      %v595 = vld [vmem:[%s560 + $0x50] sm:$0xf]
      %v596 = vld [vmem:[%s560 + $0x54] sm:$0xf]
      %v597 = vld [vmem:[%s560 + $0x58] sm:$0xf]
      %v598 = vld [vmem:[%s560 + $0x5c] sm:$0xf]
      %v599 = vld [vmem:[%s560 + $0x60] sm:$0xf]
      %v600 = vld [vmem:[%s560 + $0x64] sm:$0xf]
      %v601 = vld [vmem:[%s560 + $0x68] sm:$0xf]
      %v602 = vld [vmem:[%s560 + $0x6c] sm:$0xf]
      %v603 = vld [vmem:[%s560 + $0x70] sm:$0xf]
      %v604 = vld [vmem:[%s560 + $0x74] sm:$0xf]
      %v605 = vld [vmem:[%s560 + $0x78] sm:$0xf]
      %v606 = vld [vmem:[%s560 + $0x7c] sm:$0xf]
      %v607 = vld [vmem:[%s566] sm:$0xf]
      %v608 = vld [vmem:[%s566 + $0x4] sm:$0xf]
      %v609 = vld [vmem:[%s566 + $0x8] sm:$0xf]
      %v610 = vld [vmem:[%s566 + $0xc] sm:$0xf]
      %v611 = vld [vmem:[%s566 + $0x10] sm:$0xf]
      %v612 = vld [vmem:[%s566 + $0x14] sm:$0xf]
      %v613 = vld [vmem:[%s566 + $0x18] sm:$0xf]
      %v614 = vld [vmem:[%s566 + $0x1c] sm:$0xf]
      %v615 = vld [vmem:[%s566 + $0x20] sm:$0xf]
      %v616 = vld [vmem:[%s566 + $0x24] sm:$0xf]
      %v617 = vld [vmem:[%s566 + $0x28] sm:$0xf]
      %v618 = vld [vmem:[%s566 + $0x2c] sm:$0xf]
      %v619 = vld [vmem:[%s566 + $0x30] sm:$0xf]
      %v620 = vld [vmem:[%s566 + $0x34] sm:$0xf]
      %v621 = vld [vmem:[%s566 + $0x38] sm:$0xf]
      %v622 = vld [vmem:[%s566 + $0x3c] sm:$0xf]
      %v623 = vld [vmem:[%s566 + $0x40] sm:$0xf]
      %v624 = vld [vmem:[%s566 + $0x44] sm:$0xf]
      %v625 = vld [vmem:[%s566 + $0x48] sm:$0xf]
      %v626 = vld [vmem:[%s566 + $0x4c] sm:$0xf]
      %v627 = vld [vmem:[%s566 + $0x50] sm:$0xf]
      %v628 = vld [vmem:[%s566 + $0x54] sm:$0xf]
      %v629 = vld [vmem:[%s566 + $0x58] sm:$0xf]
      %v630 = vld [vmem:[%s566 + $0x5c] sm:$0xf]
      %v631 = vld [vmem:[%s566 + $0x60] sm:$0xf]
      %v632 = vld [vmem:[%s566 + $0x64] sm:$0xf]
      %v633 = vld [vmem:[%s566 + $0x68] sm:$0xf]
      %v634 = vld [vmem:[%s566 + $0x6c] sm:$0xf]
      %v635 = vld [vmem:[%s566 + $0x70] sm:$0xf]
      %v636 = vld [vmem:[%s566 + $0x74] sm:$0xf]
      %v637 = vld [vmem:[%s566 + $0x78] sm:$0xf]
      %v638 = vld [vmem:[%s566 + $0x7c] sm:$0xf]
      %v639 = vld [vmem:[%s2] sm:$0xf]
      %v640 = vld [vmem:[%s2 + $0x4] sm:$0xf]
      %v641 = vld [vmem:[%s2 + $0x8] sm:$0xf]
      %v642 = vld [vmem:[%s2 + $0xc] sm:$0xf]
      %v643 = vld [vmem:[%s3] sm:$0x1]
      %v645 = vperm.slane %v643, 0
      %v679 = vunpack.c.l.b16 %v575
      %v680 = vunpack.c.l.b16 %v576
      %v681 = vunpack.c.l.b16 %v577
      %v682 = vunpack.c.l.b16 %v578
      %v683 = vunpack.c.l.b16 %v579
      %v684 = vunpack.c.l.b16 %v580
      %v685 = vunpack.c.l.b16 %v581
      %v686 = vunpack.c.l.b16 %v582
      %v687 = vunpack.c.l.b16 %v583
      %v688 = vunpack.c.l.b16 %v584
      %v689 = vunpack.c.l.b16 %v585
      %v690 = vunpack.c.l.b16 %v586
      %v691 = vunpack.c.l.b16 %v587
      %v692 = vunpack.c.l.b16 %v588
      %v693 = vunpack.c.l.b16 %v589
      %v694 = vunpack.c.l.b16 %v590
      %v695 = vunpack.c.l.b16 %v591
      %v696 = vunpack.c.l.b16 %v592
      %v697 = vunpack.c.l.b16 %v593
      %v698 = vunpack.c.l.b16 %v594
      %v699 = vunpack.c.l.b16 %v595
      %v700 = vunpack.c.l.b16 %v596
      %v701 = vunpack.c.l.b16 %v597
      %v702 = vunpack.c.l.b16 %v598
      %v703 = vunpack.c.l.b16 %v599
      %v704 = vunpack.c.l.b16 %v600
      %v705 = vunpack.c.l.b16 %v601
      %v706 = vunpack.c.l.b16 %v602
      %v707 = vunpack.c.l.b16 %v603
      %v708 = vunpack.c.l.b16 %v604
      %v709 = vunpack.c.l.b16 %v605
      %v710 = vunpack.c.l.b16 %v606
      %v711 = vpack.c.b16 %v680, %v679
      %v712 = vpack.c.b16 %v682, %v681
      %v713 = vpack.c.b16 %v684, %v683
      %v714 = vpack.c.b16 %v686, %v685
      %v715 = vpack.c.b16 %v688, %v687
      %v716 = vpack.c.b16 %v690, %v689
      %v717 = vpack.c.b16 %v692, %v691
      %v718 = vpack.c.b16 %v694, %v693
      %v719 = vpack.c.b16 %v696, %v695
      %v720 = vpack.c.b16 %v698, %v697
      %v721 = vpack.c.b16 %v700, %v699
      %v722 = vpack.c.b16 %v702, %v701
      %v723 = vpack.c.b16 %v704, %v703
      %v724 = vpack.c.b16 %v706, %v705
      %v725 = vpack.c.b16 %v708, %v707
      %v726 = vpack.c.b16 %v710, %v709
      %v731 = vunpack.c.l.b16 %v639
      %v732 = vunpack.c.l.b16 %v640
      %v733 = vunpack.c.l.b16 %v641
      %v734 = vunpack.c.l.b16 %v642
      %v735 = vpack.c.b16 %v732, %v731
      %v736 = vpack.c.b16 %v734, %v733
      %vm739 = vcmask 261120
      %v741 = vsel %vm739, %v711, 0
      %v744 = vsel %vm739, %v712, 0
      %v747 = vsel %vm739, %v713, 0
      %v750 = vsel %vm739, %v714, 0
      %v753 = vsel %vm739, %v715, 0
      %v756 = vsel %vm739, %v716, 0
      %v759 = vsel %vm739, %v717, 0
      %v762 = vsel %vm739, %v718, 0
      %v765 = vsel %vm739, %v719, 0
      %v768 = vsel %vm739, %v720, 0
      %v771 = vsel %vm739, %v721, 0
      %v774 = vsel %vm739, %v722, 0
      %v777 = vsel %vm739, %v723, 0
      %v780 = vsel %vm739, %v724, 0
      %v783 = vsel %vm739, %v725, 0
      %v786 = vsel %vm739, %v726, 0
      %788 = vmatpush.bf16.msra.mxu0 0
      %789 = vmatpush.bf16.msra.mxu0 0
      %790 = vmatpush.bf16.msra.mxu0 0
      %791 = vmatpush.bf16.msra.mxu0 0
      %792 = vmatpush.bf16.msra.mxu0 0
      %793 = vmatpush.bf16.msra.mxu0 0
      %794 = vmatpush.bf16.msra.mxu0 %v736
      %795 = vmatpush.bf16.msra.mxu0 %v735
      %796 = vmatmul.bf16.gmra.mxu0 %v741
      %v797 = vpop.f32.mrf.mxu0
      %v798 = vadd.f32 %v645, %v797
      %v799 = vpop.f32.mrf.mxu0
      %v800 = vadd.f32 %v645, %v799
      %801 = vmatmul.bf16.gmra.mxu0 %v744
      %v802 = vpop.f32.mrf.mxu0
      %v803 = vadd.f32 %v645, %v802
      %v804 = vpop.f32.mrf.mxu0
      %v805 = vadd.f32 %v645, %v804
      %806 = vmatmul.bf16.gmra.mxu0 %v747
      %v807 = vpop.f32.mrf.mxu0
      %v808 = vadd.f32 %v645, %v807
      %v809 = vpop.f32.mrf.mxu0
      %v810 = vadd.f32 %v645, %v809
      %811 = vmatmul.bf16.gmra.mxu0 %v750
      %v812 = vpop.f32.mrf.mxu0
      %v813 = vadd.f32 %v645, %v812
      %v814 = vpop.f32.mrf.mxu0
      %v815 = vadd.f32 %v645, %v814
      %816 = vmatmul.bf16.gmra.mxu0 %v753
      %v817 = vpop.f32.mrf.mxu0
      %v818 = vadd.f32 %v645, %v817
      %v819 = vpop.f32.mrf.mxu0
      %v820 = vadd.f32 %v645, %v819
      %821 = vmatmul.bf16.gmra.mxu0 %v756
      %v822 = vpop.f32.mrf.mxu0
      %v823 = vadd.f32 %v645, %v822
      %v824 = vpop.f32.mrf.mxu0
      %v825 = vadd.f32 %v645, %v824
      %826 = vmatmul.bf16.gmra.mxu0 %v759
      %v827 = vpop.f32.mrf.mxu0
      %v828 = vadd.f32 %v645, %v827
      %v829 = vpop.f32.mrf.mxu0
      %v830 = vadd.f32 %v645, %v829
      %831 = vmatmul.bf16.gmra.mxu0 %v762
      %v832 = vpop.f32.mrf.mxu0
      %v833 = vadd.f32 %v645, %v832
      %v834 = vpop.f32.mrf.mxu0
      %v835 = vadd.f32 %v645, %v834
      %836 = vmatmul.bf16.gmra.mxu0 %v765
      %v837 = vpop.f32.mrf.mxu0
      %v838 = vadd.f32 %v645, %v837
      %v839 = vpop.f32.mrf.mxu0
      %v840 = vadd.f32 %v645, %v839
      %841 = vmatmul.bf16.gmra.mxu0 %v768
      %v842 = vpop.f32.mrf.mxu0
      %v843 = vadd.f32 %v645, %v842
      %v844 = vpop.f32.mrf.mxu0
      %v845 = vadd.f32 %v645, %v844
      %846 = vmatmul.bf16.gmra.mxu0 %v771
      %v847 = vpop.f32.mrf.mxu0
      %v848 = vadd.f32 %v645, %v847
      %v849 = vpop.f32.mrf.mxu0
      %v850 = vadd.f32 %v645, %v849
      %851 = vmatmul.bf16.gmra.mxu0 %v774
      %v852 = vpop.f32.mrf.mxu0
      %v853 = vadd.f32 %v645, %v852
      %v854 = vpop.f32.mrf.mxu0
      %v855 = vadd.f32 %v645, %v854
      %856 = vmatmul.bf16.gmra.mxu0 %v777
      %v857 = vpop.f32.mrf.mxu0
      %v858 = vadd.f32 %v645, %v857
      %v859 = vpop.f32.mrf.mxu0
      %v860 = vadd.f32 %v645, %v859
      %861 = vmatmul.bf16.gmra.mxu0 %v780
      %v862 = vpop.f32.mrf.mxu0
      %v863 = vadd.f32 %v645, %v862
      %v864 = vpop.f32.mrf.mxu0
      %v865 = vadd.f32 %v645, %v864
      %866 = vmatmul.bf16.gmra.mxu0 %v783
      %v867 = vpop.f32.mrf.mxu0
      %v868 = vadd.f32 %v645, %v867
      %v869 = vpop.f32.mrf.mxu0
      %v870 = vadd.f32 %v645, %v869
      %871 = vmatmul.bf16.gmra.mxu0 %v786
      %v872 = vpop.f32.mrf.mxu0
      %v873 = vadd.f32 %v645, %v872
      %v874 = vpop.f32.mrf.mxu0
      %v875 = vadd.f32 %v645, %v874
      %876 = vdwg.mxu0
      %v877 = vmax.f32 %v798, 0.0
      %v878 = vmax.f32 %v800, 0.0
      %v879 = vmax.f32 %v803, 0.0
      %v880 = vmax.f32 %v805, 0.0
      %v881 = vmax.f32 %v808, 0.0
      %v882 = vmax.f32 %v810, 0.0
      %v883 = vmax.f32 %v813, 0.0
      %v884 = vmax.f32 %v815, 0.0
      %v885 = vmax.f32 %v818, 0.0
      %v886 = vmax.f32 %v820, 0.0
      %v887 = vmax.f32 %v823, 0.0
      %v888 = vmax.f32 %v825, 0.0
      %v889 = vmax.f32 %v828, 0.0
      %v890 = vmax.f32 %v830, 0.0
      %v891 = vmax.f32 %v833, 0.0
      %v892 = vmax.f32 %v835, 0.0
      %v893 = vmax.f32 %v838, 0.0
      %v894 = vmax.f32 %v840, 0.0
      %v895 = vmax.f32 %v843, 0.0
      %v896 = vmax.f32 %v845, 0.0
      %v897 = vmax.f32 %v848, 0.0
      %v898 = vmax.f32 %v850, 0.0
      %v899 = vmax.f32 %v853, 0.0
      %v900 = vmax.f32 %v855, 0.0
      %v901 = vmax.f32 %v858, 0.0
      %v902 = vmax.f32 %v860, 0.0
      %v903 = vmax.f32 %v863, 0.0
      %v904 = vmax.f32 %v865, 0.0
      %v905 = vmax.f32 %v868, 0.0
      %v906 = vmax.f32 %v870, 0.0
      %v907 = vmax.f32 %v873, 0.0
      %v908 = vmax.f32 %v875, 0.0
      %v909 = vpack.c.bf16 %v878, %v877
      %v910 = vpack.c.bf16 %v880, %v879
      %v911 = vpack.c.bf16 %v882, %v881
      %v912 = vpack.c.bf16 %v884, %v883
      %v913 = vpack.c.bf16 %v886, %v885
      %v914 = vpack.c.bf16 %v888, %v887
      %v915 = vpack.c.bf16 %v890, %v889
      %v916 = vpack.c.bf16 %v892, %v891
      %v917 = vpack.c.bf16 %v894, %v893
      %v918 = vpack.c.bf16 %v896, %v895
      %v919 = vpack.c.bf16 %v898, %v897
      %v920 = vpack.c.bf16 %v900, %v899
      %v921 = vpack.c.bf16 %v902, %v901
      %v922 = vpack.c.bf16 %v904, %v903
      %v923 = vpack.c.bf16 %v906, %v905
      %v924 = vpack.c.bf16 %v908, %v907
      %v925 = vld [vmem:[%s4] sm:$0xf]
      %v926 = vld [vmem:[%s4 + $0x4] sm:$0xf]
      %v927 = vld [vmem:[%s4 + $0x8] sm:$0xf]
      %v928 = vld [vmem:[%s4 + $0xc] sm:$0xf]
      %v929 = vld [vmem:[%s4 + $0x10] sm:$0xf]
      %v930 = vld [vmem:[%s4 + $0x14] sm:$0xf]
      %v931 = vld [vmem:[%s4 + $0x18] sm:$0xf]
      %v932 = vld [vmem:[%s4 + $0x1c] sm:$0xf]
      %v933 = vld [vmem:[%s4 + $0x20] sm:$0xf]
      %v934 = vld [vmem:[%s4 + $0x24] sm:$0xf]
      %v935 = vld [vmem:[%s4 + $0x28] sm:$0xf]
      %v936 = vld [vmem:[%s4 + $0x2c] sm:$0xf]
      %v937 = vld [vmem:[%s4 + $0x30] sm:$0xf]
      %v938 = vld [vmem:[%s4 + $0x34] sm:$0xf]
      %v939 = vld [vmem:[%s4 + $0x38] sm:$0xf]
      %v940 = vld [vmem:[%s4 + $0x3c] sm:$0xf]
      %v941 = vld [vmem:[%s5] sm:$0x1]
      %v943 = vperm.slane %v941, 0
      %v961 = vunpack.c.l.b16 %v925
      %v962 = vunpack.c.l.b16 %v926
      %v963 = vunpack.c.l.b16 %v927
      %v964 = vunpack.c.l.b16 %v928
      %v965 = vunpack.c.l.b16 %v929
      %v966 = vunpack.c.l.b16 %v930
      %v967 = vunpack.c.l.b16 %v931
      %v968 = vunpack.c.l.b16 %v932
      %v969 = vunpack.c.l.b16 %v933
      %v970 = vunpack.c.l.b16 %v934
      %v971 = vunpack.c.l.b16 %v935
      %v972 = vunpack.c.l.b16 %v936
      %v973 = vunpack.c.l.b16 %v937
      %v974 = vunpack.c.l.b16 %v938
      %v975 = vunpack.c.l.b16 %v939
      %v976 = vunpack.c.l.b16 %v940
      %v977 = vpack.c.b16 %v962, %v961
      %v978 = vpack.c.b16 %v964, %v963
      %v979 = vpack.c.b16 %v966, %v965
      %v980 = vpack.c.b16 %v968, %v967
      %v981 = vpack.c.b16 %v970, %v969
      %v982 = vpack.c.b16 %v972, %v971
      %v983 = vpack.c.b16 %v974, %v973
      %v984 = vpack.c.b16 %v976, %v975
      %993 = vmatpush.bf16.msra.mxu0 %v984
      %994 = vmatpush.bf16.msra.mxu0 %v983
      %995 = vmatpush.bf16.msra.mxu0 %v982
      %996 = vmatpush.bf16.msra.mxu0 %v981
      %997 = vmatpush.bf16.msra.mxu0 %v980
      %998 = vmatpush.bf16.msra.mxu0 %v979
      %999 = vmatpush.bf16.msra.mxu0 %v978
      %1000 = vmatpush.bf16.msra.mxu0 %v977
      %1001 = vmatmul.bf16.gmra.mxu0 %v909
      %v1002 = vpop.f32.mrf.mxu0
      %v1003 = vadd.f32 %v943, %v1002
      %v1004 = vpop.f32.mrf.mxu0
      %v1005 = vadd.f32 %v943, %v1004
      %1006 = vmatmul.bf16.gmra.mxu0 %v910
      %v1007 = vpop.f32.mrf.mxu0
      %v1008 = vadd.f32 %v943, %v1007
      %v1009 = vpop.f32.mrf.mxu0
      %v1010 = vadd.f32 %v943, %v1009
      %1011 = vmatmul.bf16.gmra.mxu0 %v911
      %v1012 = vpop.f32.mrf.mxu0
      %v1013 = vadd.f32 %v943, %v1012
      %v1014 = vpop.f32.mrf.mxu0
      %v1015 = vadd.f32 %v943, %v1014
      %1016 = vmatmul.bf16.gmra.mxu0 %v912
      %v1017 = vpop.f32.mrf.mxu0
      %v1018 = vadd.f32 %v943, %v1017
      %v1019 = vpop.f32.mrf.mxu0
      %v1020 = vadd.f32 %v943, %v1019
      %1021 = vmatmul.bf16.gmra.mxu0 %v913
      %v1022 = vpop.f32.mrf.mxu0
      %v1023 = vadd.f32 %v943, %v1022
      %v1024 = vpop.f32.mrf.mxu0
      %v1025 = vadd.f32 %v943, %v1024
      %1026 = vmatmul.bf16.gmra.mxu0 %v914
      %v1027 = vpop.f32.mrf.mxu0
      %v1028 = vadd.f32 %v943, %v1027
      %v1029 = vpop.f32.mrf.mxu0
      %v1030 = vadd.f32 %v943, %v1029
      %1031 = vmatmul.bf16.gmra.mxu0 %v915
      %v1032 = vpop.f32.mrf.mxu0
      %v1033 = vadd.f32 %v943, %v1032
      %v1034 = vpop.f32.mrf.mxu0
      %v1035 = vadd.f32 %v943, %v1034
      %1036 = vmatmul.bf16.gmra.mxu0 %v916
      %v1037 = vpop.f32.mrf.mxu0
      %v1038 = vadd.f32 %v943, %v1037
      %v1039 = vpop.f32.mrf.mxu0
      %v1040 = vadd.f32 %v943, %v1039
      %1041 = vmatmul.bf16.gmra.mxu0 %v917
      %v1042 = vpop.f32.mrf.mxu0
      %v1043 = vadd.f32 %v943, %v1042
      %v1044 = vpop.f32.mrf.mxu0
      %v1045 = vadd.f32 %v943, %v1044
      %1046 = vmatmul.bf16.gmra.mxu0 %v918
      %v1047 = vpop.f32.mrf.mxu0
      %v1048 = vadd.f32 %v943, %v1047
      %v1049 = vpop.f32.mrf.mxu0
      %v1050 = vadd.f32 %v943, %v1049
      %1051 = vmatmul.bf16.gmra.mxu0 %v919
      %v1052 = vpop.f32.mrf.mxu0
      %v1053 = vadd.f32 %v943, %v1052
      %v1054 = vpop.f32.mrf.mxu0
      %v1055 = vadd.f32 %v943, %v1054
      %1056 = vmatmul.bf16.gmra.mxu0 %v920
      %v1057 = vpop.f32.mrf.mxu0
      %v1058 = vadd.f32 %v943, %v1057
      %v1059 = vpop.f32.mrf.mxu0
      %v1060 = vadd.f32 %v943, %v1059
      %1061 = vmatmul.bf16.gmra.mxu0 %v921
      %v1062 = vpop.f32.mrf.mxu0
      %v1063 = vadd.f32 %v943, %v1062
      %v1064 = vpop.f32.mrf.mxu0
      %v1065 = vadd.f32 %v943, %v1064
      %1066 = vmatmul.bf16.gmra.mxu0 %v922
      %v1067 = vpop.f32.mrf.mxu0
      %v1068 = vadd.f32 %v943, %v1067
      %v1069 = vpop.f32.mrf.mxu0
      %v1070 = vadd.f32 %v943, %v1069
      %1071 = vmatmul.bf16.gmra.mxu0 %v923
      %v1072 = vpop.f32.mrf.mxu0
      %v1073 = vadd.f32 %v943, %v1072
      %v1074 = vpop.f32.mrf.mxu0
      %v1075 = vadd.f32 %v943, %v1074
      %1076 = vmatmul.bf16.gmra.mxu0 %v924
      %v1077 = vpop.f32.mrf.mxu0
      %v1078 = vadd.f32 %v943, %v1077
      %v1079 = vpop.f32.mrf.mxu0
      %v1080 = vadd.f32 %v943, %v1079
      %1081 = vdwg.mxu0
      %v1082 = vmax.f32 %v1003, 0.0
      %v1083 = vmax.f32 %v1005, 0.0
      %v1084 = vmax.f32 %v1008, 0.0
      %v1085 = vmax.f32 %v1010, 0.0
      %v1086 = vmax.f32 %v1013, 0.0
      %v1087 = vmax.f32 %v1015, 0.0
      %v1088 = vmax.f32 %v1018, 0.0
      %v1089 = vmax.f32 %v1020, 0.0
      %v1090 = vmax.f32 %v1023, 0.0
      %v1091 = vmax.f32 %v1025, 0.0
      %v1092 = vmax.f32 %v1028, 0.0
      %v1093 = vmax.f32 %v1030, 0.0
      %v1094 = vmax.f32 %v1033, 0.0
      %v1095 = vmax.f32 %v1035, 0.0
      %v1096 = vmax.f32 %v1038, 0.0
      %v1097 = vmax.f32 %v1040, 0.0
      %v1098 = vmax.f32 %v1043, 0.0
      %v1099 = vmax.f32 %v1045, 0.0
      %v1100 = vmax.f32 %v1048, 0.0
      %v1101 = vmax.f32 %v1050, 0.0
      %v1102 = vmax.f32 %v1053, 0.0
      %v1103 = vmax.f32 %v1055, 0.0
      %v1104 = vmax.f32 %v1058, 0.0
      %v1105 = vmax.f32 %v1060, 0.0
      %v1106 = vmax.f32 %v1063, 0.0
      %v1107 = vmax.f32 %v1065, 0.0
      %v1108 = vmax.f32 %v1068, 0.0
      %v1109 = vmax.f32 %v1070, 0.0
      %v1110 = vmax.f32 %v1073, 0.0
      %v1111 = vmax.f32 %v1075, 0.0
      %v1112 = vmax.f32 %v1078, 0.0
      %v1113 = vmax.f32 %v1080, 0.0
      %v1114 = vpack.c.bf16 %v1083, %v1082
      %v1115 = vpack.c.bf16 %v1085, %v1084
      %v1116 = vpack.c.bf16 %v1087, %v1086
      %v1117 = vpack.c.bf16 %v1089, %v1088
      %v1118 = vpack.c.bf16 %v1091, %v1090
      %v1119 = vpack.c.bf16 %v1093, %v1092
      %v1120 = vpack.c.bf16 %v1095, %v1094
      %v1121 = vpack.c.bf16 %v1097, %v1096
      %v1122 = vpack.c.bf16 %v1099, %v1098
      %v1123 = vpack.c.bf16 %v1101, %v1100
      %v1124 = vpack.c.bf16 %v1103, %v1102
      %v1125 = vpack.c.bf16 %v1105, %v1104
      %v1126 = vpack.c.bf16 %v1107, %v1106
      %v1127 = vpack.c.bf16 %v1109, %v1108
      %v1128 = vpack.c.bf16 %v1111, %v1110
      %v1129 = vpack.c.bf16 %v1113, %v1112
      %v1130 = vld [vmem:[%s6] sm:$0xf]
      %v1131 = vld [vmem:[%s6 + $0x4] sm:$0xf]
      %v1132 = vld [vmem:[%s6 + $0x8] sm:$0xf]
      %v1133 = vld [vmem:[%s6 + $0xc] sm:$0xf]
      %v1134 = vld [vmem:[%s6 + $0x10] sm:$0xf]
      %v1135 = vld [vmem:[%s6 + $0x14] sm:$0xf]
      %v1136 = vld [vmem:[%s6 + $0x18] sm:$0xf]
      %v1137 = vld [vmem:[%s6 + $0x1c] sm:$0xf]
      %v1138 = vld [vmem:[%s6 + $0x20] sm:$0xf]
      %v1139 = vld [vmem:[%s6 + $0x24] sm:$0xf]
      %v1140 = vld [vmem:[%s6 + $0x28] sm:$0xf]
      %v1141 = vld [vmem:[%s6 + $0x2c] sm:$0xf]
      %v1142 = vld [vmem:[%s6 + $0x30] sm:$0xf]
      %v1143 = vld [vmem:[%s6 + $0x34] sm:$0xf]
      %v1144 = vld [vmem:[%s6 + $0x38] sm:$0xf]
      %v1145 = vld [vmem:[%s6 + $0x3c] sm:$0xf]
      %v1146 = vld [vmem:[%s7] sm:$0xf]
      %v1147 = vld [vmem:[%s7 + $0x4] sm:$0xf]
      %v1148 = vld [vmem:[%s7 + $0x8] sm:$0xf]
      %v1149 = vld [vmem:[%s7 + $0xc] sm:$0xf]
      %v1154 = vunpack.c.l.b16 %v1146
      %v1155 = vunpack.c.l.b16 %v1147
      %v1156 = vunpack.c.l.b16 %v1148
      %v1157 = vunpack.c.l.b16 %v1149
      %v1158 = vpack.c.b16 %v1155, %v1154
      %v1159 = vpack.c.b16 %v1157, %v1156
      %1162 = vmatpush.bf16.msra.mxu0 0
      %1163 = vmatpush.bf16.msra.mxu0 0
      %1164 = vmatpush.bf16.msra.mxu0 0
      %1165 = vmatpush.bf16.msra.mxu0 0
      %1166 = vmatpush.bf16.msra.mxu0 0
      %1167 = vmatpush.bf16.msra.mxu0 0
      %1168 = vmatpush.bf16.msra.mxu0 %v1159
      %1169 = vmatpush.bf16.msra.mxu0 %v1158
      %1170 = vmatmul.bf16.gmra.mxu0 %v741
      %v1171 = vpop.f32.mrf.mxu0
      %v1172 = vadd.f32 0.0, %v1171
      %v1173 = vpop.f32.mrf.mxu0
      %v1174 = vadd.f32 0.0, %v1173
      %1175 = vmatmul.bf16.gmra.mxu0 %v744
      %v1176 = vpop.f32.mrf.mxu0
      %v1177 = vadd.f32 0.0, %v1176
      %v1178 = vpop.f32.mrf.mxu0
      %v1179 = vadd.f32 0.0, %v1178
      %1180 = vmatmul.bf16.gmra.mxu0 %v747
      %v1181 = vpop.f32.mrf.mxu0
      %v1182 = vadd.f32 0.0, %v1181
      %v1183 = vpop.f32.mrf.mxu0
      %v1184 = vadd.f32 0.0, %v1183
      %1185 = vmatmul.bf16.gmra.mxu0 %v750
      %v1186 = vpop.f32.mrf.mxu0
      %v1187 = vadd.f32 0.0, %v1186
      %v1188 = vpop.f32.mrf.mxu0
      %v1189 = vadd.f32 0.0, %v1188
      %1190 = vmatmul.bf16.gmra.mxu0 %v753
      %v1191 = vpop.f32.mrf.mxu0
      %v1192 = vadd.f32 0.0, %v1191
      %v1193 = vpop.f32.mrf.mxu0
      %v1194 = vadd.f32 0.0, %v1193
      %1195 = vmatmul.bf16.gmra.mxu0 %v756
      %v1196 = vpop.f32.mrf.mxu0
      %v1197 = vadd.f32 0.0, %v1196
      %v1198 = vpop.f32.mrf.mxu0
      %v1199 = vadd.f32 0.0, %v1198
      %1200 = vmatmul.bf16.gmra.mxu0 %v759
      %v1201 = vpop.f32.mrf.mxu0
      %v1202 = vadd.f32 0.0, %v1201
      %v1203 = vpop.f32.mrf.mxu0
      %v1204 = vadd.f32 0.0, %v1203
      %1205 = vmatmul.bf16.gmra.mxu0 %v762
      %v1206 = vpop.f32.mrf.mxu0
      %v1207 = vadd.f32 0.0, %v1206
      %v1208 = vpop.f32.mrf.mxu0
      %v1209 = vadd.f32 0.0, %v1208
      %1210 = vmatmul.bf16.gmra.mxu0 %v765
      %v1211 = vpop.f32.mrf.mxu0
      %v1212 = vadd.f32 0.0, %v1211
      %v1213 = vpop.f32.mrf.mxu0
      %v1214 = vadd.f32 0.0, %v1213
      %1215 = vmatmul.bf16.gmra.mxu0 %v768
      %v1216 = vpop.f32.mrf.mxu0
      %v1217 = vadd.f32 0.0, %v1216
      %v1218 = vpop.f32.mrf.mxu0
      %v1219 = vadd.f32 0.0, %v1218
      %1220 = vmatmul.bf16.gmra.mxu0 %v771
      %v1221 = vpop.f32.mrf.mxu0
      %v1222 = vadd.f32 0.0, %v1221
      %v1223 = vpop.f32.mrf.mxu0
      %v1224 = vadd.f32 0.0, %v1223
      %1225 = vmatmul.bf16.gmra.mxu0 %v774
      %v1226 = vpop.f32.mrf.mxu0
      %v1227 = vadd.f32 0.0, %v1226
      %v1228 = vpop.f32.mrf.mxu0
      %v1229 = vadd.f32 0.0, %v1228
      %1230 = vmatmul.bf16.gmra.mxu0 %v777
      %v1231 = vpop.f32.mrf.mxu0
      %v1232 = vadd.f32 0.0, %v1231
      %v1233 = vpop.f32.mrf.mxu0
      %v1234 = vadd.f32 0.0, %v1233
      %1235 = vmatmul.bf16.gmra.mxu0 %v780
      %v1236 = vpop.f32.mrf.mxu0
      %v1237 = vadd.f32 0.0, %v1236
      %v1238 = vpop.f32.mrf.mxu0
      %v1239 = vadd.f32 0.0, %v1238
      %1240 = vmatmul.bf16.gmra.mxu0 %v783
      %v1241 = vpop.f32.mrf.mxu0
      %v1242 = vadd.f32 0.0, %v1241
      %v1243 = vpop.f32.mrf.mxu0
      %v1244 = vadd.f32 0.0, %v1243
      %1245 = vmatmul.bf16.gmra.mxu0 %v786
      %v1246 = vpop.f32.mrf.mxu0
      %v1247 = vadd.f32 0.0, %v1246
      %v1248 = vpop.f32.mrf.mxu0
      %v1249 = vadd.f32 0.0, %v1248
      %1250 = vdwg.mxu0
      %v1267 = vunpack.c.l.b16 %v1130
      %v1268 = vunpack.c.l.b16 %v1131
      %v1269 = vunpack.c.l.b16 %v1132
      %v1270 = vunpack.c.l.b16 %v1133
      %v1271 = vunpack.c.l.b16 %v1134
      %v1272 = vunpack.c.l.b16 %v1135
      %v1273 = vunpack.c.l.b16 %v1136
      %v1274 = vunpack.c.l.b16 %v1137
      %v1275 = vunpack.c.l.b16 %v1138
      %v1276 = vunpack.c.l.b16 %v1139
      %v1277 = vunpack.c.l.b16 %v1140
      %v1278 = vunpack.c.l.b16 %v1141
      %v1279 = vunpack.c.l.b16 %v1142
      %v1280 = vunpack.c.l.b16 %v1143
      %v1281 = vunpack.c.l.b16 %v1144
      %v1282 = vunpack.c.l.b16 %v1145
      %v1283 = vpack.c.b16 %v1268, %v1267
      %v1284 = vpack.c.b16 %v1270, %v1269
      %v1285 = vpack.c.b16 %v1272, %v1271
      %v1286 = vpack.c.b16 %v1274, %v1273
      %v1287 = vpack.c.b16 %v1276, %v1275
      %v1288 = vpack.c.b16 %v1278, %v1277
      %v1289 = vpack.c.b16 %v1280, %v1279
      %v1290 = vpack.c.b16 %v1282, %v1281
      %1299 = vmatpush.bf16.msra.mxu0 %v1290
      %1300 = vmatpush.bf16.msra.mxu0 %v1289
      %1301 = vmatpush.bf16.msra.mxu0 %v1288
      %1302 = vmatpush.bf16.msra.mxu0 %v1287
      %1303 = vmatpush.bf16.msra.mxu0 %v1286
      %1304 = vmatpush.bf16.msra.mxu0 %v1285
      %1305 = vmatpush.bf16.msra.mxu0 %v1284
      %1306 = vmatpush.bf16.msra.mxu0 %v1283
      %1307 = vmatmul.bf16.gmra.mxu0 %v1114
      %v1308 = vpop.f32.mrf.mxu0
      %v1309 = vadd.f32 %v1172, %v1308
      %v1310 = vpop.f32.mrf.mxu0
      %v1311 = vadd.f32 %v1174, %v1310
      %1312 = vmatmul.bf16.gmra.mxu0 %v1115
      %v1313 = vpop.f32.mrf.mxu0
      %v1314 = vadd.f32 %v1177, %v1313
      %v1315 = vpop.f32.mrf.mxu0
      %v1316 = vadd.f32 %v1179, %v1315
      %1317 = vmatmul.bf16.gmra.mxu0 %v1116
      %v1318 = vpop.f32.mrf.mxu0
      %v1319 = vadd.f32 %v1182, %v1318
      %v1320 = vpop.f32.mrf.mxu0
      %v1321 = vadd.f32 %v1184, %v1320
      %1322 = vmatmul.bf16.gmra.mxu0 %v1117
      %v1323 = vpop.f32.mrf.mxu0
      %v1324 = vadd.f32 %v1187, %v1323
      %v1325 = vpop.f32.mrf.mxu0
      %v1326 = vadd.f32 %v1189, %v1325
      %1327 = vmatmul.bf16.gmra.mxu0 %v1118
      %v1328 = vpop.f32.mrf.mxu0
      %v1329 = vadd.f32 %v1192, %v1328
      %v1330 = vpop.f32.mrf.mxu0
      %v1331 = vadd.f32 %v1194, %v1330
      %1332 = vmatmul.bf16.gmra.mxu0 %v1119
      %v1333 = vpop.f32.mrf.mxu0
      %v1334 = vadd.f32 %v1197, %v1333
      %v1335 = vpop.f32.mrf.mxu0
      %v1336 = vadd.f32 %v1199, %v1335
      %1337 = vmatmul.bf16.gmra.mxu0 %v1120
      %v1338 = vpop.f32.mrf.mxu0
      %v1339 = vadd.f32 %v1202, %v1338
      %v1340 = vpop.f32.mrf.mxu0
      %v1341 = vadd.f32 %v1204, %v1340
      %1342 = vmatmul.bf16.gmra.mxu0 %v1121
      %v1343 = vpop.f32.mrf.mxu0
      %v1344 = vadd.f32 %v1207, %v1343
      %v1345 = vpop.f32.mrf.mxu0
      %v1346 = vadd.f32 %v1209, %v1345
      %1347 = vmatmul.bf16.gmra.mxu0 %v1122
      %v1348 = vpop.f32.mrf.mxu0
      %v1349 = vadd.f32 %v1212, %v1348
      %v1350 = vpop.f32.mrf.mxu0
      %v1351 = vadd.f32 %v1214, %v1350
      %1352 = vmatmul.bf16.gmra.mxu0 %v1123
      %v1353 = vpop.f32.mrf.mxu0
      %v1354 = vadd.f32 %v1217, %v1353
      %v1355 = vpop.f32.mrf.mxu0
      %v1356 = vadd.f32 %v1219, %v1355
      %1357 = vmatmul.bf16.gmra.mxu0 %v1124
      %v1358 = vpop.f32.mrf.mxu0
      %v1359 = vadd.f32 %v1222, %v1358
      %v1360 = vpop.f32.mrf.mxu0
      %v1361 = vadd.f32 %v1224, %v1360
      %1362 = vmatmul.bf16.gmra.mxu0 %v1125
      %v1363 = vpop.f32.mrf.mxu0
      %v1364 = vadd.f32 %v1227, %v1363
      %v1365 = vpop.f32.mrf.mxu0
      %v1366 = vadd.f32 %v1229, %v1365
      %1367 = vmatmul.bf16.gmra.mxu0 %v1126
      %v1368 = vpop.f32.mrf.mxu0
      %v1369 = vadd.f32 %v1232, %v1368
      %v1370 = vpop.f32.mrf.mxu0
      %v1371 = vadd.f32 %v1234, %v1370
      %1372 = vmatmul.bf16.gmra.mxu0 %v1127
      %v1373 = vpop.f32.mrf.mxu0
      %v1374 = vadd.f32 %v1237, %v1373
      %v1375 = vpop.f32.mrf.mxu0
      %v1376 = vadd.f32 %v1239, %v1375
      %1377 = vmatmul.bf16.gmra.mxu0 %v1128
      %v1378 = vpop.f32.mrf.mxu0
      %v1379 = vadd.f32 %v1242, %v1378
      %v1380 = vpop.f32.mrf.mxu0
      %v1381 = vadd.f32 %v1244, %v1380
      %1382 = vmatmul.bf16.gmra.mxu0 %v1129
      %v1383 = vpop.f32.mrf.mxu0
      %v1384 = vadd.f32 %v1247, %v1383
      %v1385 = vpop.f32.mrf.mxu0
      %v1386 = vadd.f32 %v1249, %v1385
      %1387 = vdwg.mxu0
      %v1388 = vld [vmem:[%s8] sm:$0x1]
      %v1390 = vperm.slane %v1388, 0
      %v1392 = vadd.f32 %v1309, %v1390
      %v1393 = vadd.f32 %v1311, %v1390
      %v1394 = vadd.f32 %v1314, %v1390
      %v1395 = vadd.f32 %v1316, %v1390
      %v1396 = vadd.f32 %v1319, %v1390
      %v1397 = vadd.f32 %v1321, %v1390
      %v1398 = vadd.f32 %v1324, %v1390
      %v1399 = vadd.f32 %v1326, %v1390
      %v1400 = vadd.f32 %v1329, %v1390
      %v1401 = vadd.f32 %v1331, %v1390
      %v1402 = vadd.f32 %v1334, %v1390
      %v1403 = vadd.f32 %v1336, %v1390
      %v1404 = vadd.f32 %v1339, %v1390
      %v1405 = vadd.f32 %v1341, %v1390
      %v1406 = vadd.f32 %v1344, %v1390
      %v1407 = vadd.f32 %v1346, %v1390
      %v1408 = vadd.f32 %v1349, %v1390
      %v1409 = vadd.f32 %v1351, %v1390
      %v1410 = vadd.f32 %v1354, %v1390
      %v1411 = vadd.f32 %v1356, %v1390
      %v1412 = vadd.f32 %v1359, %v1390
      %v1413 = vadd.f32 %v1361, %v1390
      %v1414 = vadd.f32 %v1364, %v1390
      %v1415 = vadd.f32 %v1366, %v1390
      %v1416 = vadd.f32 %v1369, %v1390
      %v1417 = vadd.f32 %v1371, %v1390
      %v1418 = vadd.f32 %v1374, %v1390
      %v1419 = vadd.f32 %v1376, %v1390
      %v1420 = vadd.f32 %v1379, %v1390
      %v1421 = vadd.f32 %v1381, %v1390
      %v1422 = vadd.f32 %v1384, %v1390
      %v1423 = vadd.f32 %v1386, %v1390
      %v1424 = vmax.f32 %v1392, 0.0
      %v1425 = vmax.f32 %v1393, 0.0
      %v1426 = vmax.f32 %v1394, 0.0
      %v1427 = vmax.f32 %v1395, 0.0
      %v1428 = vmax.f32 %v1396, 0.0
      %v1429 = vmax.f32 %v1397, 0.0
      %v1430 = vmax.f32 %v1398, 0.0
      %v1431 = vmax.f32 %v1399, 0.0
      %v1432 = vmax.f32 %v1400, 0.0
      %v1433 = vmax.f32 %v1401, 0.0
      %v1434 = vmax.f32 %v1402, 0.0
      %v1435 = vmax.f32 %v1403, 0.0
      %v1436 = vmax.f32 %v1404, 0.0
      %v1437 = vmax.f32 %v1405, 0.0
      %v1438 = vmax.f32 %v1406, 0.0
      %v1439 = vmax.f32 %v1407, 0.0
      %v1440 = vmax.f32 %v1408, 0.0
      %v1441 = vmax.f32 %v1409, 0.0
      %v1442 = vmax.f32 %v1410, 0.0
      %v1443 = vmax.f32 %v1411, 0.0
      %v1444 = vmax.f32 %v1412, 0.0
      %v1445 = vmax.f32 %v1413, 0.0
      %v1446 = vmax.f32 %v1414, 0.0
      %v1447 = vmax.f32 %v1415, 0.0
      %v1448 = vmax.f32 %v1416, 0.0
      %v1449 = vmax.f32 %v1417, 0.0
      %v1450 = vmax.f32 %v1418, 0.0
      %v1451 = vmax.f32 %v1419, 0.0
      %v1452 = vmax.f32 %v1420, 0.0
      %v1453 = vmax.f32 %v1421, 0.0
      %v1454 = vmax.f32 %v1422, 0.0
      %v1455 = vmax.f32 %v1423, 0.0
      %v1456 = vld [vmem:[%s11] sm:$0x1]
      %v1458 = vperm.slane %v1456, 0
      %v1460 = vmul.f32 %v1424, %v1458
      %v1461 = vmul.f32 %v1425, %v1458
      %v1462 = vmul.f32 %v1426, %v1458
      %v1463 = vmul.f32 %v1427, %v1458
      %v1464 = vmul.f32 %v1428, %v1458
      %v1465 = vmul.f32 %v1429, %v1458
      %v1466 = vmul.f32 %v1430, %v1458
      %v1467 = vmul.f32 %v1431, %v1458
      %v1468 = vmul.f32 %v1432, %v1458
      %v1469 = vmul.f32 %v1433, %v1458
      %v1470 = vmul.f32 %v1434, %v1458
      %v1471 = vmul.f32 %v1435, %v1458
      %v1472 = vmul.f32 %v1436, %v1458
      %v1473 = vmul.f32 %v1437, %v1458
      %v1474 = vmul.f32 %v1438, %v1458
      %v1475 = vmul.f32 %v1439, %v1458
      %v1476 = vmul.f32 %v1440, %v1458
      %v1477 = vmul.f32 %v1441, %v1458
      %v1478 = vmul.f32 %v1442, %v1458
      %v1479 = vmul.f32 %v1443, %v1458
      %v1480 = vmul.f32 %v1444, %v1458
      %v1481 = vmul.f32 %v1445, %v1458
      %v1482 = vmul.f32 %v1446, %v1458
      %v1483 = vmul.f32 %v1447, %v1458
      %v1484 = vmul.f32 %v1448, %v1458
      %v1485 = vmul.f32 %v1449, %v1458
      %v1486 = vmul.f32 %v1450, %v1458
      %v1487 = vmul.f32 %v1451, %v1458
      %v1488 = vmul.f32 %v1452, %v1458
      %v1489 = vmul.f32 %v1453, %v1458
      %v1490 = vmul.f32 %v1454, %v1458
      %v1491 = vmul.f32 %v1455, %v1458
      %1492 = vadd.xlane.f32.xlu0 %v1460
      %v1493 = vpop.xlane.xlu0 %1492
      %1494 = vadd.xlane.f32.xlu0 %v1461
      %v1495 = vpop.xlane.xlu0 %1494
      %1496 = vadd.xlane.f32.xlu0 %v1462
      %v1497 = vpop.xlane.xlu0 %1496
      %1498 = vadd.xlane.f32.xlu0 %v1463
      %v1499 = vpop.xlane.xlu0 %1498
      %1500 = vadd.xlane.f32.xlu0 %v1464
      %v1501 = vpop.xlane.xlu0 %1500
      %1502 = vadd.xlane.f32.xlu0 %v1465
      %v1503 = vpop.xlane.xlu0 %1502
      %1504 = vadd.xlane.f32.xlu0 %v1466
      %v1505 = vpop.xlane.xlu0 %1504
      %1506 = vadd.xlane.f32.xlu0 %v1467
      %v1507 = vpop.xlane.xlu0 %1506
      %1508 = vadd.xlane.f32.xlu0 %v1468
      %v1509 = vpop.xlane.xlu0 %1508
      %1510 = vadd.xlane.f32.xlu0 %v1469
      %v1511 = vpop.xlane.xlu0 %1510
      %1512 = vadd.xlane.f32.xlu0 %v1470
      %v1513 = vpop.xlane.xlu0 %1512
      %1514 = vadd.xlane.f32.xlu0 %v1471
      %v1515 = vpop.xlane.xlu0 %1514
      %1516 = vadd.xlane.f32.xlu0 %v1472
      %v1517 = vpop.xlane.xlu0 %1516
      %1518 = vadd.xlane.f32.xlu0 %v1473
      %v1519 = vpop.xlane.xlu0 %1518
      %1520 = vadd.xlane.f32.xlu0 %v1474
      %v1521 = vpop.xlane.xlu0 %1520
      %1522 = vadd.xlane.f32.xlu0 %v1475
      %v1523 = vpop.xlane.xlu0 %1522
      %1524 = vadd.xlane.f32.xlu0 %v1476
      %v1525 = vpop.xlane.xlu0 %1524
      %1526 = vadd.xlane.f32.xlu0 %v1477
      %v1527 = vpop.xlane.xlu0 %1526
      %1528 = vadd.xlane.f32.xlu0 %v1478
      %v1529 = vpop.xlane.xlu0 %1528
      %1530 = vadd.xlane.f32.xlu0 %v1479
      %v1531 = vpop.xlane.xlu0 %1530
      %1532 = vadd.xlane.f32.xlu0 %v1480
      %v1533 = vpop.xlane.xlu0 %1532
      %1534 = vadd.xlane.f32.xlu0 %v1481
      %v1535 = vpop.xlane.xlu0 %1534
      %1536 = vadd.xlane.f32.xlu0 %v1482
      %v1537 = vpop.xlane.xlu0 %1536
      %1538 = vadd.xlane.f32.xlu0 %v1483
      %v1539 = vpop.xlane.xlu0 %1538
      %1540 = vadd.xlane.f32.xlu0 %v1484
      %v1541 = vpop.xlane.xlu0 %1540
      %1542 = vadd.xlane.f32.xlu0 %v1485
      %v1543 = vpop.xlane.xlu0 %1542
      %1544 = vadd.xlane.f32.xlu0 %v1486
      %v1545 = vpop.xlane.xlu0 %1544
      %1546 = vadd.xlane.f32.xlu0 %v1487
      %v1547 = vpop.xlane.xlu0 %1546
      %1548 = vadd.xlane.f32.xlu0 %v1488
      %v1549 = vpop.xlane.xlu0 %1548
      %1550 = vadd.xlane.f32.xlu0 %v1489
      %v1551 = vpop.xlane.xlu0 %1550
      %1552 = vadd.xlane.f32.xlu0 %v1490
      %v1553 = vpop.xlane.xlu0 %1552
      %1554 = vadd.xlane.f32.xlu0 %v1491
      %v1555 = vpop.xlane.xlu0 %1554
      %v1556 = vpack.c.bf16 %v1425, %v1424
      %v1557 = vpack.c.bf16 %v1427, %v1426
      %v1558 = vpack.c.bf16 %v1429, %v1428
      %v1559 = vpack.c.bf16 %v1431, %v1430
      %v1560 = vpack.c.bf16 %v1433, %v1432
      %v1561 = vpack.c.bf16 %v1435, %v1434
      %v1562 = vpack.c.bf16 %v1437, %v1436
      %v1563 = vpack.c.bf16 %v1439, %v1438
      %v1564 = vpack.c.bf16 %v1441, %v1440
      %v1565 = vpack.c.bf16 %v1443, %v1442
      %v1566 = vpack.c.bf16 %v1445, %v1444
      %v1567 = vpack.c.bf16 %v1447, %v1446
      %v1568 = vpack.c.bf16 %v1449, %v1448
      %v1569 = vpack.c.bf16 %v1451, %v1450
      %v1570 = vpack.c.bf16 %v1453, %v1452
      %v1571 = vpack.c.bf16 %v1455, %v1454
      %v1572 = vld [vmem:[%s9] sm:$0xf]
      %v1573 = vld [vmem:[%s9 + $0x4] sm:$0xf]
      %v1574 = vld [vmem:[%s9 + $0x8] sm:$0xf]
      %v1575 = vld [vmem:[%s9 + $0xc] sm:$0xf]
      %v1576 = vld [vmem:[%s9 + $0x10] sm:$0xf]
      %v1577 = vld [vmem:[%s9 + $0x14] sm:$0xf]
      %v1578 = vld [vmem:[%s9 + $0x18] sm:$0xf]
      %v1579 = vld [vmem:[%s9 + $0x1c] sm:$0xf]
      %v1580 = vld [vmem:[%s9 + $0x20] sm:$0xf]
      %v1581 = vld [vmem:[%s9 + $0x24] sm:$0xf]
      %v1582 = vld [vmem:[%s9 + $0x28] sm:$0xf]
      %v1583 = vld [vmem:[%s9 + $0x2c] sm:$0xf]
      %v1584 = vld [vmem:[%s9 + $0x30] sm:$0xf]
      %v1585 = vld [vmem:[%s9 + $0x34] sm:$0xf]
      %v1586 = vld [vmem:[%s9 + $0x38] sm:$0xf]
      %v1587 = vld [vmem:[%s9 + $0x3c] sm:$0xf]
      %v1588 = vld [vmem:[%s10] sm:$0x1]
      %v1590 = vperm.slane %v1588, 0
      %v1608 = vunpack.c.l.b16 %v1572
      %v1609 = vunpack.c.l.b16 %v1573
      %v1610 = vunpack.c.l.b16 %v1574
      %v1611 = vunpack.c.l.b16 %v1575
      %v1612 = vunpack.c.l.b16 %v1576
      %v1613 = vunpack.c.l.b16 %v1577
      %v1614 = vunpack.c.l.b16 %v1578
      %v1615 = vunpack.c.l.b16 %v1579
      %v1616 = vunpack.c.l.b16 %v1580
      %v1617 = vunpack.c.l.b16 %v1581
      %v1618 = vunpack.c.l.b16 %v1582
      %v1619 = vunpack.c.l.b16 %v1583
      %v1620 = vunpack.c.l.b16 %v1584
      %v1621 = vunpack.c.l.b16 %v1585
      %v1622 = vunpack.c.l.b16 %v1586
      %v1623 = vunpack.c.l.b16 %v1587
      %v1624 = vpack.c.b16 %v1609, %v1608
      %v1625 = vpack.c.b16 %v1611, %v1610
      %v1626 = vpack.c.b16 %v1613, %v1612
      %v1627 = vpack.c.b16 %v1615, %v1614
      %v1628 = vpack.c.b16 %v1617, %v1616
      %v1629 = vpack.c.b16 %v1619, %v1618
      %v1630 = vpack.c.b16 %v1621, %v1620
      %v1631 = vpack.c.b16 %v1623, %v1622
      %1640 = vmatpush.bf16.msra.mxu0 %v1631
      %1641 = vmatpush.bf16.msra.mxu0 %v1630
      %1642 = vmatpush.bf16.msra.mxu0 %v1629
      %1643 = vmatpush.bf16.msra.mxu0 %v1628
      %1644 = vmatpush.bf16.msra.mxu0 %v1627
      %1645 = vmatpush.bf16.msra.mxu0 %v1626
      %1646 = vmatpush.bf16.msra.mxu0 %v1625
      %1647 = vmatpush.bf16.msra.mxu0 %v1624
      %1648 = vmatmul.bf16.gmra.mxu0 %v1556
      %v1649 = vpop.f32.mrf.mxu0
      %v1650 = vadd.f32 %v1590, %v1649
      %v1651 = vpop.f32.mrf.mxu0
      %v1652 = vadd.f32 %v1590, %v1651
      %1653 = vmatmul.bf16.gmra.mxu0 %v1557
      %v1654 = vpop.f32.mrf.mxu0
      %v1655 = vadd.f32 %v1590, %v1654
      %v1656 = vpop.f32.mrf.mxu0
      %v1657 = vadd.f32 %v1590, %v1656
      %1658 = vmatmul.bf16.gmra.mxu0 %v1558
      %v1659 = vpop.f32.mrf.mxu0
      %v1660 = vadd.f32 %v1590, %v1659
      %v1661 = vpop.f32.mrf.mxu0
      %v1662 = vadd.f32 %v1590, %v1661
      %1663 = vmatmul.bf16.gmra.mxu0 %v1559
      %v1664 = vpop.f32.mrf.mxu0
      %v1665 = vadd.f32 %v1590, %v1664
      %v1666 = vpop.f32.mrf.mxu0
      %v1667 = vadd.f32 %v1590, %v1666
      %1668 = vmatmul.bf16.gmra.mxu0 %v1560
      %v1669 = vpop.f32.mrf.mxu0
      %v1670 = vadd.f32 %v1590, %v1669
      %v1671 = vpop.f32.mrf.mxu0
      %v1672 = vadd.f32 %v1590, %v1671
      %1673 = vmatmul.bf16.gmra.mxu0 %v1561
      %v1674 = vpop.f32.mrf.mxu0
      %v1675 = vadd.f32 %v1590, %v1674
      %v1676 = vpop.f32.mrf.mxu0
      %v1677 = vadd.f32 %v1590, %v1676
      %1678 = vmatmul.bf16.gmra.mxu0 %v1562
      %v1679 = vpop.f32.mrf.mxu0
      %v1680 = vadd.f32 %v1590, %v1679
      %v1681 = vpop.f32.mrf.mxu0
      %v1682 = vadd.f32 %v1590, %v1681
      %1683 = vmatmul.bf16.gmra.mxu0 %v1563
      %v1684 = vpop.f32.mrf.mxu0
      %v1685 = vadd.f32 %v1590, %v1684
      %v1686 = vpop.f32.mrf.mxu0
      %v1687 = vadd.f32 %v1590, %v1686
      %1688 = vmatmul.bf16.gmra.mxu0 %v1564
      %v1689 = vpop.f32.mrf.mxu0
      %v1690 = vadd.f32 %v1590, %v1689
      %v1691 = vpop.f32.mrf.mxu0
      %v1692 = vadd.f32 %v1590, %v1691
      %1693 = vmatmul.bf16.gmra.mxu0 %v1565
      %v1694 = vpop.f32.mrf.mxu0
      %v1695 = vadd.f32 %v1590, %v1694
      %v1696 = vpop.f32.mrf.mxu0
      %v1697 = vadd.f32 %v1590, %v1696
      %1698 = vmatmul.bf16.gmra.mxu0 %v1566
      %v1699 = vpop.f32.mrf.mxu0
      %v1700 = vadd.f32 %v1590, %v1699
      %v1701 = vpop.f32.mrf.mxu0
      %v1702 = vadd.f32 %v1590, %v1701
      %1703 = vmatmul.bf16.gmra.mxu0 %v1567
      %v1704 = vpop.f32.mrf.mxu0
      %v1705 = vadd.f32 %v1590, %v1704
      %v1706 = vpop.f32.mrf.mxu0
      %v1707 = vadd.f32 %v1590, %v1706
      %1708 = vmatmul.bf16.gmra.mxu0 %v1568
      %v1709 = vpop.f32.mrf.mxu0
      %v1710 = vadd.f32 %v1590, %v1709
      %v1711 = vpop.f32.mrf.mxu0
      %v1712 = vadd.f32 %v1590, %v1711
      %1713 = vmatmul.bf16.gmra.mxu0 %v1569
      %v1714 = vpop.f32.mrf.mxu0
      %v1715 = vadd.f32 %v1590, %v1714
      %v1716 = vpop.f32.mrf.mxu0
      %v1717 = vadd.f32 %v1590, %v1716
      %1718 = vmatmul.bf16.gmra.mxu0 %v1570
      %v1719 = vpop.f32.mrf.mxu0
      %v1720 = vadd.f32 %v1590, %v1719
      %v1721 = vpop.f32.mrf.mxu0
      %v1722 = vadd.f32 %v1590, %v1721
      %1723 = vmatmul.bf16.gmra.mxu0 %v1571
      %v1724 = vpop.f32.mrf.mxu0
      %v1725 = vadd.f32 %v1590, %v1724
      %v1726 = vpop.f32.mrf.mxu0
      %v1727 = vadd.f32 %v1590, %v1726
      %1728 = vdwg.mxu0
      %v1729 = vmax.f32 %v1650, 0.0
      %v1730 = vmax.f32 %v1652, 0.0
      %v1731 = vmax.f32 %v1655, 0.0
      %v1732 = vmax.f32 %v1657, 0.0
      %v1733 = vmax.f32 %v1660, 0.0
      %v1734 = vmax.f32 %v1662, 0.0
      %v1735 = vmax.f32 %v1665, 0.0
      %v1736 = vmax.f32 %v1667, 0.0
      %v1737 = vmax.f32 %v1670, 0.0
      %v1738 = vmax.f32 %v1672, 0.0
      %v1739 = vmax.f32 %v1675, 0.0
      %v1740 = vmax.f32 %v1677, 0.0
      %v1741 = vmax.f32 %v1680, 0.0
      %v1742 = vmax.f32 %v1682, 0.0
      %v1743 = vmax.f32 %v1685, 0.0
      %v1744 = vmax.f32 %v1687, 0.0
      %v1745 = vmax.f32 %v1690, 0.0
      %v1746 = vmax.f32 %v1692, 0.0
      %v1747 = vmax.f32 %v1695, 0.0
      %v1748 = vmax.f32 %v1697, 0.0
      %v1749 = vmax.f32 %v1700, 0.0
      %v1750 = vmax.f32 %v1702, 0.0
      %v1751 = vmax.f32 %v1705, 0.0
      %v1752 = vmax.f32 %v1707, 0.0
      %v1753 = vmax.f32 %v1710, 0.0
      %v1754 = vmax.f32 %v1712, 0.0
      %v1755 = vmax.f32 %v1715, 0.0
      %v1756 = vmax.f32 %v1717, 0.0
      %v1757 = vmax.f32 %v1720, 0.0
      %v1758 = vmax.f32 %v1722, 0.0
      %v1759 = vmax.f32 %v1725, 0.0
      %v1760 = vmax.f32 %v1727, 0.0
      %v1761 = vpack.c.bf16 %v1730, %v1729
      %v1762 = vpack.c.bf16 %v1732, %v1731
      %v1763 = vpack.c.bf16 %v1734, %v1733
      %v1764 = vpack.c.bf16 %v1736, %v1735
      %v1765 = vpack.c.bf16 %v1738, %v1737
      %v1766 = vpack.c.bf16 %v1740, %v1739
      %v1767 = vpack.c.bf16 %v1742, %v1741
      %v1768 = vpack.c.bf16 %v1744, %v1743
      %v1769 = vpack.c.bf16 %v1746, %v1745
      %v1770 = vpack.c.bf16 %v1748, %v1747
      %v1771 = vpack.c.bf16 %v1750, %v1749
      %v1772 = vpack.c.bf16 %v1752, %v1751
      %v1773 = vpack.c.bf16 %v1754, %v1753
      %v1774 = vpack.c.bf16 %v1756, %v1755
      %v1775 = vpack.c.bf16 %v1758, %v1757
      %v1776 = vpack.c.bf16 %v1760, %v1759
      %v1777 = vld [vmem:[%s12] sm:$0xf]
      %v1778 = vld [vmem:[%s12 + $0x4] sm:$0xf]
      %v1779 = vld [vmem:[%s12 + $0x8] sm:$0xf]
      %v1780 = vld [vmem:[%s12 + $0xc] sm:$0xf]
      %v1781 = vld [vmem:[%s12 + $0x10] sm:$0xf]
      %v1782 = vld [vmem:[%s12 + $0x14] sm:$0xf]
      %v1783 = vld [vmem:[%s12 + $0x18] sm:$0xf]
      %v1784 = vld [vmem:[%s12 + $0x1c] sm:$0xf]
      %v1785 = vld [vmem:[%s12 + $0x20] sm:$0xf]
      %v1786 = vld [vmem:[%s12 + $0x24] sm:$0xf]
      %v1787 = vld [vmem:[%s12 + $0x28] sm:$0xf]
      %v1788 = vld [vmem:[%s12 + $0x2c] sm:$0xf]
      %v1789 = vld [vmem:[%s12 + $0x30] sm:$0xf]
      %v1790 = vld [vmem:[%s12 + $0x34] sm:$0xf]
      %v1791 = vld [vmem:[%s12 + $0x38] sm:$0xf]
      %v1792 = vld [vmem:[%s12 + $0x3c] sm:$0xf]
      %v1793 = vld [vmem:[%s13] sm:$0xf]
      %v1794 = vld [vmem:[%s13 + $0x4] sm:$0xf]
      %v1795 = vld [vmem:[%s13 + $0x8] sm:$0xf]
      %v1796 = vld [vmem:[%s13 + $0xc] sm:$0xf]
      %v1829 = vunpack.c.l.b16 %v607
      %v1830 = vunpack.c.l.b16 %v608
      %v1831 = vunpack.c.l.b16 %v609
      %v1832 = vunpack.c.l.b16 %v610
      %v1833 = vunpack.c.l.b16 %v611
      %v1834 = vunpack.c.l.b16 %v612
      %v1835 = vunpack.c.l.b16 %v613
      %v1836 = vunpack.c.l.b16 %v614
      %v1837 = vunpack.c.l.b16 %v615
      %v1838 = vunpack.c.l.b16 %v616
      %v1839 = vunpack.c.l.b16 %v617
      %v1840 = vunpack.c.l.b16 %v618
      %v1841 = vunpack.c.l.b16 %v619
      %v1842 = vunpack.c.l.b16 %v620
      %v1843 = vunpack.c.l.b16 %v621
      %v1844 = vunpack.c.l.b16 %v622
      %v1845 = vunpack.c.l.b16 %v623
      %v1846 = vunpack.c.l.b16 %v624
      %v1847 = vunpack.c.l.b16 %v625
      %v1848 = vunpack.c.l.b16 %v626
      %v1849 = vunpack.c.l.b16 %v627
      %v1850 = vunpack.c.l.b16 %v628
      %v1851 = vunpack.c.l.b16 %v629
      %v1852 = vunpack.c.l.b16 %v630
      %v1853 = vunpack.c.l.b16 %v631
      %v1854 = vunpack.c.l.b16 %v632
      %v1855 = vunpack.c.l.b16 %v633
      %v1856 = vunpack.c.l.b16 %v634
      %v1857 = vunpack.c.l.b16 %v635
      %v1858 = vunpack.c.l.b16 %v636
      %v1859 = vunpack.c.l.b16 %v637
      %v1860 = vunpack.c.l.b16 %v638
      %v1861 = vpack.c.b16 %v1830, %v1829
      %v1862 = vpack.c.b16 %v1832, %v1831
      %v1863 = vpack.c.b16 %v1834, %v1833
      %v1864 = vpack.c.b16 %v1836, %v1835
      %v1865 = vpack.c.b16 %v1838, %v1837
      %v1866 = vpack.c.b16 %v1840, %v1839
      %v1867 = vpack.c.b16 %v1842, %v1841
      %v1868 = vpack.c.b16 %v1844, %v1843
      %v1869 = vpack.c.b16 %v1846, %v1845
      %v1870 = vpack.c.b16 %v1848, %v1847
      %v1871 = vpack.c.b16 %v1850, %v1849
      %v1872 = vpack.c.b16 %v1852, %v1851
      %v1873 = vpack.c.b16 %v1854, %v1853
      %v1874 = vpack.c.b16 %v1856, %v1855
      %v1875 = vpack.c.b16 %v1858, %v1857
      %v1876 = vpack.c.b16 %v1860, %v1859
      %v1881 = vunpack.c.l.b16 %v1793
      %v1882 = vunpack.c.l.b16 %v1794
      %v1883 = vunpack.c.l.b16 %v1795
      %v1884 = vunpack.c.l.b16 %v1796
      %v1885 = vpack.c.b16 %v1882, %v1881
      %v1886 = vpack.c.b16 %v1884, %v1883
      %v1890 = vsel %vm739, %v1861, 0
      %v1893 = vsel %vm739, %v1862, 0
      %v1896 = vsel %vm739, %v1863, 0
      %v1899 = vsel %vm739, %v1864, 0
      %v1902 = vsel %vm739, %v1865, 0
      %v1905 = vsel %vm739, %v1866, 0
      %v1908 = vsel %vm739, %v1867, 0
      %v1911 = vsel %vm739, %v1868, 0
      %v1914 = vsel %vm739, %v1869, 0
      %v1917 = vsel %vm739, %v1870, 0
      %v1920 = vsel %vm739, %v1871, 0
      %v1923 = vsel %vm739, %v1872, 0
      %v1926 = vsel %vm739, %v1873, 0
      %v1929 = vsel %vm739, %v1874, 0
      %v1932 = vsel %vm739, %v1875, 0
      %v1935 = vsel %vm739, %v1876, 0
      %1937 = vmatpush.bf16.msra.mxu0 0
      %1938 = vmatpush.bf16.msra.mxu0 0
      %1939 = vmatpush.bf16.msra.mxu0 0
      %1940 = vmatpush.bf16.msra.mxu0 0
      %1941 = vmatpush.bf16.msra.mxu0 0
      %1942 = vmatpush.bf16.msra.mxu0 0
      %1943 = vmatpush.bf16.msra.mxu0 %v1886
      %1944 = vmatpush.bf16.msra.mxu0 %v1885
      %1945 = vmatmul.bf16.gmra.mxu0 %v1890
      %v1946 = vpop.f32.mrf.mxu0
      %v1947 = vadd.f32 0.0, %v1946
      %v1948 = vpop.f32.mrf.mxu0
      %v1949 = vadd.f32 0.0, %v1948
      %1950 = vmatmul.bf16.gmra.mxu0 %v1893
      %v1951 = vpop.f32.mrf.mxu0
      %v1952 = vadd.f32 0.0, %v1951
      %v1953 = vpop.f32.mrf.mxu0
      %v1954 = vadd.f32 0.0, %v1953
      %1955 = vmatmul.bf16.gmra.mxu0 %v1896
      %v1956 = vpop.f32.mrf.mxu0
      %v1957 = vadd.f32 0.0, %v1956
      %v1958 = vpop.f32.mrf.mxu0
      %v1959 = vadd.f32 0.0, %v1958
      %1960 = vmatmul.bf16.gmra.mxu0 %v1899
      %v1961 = vpop.f32.mrf.mxu0
      %v1962 = vadd.f32 0.0, %v1961
      %v1963 = vpop.f32.mrf.mxu0
      %v1964 = vadd.f32 0.0, %v1963
      %1965 = vmatmul.bf16.gmra.mxu0 %v1902
      %v1966 = vpop.f32.mrf.mxu0
      %v1967 = vadd.f32 0.0, %v1966
      %v1968 = vpop.f32.mrf.mxu0
      %v1969 = vadd.f32 0.0, %v1968
      %1970 = vmatmul.bf16.gmra.mxu0 %v1905
      %v1971 = vpop.f32.mrf.mxu0
      %v1972 = vadd.f32 0.0, %v1971
      %v1973 = vpop.f32.mrf.mxu0
      %v1974 = vadd.f32 0.0, %v1973
      %1975 = vmatmul.bf16.gmra.mxu0 %v1908
      %v1976 = vpop.f32.mrf.mxu0
      %v1977 = vadd.f32 0.0, %v1976
      %v1978 = vpop.f32.mrf.mxu0
      %v1979 = vadd.f32 0.0, %v1978
      %1980 = vmatmul.bf16.gmra.mxu0 %v1911
      %v1981 = vpop.f32.mrf.mxu0
      %v1982 = vadd.f32 0.0, %v1981
      %v1983 = vpop.f32.mrf.mxu0
      %v1984 = vadd.f32 0.0, %v1983
      %1985 = vmatmul.bf16.gmra.mxu0 %v1914
      %v1986 = vpop.f32.mrf.mxu0
      %v1987 = vadd.f32 0.0, %v1986
      %v1988 = vpop.f32.mrf.mxu0
      %v1989 = vadd.f32 0.0, %v1988
      %1990 = vmatmul.bf16.gmra.mxu0 %v1917
      %v1991 = vpop.f32.mrf.mxu0
      %v1992 = vadd.f32 0.0, %v1991
      %v1993 = vpop.f32.mrf.mxu0
      %v1994 = vadd.f32 0.0, %v1993
      %1995 = vmatmul.bf16.gmra.mxu0 %v1920
      %v1996 = vpop.f32.mrf.mxu0
      %v1997 = vadd.f32 0.0, %v1996
      %v1998 = vpop.f32.mrf.mxu0
      %v1999 = vadd.f32 0.0, %v1998
      %2000 = vmatmul.bf16.gmra.mxu0 %v1923
      %v2001 = vpop.f32.mrf.mxu0
      %v2002 = vadd.f32 0.0, %v2001
      %v2003 = vpop.f32.mrf.mxu0
      %v2004 = vadd.f32 0.0, %v2003
      %2005 = vmatmul.bf16.gmra.mxu0 %v1926
      %v2006 = vpop.f32.mrf.mxu0
      %v2007 = vadd.f32 0.0, %v2006
      %v2008 = vpop.f32.mrf.mxu0
      %v2009 = vadd.f32 0.0, %v2008
      %2010 = vmatmul.bf16.gmra.mxu0 %v1929
      %v2011 = vpop.f32.mrf.mxu0
      %v2012 = vadd.f32 0.0, %v2011
      %v2013 = vpop.f32.mrf.mxu0
      %v2014 = vadd.f32 0.0, %v2013
      %2015 = vmatmul.bf16.gmra.mxu0 %v1932
      %v2016 = vpop.f32.mrf.mxu0
      %v2017 = vadd.f32 0.0, %v2016
      %v2018 = vpop.f32.mrf.mxu0
      %v2019 = vadd.f32 0.0, %v2018
      %2020 = vmatmul.bf16.gmra.mxu0 %v1935
      %v2021 = vpop.f32.mrf.mxu0
      %v2022 = vadd.f32 0.0, %v2021
      %v2023 = vpop.f32.mrf.mxu0
      %v2024 = vadd.f32 0.0, %v2023
      %2025 = vdwg.mxu0
      %v2042 = vunpack.c.l.b16 %v1777
      %v2043 = vunpack.c.l.b16 %v1778
      %v2044 = vunpack.c.l.b16 %v1779
      %v2045 = vunpack.c.l.b16 %v1780
      %v2046 = vunpack.c.l.b16 %v1781
      %v2047 = vunpack.c.l.b16 %v1782
      %v2048 = vunpack.c.l.b16 %v1783
      %v2049 = vunpack.c.l.b16 %v1784
      %v2050 = vunpack.c.l.b16 %v1785
      %v2051 = vunpack.c.l.b16 %v1786
      %v2052 = vunpack.c.l.b16 %v1787
      %v2053 = vunpack.c.l.b16 %v1788
      %v2054 = vunpack.c.l.b16 %v1789
      %v2055 = vunpack.c.l.b16 %v1790
      %v2056 = vunpack.c.l.b16 %v1791
      %v2057 = vunpack.c.l.b16 %v1792
      %v2058 = vpack.c.b16 %v2043, %v2042
      %v2059 = vpack.c.b16 %v2045, %v2044
      %v2060 = vpack.c.b16 %v2047, %v2046
      %v2061 = vpack.c.b16 %v2049, %v2048
      %v2062 = vpack.c.b16 %v2051, %v2050
      %v2063 = vpack.c.b16 %v2053, %v2052
      %v2064 = vpack.c.b16 %v2055, %v2054
      %v2065 = vpack.c.b16 %v2057, %v2056
      %2074 = vmatpush.bf16.msra.mxu0 %v2065
      %2075 = vmatpush.bf16.msra.mxu0 %v2064
      %2076 = vmatpush.bf16.msra.mxu0 %v2063
      %2077 = vmatpush.bf16.msra.mxu0 %v2062
      %2078 = vmatpush.bf16.msra.mxu0 %v2061
      %2079 = vmatpush.bf16.msra.mxu0 %v2060
      %2080 = vmatpush.bf16.msra.mxu0 %v2059
      %2081 = vmatpush.bf16.msra.mxu0 %v2058
      %2082 = vmatmul.bf16.gmra.mxu0 %v1761
      %v2083 = vpop.f32.mrf.mxu0
      %v2084 = vadd.f32 %v1947, %v2083
      %v2085 = vpop.f32.mrf.mxu0
      %v2086 = vadd.f32 %v1949, %v2085
      %2087 = vmatmul.bf16.gmra.mxu0 %v1762
      %v2088 = vpop.f32.mrf.mxu0
      %v2089 = vadd.f32 %v1952, %v2088
      %v2090 = vpop.f32.mrf.mxu0
      %v2091 = vadd.f32 %v1954, %v2090
      %2092 = vmatmul.bf16.gmra.mxu0 %v1763
      %v2093 = vpop.f32.mrf.mxu0
      %v2094 = vadd.f32 %v1957, %v2093
      %v2095 = vpop.f32.mrf.mxu0
      %v2096 = vadd.f32 %v1959, %v2095
      %2097 = vmatmul.bf16.gmra.mxu0 %v1764
      %v2098 = vpop.f32.mrf.mxu0
      %v2099 = vadd.f32 %v1962, %v2098
      %v2100 = vpop.f32.mrf.mxu0
      %v2101 = vadd.f32 %v1964, %v2100
      %2102 = vmatmul.bf16.gmra.mxu0 %v1765
      %v2103 = vpop.f32.mrf.mxu0
      %v2104 = vadd.f32 %v1967, %v2103
      %v2105 = vpop.f32.mrf.mxu0
      %v2106 = vadd.f32 %v1969, %v2105
      %2107 = vmatmul.bf16.gmra.mxu0 %v1766
      %v2108 = vpop.f32.mrf.mxu0
      %v2109 = vadd.f32 %v1972, %v2108
      %v2110 = vpop.f32.mrf.mxu0
      %v2111 = vadd.f32 %v1974, %v2110
      %2112 = vmatmul.bf16.gmra.mxu0 %v1767
      %v2113 = vpop.f32.mrf.mxu0
      %v2114 = vadd.f32 %v1977, %v2113
      %v2115 = vpop.f32.mrf.mxu0
      %v2116 = vadd.f32 %v1979, %v2115
      %2117 = vmatmul.bf16.gmra.mxu0 %v1768
      %v2118 = vpop.f32.mrf.mxu0
      %v2119 = vadd.f32 %v1982, %v2118
      %v2120 = vpop.f32.mrf.mxu0
      %v2121 = vadd.f32 %v1984, %v2120
      %2122 = vmatmul.bf16.gmra.mxu0 %v1769
      %v2123 = vpop.f32.mrf.mxu0
      %v2124 = vadd.f32 %v1987, %v2123
      %v2125 = vpop.f32.mrf.mxu0
      %v2126 = vadd.f32 %v1989, %v2125
      %2127 = vmatmul.bf16.gmra.mxu0 %v1770
      %v2128 = vpop.f32.mrf.mxu0
      %v2129 = vadd.f32 %v1992, %v2128
      %v2130 = vpop.f32.mrf.mxu0
      %v2131 = vadd.f32 %v1994, %v2130
      %2132 = vmatmul.bf16.gmra.mxu0 %v1771
      %v2133 = vpop.f32.mrf.mxu0
      %v2134 = vadd.f32 %v1997, %v2133
      %v2135 = vpop.f32.mrf.mxu0
      %v2136 = vadd.f32 %v1999, %v2135
      %2137 = vmatmul.bf16.gmra.mxu0 %v1772
      %v2138 = vpop.f32.mrf.mxu0
      %v2139 = vadd.f32 %v2002, %v2138
      %v2140 = vpop.f32.mrf.mxu0
      %v2141 = vadd.f32 %v2004, %v2140
      %2142 = vmatmul.bf16.gmra.mxu0 %v1773
      %v2143 = vpop.f32.mrf.mxu0
      %v2144 = vadd.f32 %v2007, %v2143
      %v2145 = vpop.f32.mrf.mxu0
      %v2146 = vadd.f32 %v2009, %v2145
      %2147 = vmatmul.bf16.gmra.mxu0 %v1774
      %v2148 = vpop.f32.mrf.mxu0
      %v2149 = vadd.f32 %v2012, %v2148
      %v2150 = vpop.f32.mrf.mxu0
      %v2151 = vadd.f32 %v2014, %v2150
      %2152 = vmatmul.bf16.gmra.mxu0 %v1775
      %v2153 = vpop.f32.mrf.mxu0
      %v2154 = vadd.f32 %v2017, %v2153
      %v2155 = vpop.f32.mrf.mxu0
      %v2156 = vadd.f32 %v2019, %v2155
      %2157 = vmatmul.bf16.gmra.mxu0 %v1776
      %v2158 = vpop.f32.mrf.mxu0
      %v2159 = vadd.f32 %v2022, %v2158
      %v2160 = vpop.f32.mrf.mxu0
      %v2161 = vadd.f32 %v2024, %v2160
      %2162 = vdwg.mxu0
      %v2163 = vld [vmem:[%s14] sm:$0x1]
      %v2165 = vperm.slane %v2163, 0
      %v2167 = vadd.f32 %v2084, %v2165
      %v2168 = vadd.f32 %v2086, %v2165
      %v2169 = vadd.f32 %v2089, %v2165
      %v2170 = vadd.f32 %v2091, %v2165
      %v2171 = vadd.f32 %v2094, %v2165
      %v2172 = vadd.f32 %v2096, %v2165
      %v2173 = vadd.f32 %v2099, %v2165
      %v2174 = vadd.f32 %v2101, %v2165
      %v2175 = vadd.f32 %v2104, %v2165
      %v2176 = vadd.f32 %v2106, %v2165
      %v2177 = vadd.f32 %v2109, %v2165
      %v2178 = vadd.f32 %v2111, %v2165
      %v2179 = vadd.f32 %v2114, %v2165
      %v2180 = vadd.f32 %v2116, %v2165
      %v2181 = vadd.f32 %v2119, %v2165
      %v2182 = vadd.f32 %v2121, %v2165
      %v2183 = vadd.f32 %v2124, %v2165
      %v2184 = vadd.f32 %v2126, %v2165
      %v2185 = vadd.f32 %v2129, %v2165
      %v2186 = vadd.f32 %v2131, %v2165
      %v2187 = vadd.f32 %v2134, %v2165
      %v2188 = vadd.f32 %v2136, %v2165
      %v2189 = vadd.f32 %v2139, %v2165
      %v2190 = vadd.f32 %v2141, %v2165
      %v2191 = vadd.f32 %v2144, %v2165
      %v2192 = vadd.f32 %v2146, %v2165
      %v2193 = vadd.f32 %v2149, %v2165
      %v2194 = vadd.f32 %v2151, %v2165
      %v2195 = vadd.f32 %v2154, %v2165
      %v2196 = vadd.f32 %v2156, %v2165
      %v2197 = vadd.f32 %v2159, %v2165
      %v2198 = vadd.f32 %v2161, %v2165
      %v2199 = vmax.f32 %v2167, 0.0
      %v2200 = vmax.f32 %v2168, 0.0
      %v2201 = vmax.f32 %v2169, 0.0
      %v2202 = vmax.f32 %v2170, 0.0
      %v2203 = vmax.f32 %v2171, 0.0
      %v2204 = vmax.f32 %v2172, 0.0
      %v2205 = vmax.f32 %v2173, 0.0
      %v2206 = vmax.f32 %v2174, 0.0
      %v2207 = vmax.f32 %v2175, 0.0
      %v2208 = vmax.f32 %v2176, 0.0
      %v2209 = vmax.f32 %v2177, 0.0
      %v2210 = vmax.f32 %v2178, 0.0
      %v2211 = vmax.f32 %v2179, 0.0
      %v2212 = vmax.f32 %v2180, 0.0
      %v2213 = vmax.f32 %v2181, 0.0
      %v2214 = vmax.f32 %v2182, 0.0
      %v2215 = vmax.f32 %v2183, 0.0
      %v2216 = vmax.f32 %v2184, 0.0
      %v2217 = vmax.f32 %v2185, 0.0
      %v2218 = vmax.f32 %v2186, 0.0
      %v2219 = vmax.f32 %v2187, 0.0
      %v2220 = vmax.f32 %v2188, 0.0
      %v2221 = vmax.f32 %v2189, 0.0
      %v2222 = vmax.f32 %v2190, 0.0
      %v2223 = vmax.f32 %v2191, 0.0
      %v2224 = vmax.f32 %v2192, 0.0
      %v2225 = vmax.f32 %v2193, 0.0
      %v2226 = vmax.f32 %v2194, 0.0
      %v2227 = vmax.f32 %v2195, 0.0
      %v2228 = vmax.f32 %v2196, 0.0
      %v2229 = vmax.f32 %v2197, 0.0
      %v2230 = vmax.f32 %v2198, 0.0
      %v2231 = vld [vmem:[%s15] sm:$0x7]
      %v2232 = vperm.slane %v2231, 0
      %v2233 = vmul.f32 %v2199, %v2232
      %v2234 = vmul.f32 %v2200, %v2232
      %v2235 = vmul.f32 %v2201, %v2232
      %v2236 = vmul.f32 %v2202, %v2232
      %v2237 = vmul.f32 %v2203, %v2232
      %v2238 = vmul.f32 %v2204, %v2232
      %v2239 = vmul.f32 %v2205, %v2232
      %v2240 = vmul.f32 %v2206, %v2232
      %v2241 = vmul.f32 %v2207, %v2232
      %v2242 = vmul.f32 %v2208, %v2232
      %v2243 = vmul.f32 %v2209, %v2232
      %v2244 = vmul.f32 %v2210, %v2232
      %v2245 = vmul.f32 %v2211, %v2232
      %v2246 = vmul.f32 %v2212, %v2232
      %v2247 = vmul.f32 %v2213, %v2232
      %v2248 = vmul.f32 %v2214, %v2232
      %v2249 = vmul.f32 %v2215, %v2232
      %v2250 = vmul.f32 %v2216, %v2232
      %v2251 = vmul.f32 %v2217, %v2232
      %v2252 = vmul.f32 %v2218, %v2232
      %v2253 = vmul.f32 %v2219, %v2232
      %v2254 = vmul.f32 %v2220, %v2232
      %v2255 = vmul.f32 %v2221, %v2232
      %v2256 = vmul.f32 %v2222, %v2232
      %v2257 = vmul.f32 %v2223, %v2232
      %v2258 = vmul.f32 %v2224, %v2232
      %v2259 = vmul.f32 %v2225, %v2232
      %v2260 = vmul.f32 %v2226, %v2232
      %v2261 = vmul.f32 %v2227, %v2232
      %v2262 = vmul.f32 %v2228, %v2232
      %v2263 = vmul.f32 %v2229, %v2232
      %v2264 = vmul.f32 %v2230, %v2232
      %2265 = vadd.xlane.f32.xlu0 %v2233
      %v2266 = vpop.xlane.xlu0 %2265
      %2267 = vadd.xlane.f32.xlu0 %v2234
      %v2268 = vpop.xlane.xlu0 %2267
      %2269 = vadd.xlane.f32.xlu0 %v2235
      %v2270 = vpop.xlane.xlu0 %2269
      %2271 = vadd.xlane.f32.xlu0 %v2236
      %v2272 = vpop.xlane.xlu0 %2271
      %2273 = vadd.xlane.f32.xlu0 %v2237
      %v2274 = vpop.xlane.xlu0 %2273
      %2275 = vadd.xlane.f32.xlu0 %v2238
      %v2276 = vpop.xlane.xlu0 %2275
      %2277 = vadd.xlane.f32.xlu0 %v2239
      %v2278 = vpop.xlane.xlu0 %2277
      %2279 = vadd.xlane.f32.xlu0 %v2240
      %v2280 = vpop.xlane.xlu0 %2279
      %2281 = vadd.xlane.f32.xlu0 %v2241
      %v2282 = vpop.xlane.xlu0 %2281
      %2283 = vadd.xlane.f32.xlu0 %v2242
      %v2284 = vpop.xlane.xlu0 %2283
      %2285 = vadd.xlane.f32.xlu0 %v2243
      %v2286 = vpop.xlane.xlu0 %2285
      %2287 = vadd.xlane.f32.xlu0 %v2244
      %v2288 = vpop.xlane.xlu0 %2287
      %2289 = vadd.xlane.f32.xlu0 %v2245
      %v2290 = vpop.xlane.xlu0 %2289
      %2291 = vadd.xlane.f32.xlu0 %v2246
      %v2292 = vpop.xlane.xlu0 %2291
      %2293 = vadd.xlane.f32.xlu0 %v2247
      %v2294 = vpop.xlane.xlu0 %2293
      %2295 = vadd.xlane.f32.xlu0 %v2248
      %v2296 = vpop.xlane.xlu0 %2295
      %2297 = vadd.xlane.f32.xlu0 %v2249
      %v2298 = vpop.xlane.xlu0 %2297
      %2299 = vadd.xlane.f32.xlu0 %v2250
      %v2300 = vpop.xlane.xlu0 %2299
      %2301 = vadd.xlane.f32.xlu0 %v2251
      %v2302 = vpop.xlane.xlu0 %2301
      %2303 = vadd.xlane.f32.xlu0 %v2252
      %v2304 = vpop.xlane.xlu0 %2303
      %2305 = vadd.xlane.f32.xlu0 %v2253
      %v2306 = vpop.xlane.xlu0 %2305
      %2307 = vadd.xlane.f32.xlu0 %v2254
      %v2308 = vpop.xlane.xlu0 %2307
      %2309 = vadd.xlane.f32.xlu0 %v2255
      %v2310 = vpop.xlane.xlu0 %2309
      %2311 = vadd.xlane.f32.xlu0 %v2256
      %v2312 = vpop.xlane.xlu0 %2311
      %2313 = vadd.xlane.f32.xlu0 %v2257
      %v2314 = vpop.xlane.xlu0 %2313
      %2315 = vadd.xlane.f32.xlu0 %v2258
      %v2316 = vpop.xlane.xlu0 %2315
      %2317 = vadd.xlane.f32.xlu0 %v2259
      %v2318 = vpop.xlane.xlu0 %2317
      %2319 = vadd.xlane.f32.xlu0 %v2260
      %v2320 = vpop.xlane.xlu0 %2319
      %2321 = vadd.xlane.f32.xlu0 %v2261
      %v2322 = vpop.xlane.xlu0 %2321
      %2323 = vadd.xlane.f32.xlu0 %v2262
      %v2324 = vpop.xlane.xlu0 %2323
      %2325 = vadd.xlane.f32.xlu0 %v2263
      %v2326 = vpop.xlane.xlu0 %2325
      %2327 = vadd.xlane.f32.xlu0 %v2264
      %v2328 = vpop.xlane.xlu0 %2327
      %v2329 = vperm.slane %v2231, 1
      %v2330 = vmul.f32 %v2199, %v2329
      %v2331 = vmul.f32 %v2200, %v2329
      %v2332 = vmul.f32 %v2201, %v2329
      %v2333 = vmul.f32 %v2202, %v2329
      %v2334 = vmul.f32 %v2203, %v2329
      %v2335 = vmul.f32 %v2204, %v2329
      %v2336 = vmul.f32 %v2205, %v2329
      %v2337 = vmul.f32 %v2206, %v2329
      %v2338 = vmul.f32 %v2207, %v2329
      %v2339 = vmul.f32 %v2208, %v2329
      %v2340 = vmul.f32 %v2209, %v2329
      %v2341 = vmul.f32 %v2210, %v2329
      %v2342 = vmul.f32 %v2211, %v2329
      %v2343 = vmul.f32 %v2212, %v2329
      %v2344 = vmul.f32 %v2213, %v2329
      %v2345 = vmul.f32 %v2214, %v2329
      %v2346 = vmul.f32 %v2215, %v2329
      %v2347 = vmul.f32 %v2216, %v2329
      %v2348 = vmul.f32 %v2217, %v2329
      %v2349 = vmul.f32 %v2218, %v2329
      %v2350 = vmul.f32 %v2219, %v2329
      %v2351 = vmul.f32 %v2220, %v2329
      %v2352 = vmul.f32 %v2221, %v2329
      %v2353 = vmul.f32 %v2222, %v2329
      %v2354 = vmul.f32 %v2223, %v2329
      %v2355 = vmul.f32 %v2224, %v2329
      %v2356 = vmul.f32 %v2225, %v2329
      %v2357 = vmul.f32 %v2226, %v2329
      %v2358 = vmul.f32 %v2227, %v2329
      %v2359 = vmul.f32 %v2228, %v2329
      %v2360 = vmul.f32 %v2229, %v2329
      %v2361 = vmul.f32 %v2230, %v2329
      %2362 = vadd.xlane.f32.xlu0 %v2330
      %v2363 = vpop.xlane.xlu0 %2362
      %2364 = vadd.xlane.f32.xlu0 %v2331
      %v2365 = vpop.xlane.xlu0 %2364
      %2366 = vadd.xlane.f32.xlu0 %v2332
      %v2367 = vpop.xlane.xlu0 %2366
      %2368 = vadd.xlane.f32.xlu0 %v2333
      %v2369 = vpop.xlane.xlu0 %2368
      %2370 = vadd.xlane.f32.xlu0 %v2334
      %v2371 = vpop.xlane.xlu0 %2370
      %2372 = vadd.xlane.f32.xlu0 %v2335
      %v2373 = vpop.xlane.xlu0 %2372
      %2374 = vadd.xlane.f32.xlu0 %v2336
      %v2375 = vpop.xlane.xlu0 %2374
      %2376 = vadd.xlane.f32.xlu0 %v2337
      %v2377 = vpop.xlane.xlu0 %2376
      %2378 = vadd.xlane.f32.xlu0 %v2338
      %v2379 = vpop.xlane.xlu0 %2378
      %2380 = vadd.xlane.f32.xlu0 %v2339
      %v2381 = vpop.xlane.xlu0 %2380
      %2382 = vadd.xlane.f32.xlu0 %v2340
      %v2383 = vpop.xlane.xlu0 %2382
      %2384 = vadd.xlane.f32.xlu0 %v2341
      %v2385 = vpop.xlane.xlu0 %2384
      %2386 = vadd.xlane.f32.xlu0 %v2342
      %v2387 = vpop.xlane.xlu0 %2386
      %2388 = vadd.xlane.f32.xlu0 %v2343
      %v2389 = vpop.xlane.xlu0 %2388
      %2390 = vadd.xlane.f32.xlu0 %v2344
      %v2391 = vpop.xlane.xlu0 %2390
      %2392 = vadd.xlane.f32.xlu0 %v2345
      %v2393 = vpop.xlane.xlu0 %2392
      %2394 = vadd.xlane.f32.xlu0 %v2346
      %v2395 = vpop.xlane.xlu0 %2394
      %2396 = vadd.xlane.f32.xlu0 %v2347
      %v2397 = vpop.xlane.xlu0 %2396
      %2398 = vadd.xlane.f32.xlu0 %v2348
      %v2399 = vpop.xlane.xlu0 %2398
      %2400 = vadd.xlane.f32.xlu0 %v2349
      %v2401 = vpop.xlane.xlu0 %2400
      %2402 = vadd.xlane.f32.xlu0 %v2350
      %v2403 = vpop.xlane.xlu0 %2402
      %2404 = vadd.xlane.f32.xlu0 %v2351
      %v2405 = vpop.xlane.xlu0 %2404
      %2406 = vadd.xlane.f32.xlu0 %v2352
      %v2407 = vpop.xlane.xlu0 %2406
      %2408 = vadd.xlane.f32.xlu0 %v2353
      %v2409 = vpop.xlane.xlu0 %2408
      %2410 = vadd.xlane.f32.xlu0 %v2354
      %v2411 = vpop.xlane.xlu0 %2410
      %2412 = vadd.xlane.f32.xlu0 %v2355
      %v2413 = vpop.xlane.xlu0 %2412
      %2414 = vadd.xlane.f32.xlu0 %v2356
      %v2415 = vpop.xlane.xlu0 %2414
      %2416 = vadd.xlane.f32.xlu0 %v2357
      %v2417 = vpop.xlane.xlu0 %2416
      %2418 = vadd.xlane.f32.xlu0 %v2358
      %v2419 = vpop.xlane.xlu0 %2418
      %2420 = vadd.xlane.f32.xlu0 %v2359
      %v2421 = vpop.xlane.xlu0 %2420
      %2422 = vadd.xlane.f32.xlu0 %v2360
      %v2423 = vpop.xlane.xlu0 %2422
      %2424 = vadd.xlane.f32.xlu0 %v2361
      %v2425 = vpop.xlane.xlu0 %2424
      %v2426 = vperm.slane %v2231, 2
      %v2427 = vmul.f32 %v2199, %v2426
      %v2428 = vmul.f32 %v2200, %v2426
      %v2429 = vmul.f32 %v2201, %v2426
      %v2430 = vmul.f32 %v2202, %v2426
      %v2431 = vmul.f32 %v2203, %v2426
      %v2432 = vmul.f32 %v2204, %v2426
      %v2433 = vmul.f32 %v2205, %v2426
      %v2434 = vmul.f32 %v2206, %v2426
      %v2435 = vmul.f32 %v2207, %v2426
      %v2436 = vmul.f32 %v2208, %v2426
      %v2437 = vmul.f32 %v2209, %v2426
      %v2438 = vmul.f32 %v2210, %v2426
      %v2439 = vmul.f32 %v2211, %v2426
      %v2440 = vmul.f32 %v2212, %v2426
      %v2441 = vmul.f32 %v2213, %v2426
      %v2442 = vmul.f32 %v2214, %v2426
      %v2443 = vmul.f32 %v2215, %v2426
      %v2444 = vmul.f32 %v2216, %v2426
      %v2445 = vmul.f32 %v2217, %v2426
      %v2446 = vmul.f32 %v2218, %v2426
      %v2447 = vmul.f32 %v2219, %v2426
      %v2448 = vmul.f32 %v2220, %v2426
      %v2449 = vmul.f32 %v2221, %v2426
      %v2450 = vmul.f32 %v2222, %v2426
      %v2451 = vmul.f32 %v2223, %v2426
      %v2452 = vmul.f32 %v2224, %v2426
      %v2453 = vmul.f32 %v2225, %v2426
      %v2454 = vmul.f32 %v2226, %v2426
      %v2455 = vmul.f32 %v2227, %v2426
      %v2456 = vmul.f32 %v2228, %v2426
      %v2457 = vmul.f32 %v2229, %v2426
      %v2458 = vmul.f32 %v2230, %v2426
      %2459 = vadd.xlane.f32.xlu0 %v2427
      %v2460 = vpop.xlane.xlu0 %2459
      %2461 = vadd.xlane.f32.xlu0 %v2428
      %v2462 = vpop.xlane.xlu0 %2461
      %2463 = vadd.xlane.f32.xlu0 %v2429
      %v2464 = vpop.xlane.xlu0 %2463
      %2465 = vadd.xlane.f32.xlu0 %v2430
      %v2466 = vpop.xlane.xlu0 %2465
      %2467 = vadd.xlane.f32.xlu0 %v2431
      %v2468 = vpop.xlane.xlu0 %2467
      %2469 = vadd.xlane.f32.xlu0 %v2432
      %v2470 = vpop.xlane.xlu0 %2469
      %2471 = vadd.xlane.f32.xlu0 %v2433
      %v2472 = vpop.xlane.xlu0 %2471
      %2473 = vadd.xlane.f32.xlu0 %v2434
      %v2474 = vpop.xlane.xlu0 %2473
      %2475 = vadd.xlane.f32.xlu0 %v2435
      %v2476 = vpop.xlane.xlu0 %2475
      %2477 = vadd.xlane.f32.xlu0 %v2436
      %v2478 = vpop.xlane.xlu0 %2477
      %2479 = vadd.xlane.f32.xlu0 %v2437
      %v2480 = vpop.xlane.xlu0 %2479
      %2481 = vadd.xlane.f32.xlu0 %v2438
      %v2482 = vpop.xlane.xlu0 %2481
      %2483 = vadd.xlane.f32.xlu0 %v2439
      %v2484 = vpop.xlane.xlu0 %2483
      %2485 = vadd.xlane.f32.xlu0 %v2440
      %v2486 = vpop.xlane.xlu0 %2485
      %2487 = vadd.xlane.f32.xlu0 %v2441
      %v2488 = vpop.xlane.xlu0 %2487
      %2489 = vadd.xlane.f32.xlu0 %v2442
      %v2490 = vpop.xlane.xlu0 %2489
      %2491 = vadd.xlane.f32.xlu0 %v2443
      %v2492 = vpop.xlane.xlu0 %2491
      %2493 = vadd.xlane.f32.xlu0 %v2444
      %v2494 = vpop.xlane.xlu0 %2493
      %2495 = vadd.xlane.f32.xlu0 %v2445
      %v2496 = vpop.xlane.xlu0 %2495
      %2497 = vadd.xlane.f32.xlu0 %v2446
      %v2498 = vpop.xlane.xlu0 %2497
      %2499 = vadd.xlane.f32.xlu0 %v2447
      %v2500 = vpop.xlane.xlu0 %2499
      %2501 = vadd.xlane.f32.xlu0 %v2448
      %v2502 = vpop.xlane.xlu0 %2501
      %2503 = vadd.xlane.f32.xlu0 %v2449
      %v2504 = vpop.xlane.xlu0 %2503
      %2505 = vadd.xlane.f32.xlu0 %v2450
      %v2506 = vpop.xlane.xlu0 %2505
      %2507 = vadd.xlane.f32.xlu0 %v2451
      %v2508 = vpop.xlane.xlu0 %2507
      %2509 = vadd.xlane.f32.xlu0 %v2452
      %v2510 = vpop.xlane.xlu0 %2509
      %2511 = vadd.xlane.f32.xlu0 %v2453
      %v2512 = vpop.xlane.xlu0 %2511
      %2513 = vadd.xlane.f32.xlu0 %v2454
      %v2514 = vpop.xlane.xlu0 %2513
      %2515 = vadd.xlane.f32.xlu0 %v2455
      %v2516 = vpop.xlane.xlu0 %2515
      %2517 = vadd.xlane.f32.xlu0 %v2456
      %v2518 = vpop.xlane.xlu0 %2517
      %2519 = vadd.xlane.f32.xlu0 %v2457
      %v2520 = vpop.xlane.xlu0 %2519
      %2521 = vadd.xlane.f32.xlu0 %v2458
      %v2522 = vpop.xlane.xlu0 %2521
      %vm2523 = vcmask 7168
      %v2524 = vsel %vm2523, %v2266, %v2363
      %v2525 = vsel %vm2523, %v2268, %v2365
      %v2526 = vsel %vm2523, %v2270, %v2367
      %v2527 = vsel %vm2523, %v2272, %v2369
      %v2528 = vsel %vm2523, %v2274, %v2371
      %v2529 = vsel %vm2523, %v2276, %v2373
      %v2530 = vsel %vm2523, %v2278, %v2375
      %v2531 = vsel %vm2523, %v2280, %v2377
      %v2532 = vsel %vm2523, %v2282, %v2379
      %v2533 = vsel %vm2523, %v2284, %v2381
      %v2534 = vsel %vm2523, %v2286, %v2383
      %v2535 = vsel %vm2523, %v2288, %v2385
      %v2536 = vsel %vm2523, %v2290, %v2387
      %v2537 = vsel %vm2523, %v2292, %v2389
      %v2538 = vsel %vm2523, %v2294, %v2391
      %v2539 = vsel %vm2523, %v2296, %v2393
      %v2540 = vsel %vm2523, %v2298, %v2395
      %v2541 = vsel %vm2523, %v2300, %v2397
      %v2542 = vsel %vm2523, %v2302, %v2399
      %v2543 = vsel %vm2523, %v2304, %v2401
      %v2544 = vsel %vm2523, %v2306, %v2403
      %v2545 = vsel %vm2523, %v2308, %v2405
      %v2546 = vsel %vm2523, %v2310, %v2407
      %v2547 = vsel %vm2523, %v2312, %v2409
      %v2548 = vsel %vm2523, %v2314, %v2411
      %v2549 = vsel %vm2523, %v2316, %v2413
      %v2550 = vsel %vm2523, %v2318, %v2415
      %v2551 = vsel %vm2523, %v2320, %v2417
      %v2552 = vsel %vm2523, %v2322, %v2419
      %v2553 = vsel %vm2523, %v2324, %v2421
      %v2554 = vsel %vm2523, %v2326, %v2423
      %v2555 = vsel %vm2523, %v2328, %v2425
      %vm2556 = vcmask 15360
      %v2557 = vsel %vm2556, %v2524, %v2460
      %v2558 = vsel %vm2556, %v2525, %v2462
      %v2559 = vsel %vm2556, %v2526, %v2464
      %v2560 = vsel %vm2556, %v2527, %v2466
      %v2561 = vsel %vm2556, %v2528, %v2468
      %v2562 = vsel %vm2556, %v2529, %v2470
      %v2563 = vsel %vm2556, %v2530, %v2472
      %v2564 = vsel %vm2556, %v2531, %v2474
      %v2565 = vsel %vm2556, %v2532, %v2476
      %v2566 = vsel %vm2556, %v2533, %v2478
      %v2567 = vsel %vm2556, %v2534, %v2480
      %v2568 = vsel %vm2556, %v2535, %v2482
      %v2569 = vsel %vm2556, %v2536, %v2484
      %v2570 = vsel %vm2556, %v2537, %v2486
      %v2571 = vsel %vm2556, %v2538, %v2488
      %v2572 = vsel %vm2556, %v2539, %v2490
      %v2573 = vsel %vm2556, %v2540, %v2492
      %v2574 = vsel %vm2556, %v2541, %v2494
      %v2575 = vsel %vm2556, %v2542, %v2496
      %v2576 = vsel %vm2556, %v2543, %v2498
      %v2577 = vsel %vm2556, %v2544, %v2500
      %v2578 = vsel %vm2556, %v2545, %v2502
      %v2579 = vsel %vm2556, %v2546, %v2504
      %v2580 = vsel %vm2556, %v2547, %v2506
      %v2581 = vsel %vm2556, %v2548, %v2508
      %v2582 = vsel %vm2556, %v2549, %v2510
      %v2583 = vsel %vm2556, %v2550, %v2512
      %v2584 = vsel %vm2556, %v2551, %v2514
      %v2585 = vsel %vm2556, %v2552, %v2516
      %v2586 = vsel %vm2556, %v2553, %v2518
      %v2587 = vsel %vm2556, %v2554, %v2520
      %v2588 = vsel %vm2556, %v2555, %v2522
      %vm2589 = vcmask 23552
      %v2590 = vsel %vm2589, %v2557, %v1493
      %v2591 = vsel %vm2589, %v2558, %v1495
      %v2592 = vsel %vm2589, %v2559, %v1497
      %v2593 = vsel %vm2589, %v2560, %v1499
      %v2594 = vsel %vm2589, %v2561, %v1501
      %v2595 = vsel %vm2589, %v2562, %v1503
      %v2596 = vsel %vm2589, %v2563, %v1505
      %v2597 = vsel %vm2589, %v2564, %v1507
      %v2598 = vsel %vm2589, %v2565, %v1509
      %v2599 = vsel %vm2589, %v2566, %v1511
      %v2600 = vsel %vm2589, %v2567, %v1513
      %v2601 = vsel %vm2589, %v2568, %v1515
      %v2602 = vsel %vm2589, %v2569, %v1517
      %v2603 = vsel %vm2589, %v2570, %v1519
      %v2604 = vsel %vm2589, %v2571, %v1521
      %v2605 = vsel %vm2589, %v2572, %v1523
      %v2606 = vsel %vm2589, %v2573, %v1525
      %v2607 = vsel %vm2589, %v2574, %v1527
      %v2608 = vsel %vm2589, %v2575, %v1529
      %v2609 = vsel %vm2589, %v2576, %v1531
      %v2610 = vsel %vm2589, %v2577, %v1533
      %v2611 = vsel %vm2589, %v2578, %v1535
      %v2612 = vsel %vm2589, %v2579, %v1537
      %v2613 = vsel %vm2589, %v2580, %v1539
      %v2614 = vsel %vm2589, %v2581, %v1541
      %v2615 = vsel %vm2589, %v2582, %v1543
      %v2616 = vsel %vm2589, %v2583, %v1545
      %v2617 = vsel %vm2589, %v2584, %v1547
      %v2618 = vsel %vm2589, %v2585, %v1549
      %v2619 = vsel %vm2589, %v2586, %v1551
      %v2620 = vsel %vm2589, %v2587, %v1553
      %v2621 = vsel %vm2589, %v2588, %v1555
      %v2622 = vld [vmem:[%s16] sm:$0x1]
      %v2624 = vperm.slane %v2622, 0
      %v2626 = vadd.f32 %v2590, %v2624
      %v2627 = vadd.f32 %v2591, %v2624
      %v2628 = vadd.f32 %v2592, %v2624
      %v2629 = vadd.f32 %v2593, %v2624
      %v2630 = vadd.f32 %v2594, %v2624
      %v2631 = vadd.f32 %v2595, %v2624
      %v2632 = vadd.f32 %v2596, %v2624
      %v2633 = vadd.f32 %v2597, %v2624
      %v2634 = vadd.f32 %v2598, %v2624
      %v2635 = vadd.f32 %v2599, %v2624
      %v2636 = vadd.f32 %v2600, %v2624
      %v2637 = vadd.f32 %v2601, %v2624
      %v2638 = vadd.f32 %v2602, %v2624
      %v2639 = vadd.f32 %v2603, %v2624
      %v2640 = vadd.f32 %v2604, %v2624
      %v2641 = vadd.f32 %v2605, %v2624
      %v2642 = vadd.f32 %v2606, %v2624
      %v2643 = vadd.f32 %v2607, %v2624
      %v2644 = vadd.f32 %v2608, %v2624
      %v2645 = vadd.f32 %v2609, %v2624
      %v2646 = vadd.f32 %v2610, %v2624
      %v2647 = vadd.f32 %v2611, %v2624
      %v2648 = vadd.f32 %v2612, %v2624
      %v2649 = vadd.f32 %v2613, %v2624
      %v2650 = vadd.f32 %v2614, %v2624
      %v2651 = vadd.f32 %v2615, %v2624
      %v2652 = vadd.f32 %v2616, %v2624
      %v2653 = vadd.f32 %v2617, %v2624
      %v2654 = vadd.f32 %v2618, %v2624
      %v2655 = vadd.f32 %v2619, %v2624
      %v2656 = vadd.f32 %v2620, %v2624
      %v2657 = vadd.f32 %v2621, %v2624
      %v2658 = vsub.f32 0.0, %v2626
      %v2659 = vsub.f32 0.0, %v2627
      %v2660 = vsub.f32 0.0, %v2628
      %v2661 = vsub.f32 0.0, %v2629
      %v2662 = vsub.f32 0.0, %v2630
      %v2663 = vsub.f32 0.0, %v2631
      %v2664 = vsub.f32 0.0, %v2632
      %v2665 = vsub.f32 0.0, %v2633
      %v2666 = vsub.f32 0.0, %v2634
      %v2667 = vsub.f32 0.0, %v2635
      %v2668 = vsub.f32 0.0, %v2636
      %v2669 = vsub.f32 0.0, %v2637
      %v2670 = vsub.f32 0.0, %v2638
      %v2671 = vsub.f32 0.0, %v2639
      %v2672 = vsub.f32 0.0, %v2640
      %v2673 = vsub.f32 0.0, %v2641
      %v2674 = vsub.f32 0.0, %v2642
      %v2675 = vsub.f32 0.0, %v2643
      %v2676 = vsub.f32 0.0, %v2644
      %v2677 = vsub.f32 0.0, %v2645
      %v2678 = vsub.f32 0.0, %v2646
      %v2679 = vsub.f32 0.0, %v2647
      %v2680 = vsub.f32 0.0, %v2648
      %v2681 = vsub.f32 0.0, %v2649
      %v2682 = vsub.f32 0.0, %v2650
      %v2683 = vsub.f32 0.0, %v2651
      %v2684 = vsub.f32 0.0, %v2652
      %v2685 = vsub.f32 0.0, %v2653
      %v2686 = vsub.f32 0.0, %v2654
      %v2687 = vsub.f32 0.0, %v2655
      %v2688 = vsub.f32 0.0, %v2656
      %v2689 = vsub.f32 0.0, %v2657
      %v2690 = vmul.f32 %v2658, 1.442695
      %v2691 = vpow.pop %v2690
      %v2692 = vmul.f32 %v2659, 1.442695
      %v2693 = vpow.pop %v2692
      %v2694 = vmul.f32 %v2660, 1.442695
      %v2695 = vpow.pop %v2694
      %v2696 = vmul.f32 %v2661, 1.442695
      %v2697 = vpow.pop %v2696
      %v2698 = vmul.f32 %v2662, 1.442695
      %v2699 = vpow.pop %v2698
      %v2700 = vmul.f32 %v2663, 1.442695
      %v2701 = vpow.pop %v2700
      %v2702 = vmul.f32 %v2664, 1.442695
      %v2703 = vpow.pop %v2702
      %v2704 = vmul.f32 %v2665, 1.442695
      %v2705 = vpow.pop %v2704
      %v2706 = vmul.f32 %v2666, 1.442695
      %v2707 = vpow.pop %v2706
      %v2708 = vmul.f32 %v2667, 1.442695
      %v2709 = vpow.pop %v2708
      %v2710 = vmul.f32 %v2668, 1.442695
      %v2711 = vpow.pop %v2710
      %v2712 = vmul.f32 %v2669, 1.442695
      %v2713 = vpow.pop %v2712
      %v2714 = vmul.f32 %v2670, 1.442695
      %v2715 = vpow.pop %v2714
      %v2716 = vmul.f32 %v2671, 1.442695
      %v2717 = vpow.pop %v2716
      %v2718 = vmul.f32 %v2672, 1.442695
      %v2719 = vpow.pop %v2718
      %v2720 = vmul.f32 %v2673, 1.442695
      %v2721 = vpow.pop %v2720
      %v2722 = vmul.f32 %v2674, 1.442695
      %v2723 = vpow.pop %v2722
      %v2724 = vmul.f32 %v2675, 1.442695
      %v2725 = vpow.pop %v2724
      %v2726 = vmul.f32 %v2676, 1.442695
      %v2727 = vpow.pop %v2726
      %v2728 = vmul.f32 %v2677, 1.442695
      %v2729 = vpow.pop %v2728
      %v2730 = vmul.f32 %v2678, 1.442695
      %v2731 = vpow.pop %v2730
      %v2732 = vmul.f32 %v2679, 1.442695
      %v2733 = vpow.pop %v2732
      %v2734 = vmul.f32 %v2680, 1.442695
      %v2735 = vpow.pop %v2734
      %v2736 = vmul.f32 %v2681, 1.442695
      %v2737 = vpow.pop %v2736
      %v2738 = vmul.f32 %v2682, 1.442695
      %v2739 = vpow.pop %v2738
      %v2740 = vmul.f32 %v2683, 1.442695
      %v2741 = vpow.pop %v2740
      %v2742 = vmul.f32 %v2684, 1.442695
      %v2743 = vpow.pop %v2742
      %v2744 = vmul.f32 %v2685, 1.442695
      %v2745 = vpow.pop %v2744
      %v2746 = vmul.f32 %v2686, 1.442695
      %v2747 = vpow.pop %v2746
      %v2748 = vmul.f32 %v2687, 1.442695
      %v2749 = vpow.pop %v2748
      %v2750 = vmul.f32 %v2688, 1.442695
      %v2751 = vpow.pop %v2750
      %v2752 = vmul.f32 %v2689, 1.442695
      %v2753 = vpow.pop %v2752
      %v2754 = vadd.f32 %v2691, 1.0
      %v2755 = vadd.f32 %v2693, 1.0
      %v2756 = vadd.f32 %v2695, 1.0
      %v2757 = vadd.f32 %v2697, 1.0
      %v2758 = vadd.f32 %v2699, 1.0
      %v2759 = vadd.f32 %v2701, 1.0
      %v2760 = vadd.f32 %v2703, 1.0
      %v2761 = vadd.f32 %v2705, 1.0
      %v2762 = vadd.f32 %v2707, 1.0
      %v2763 = vadd.f32 %v2709, 1.0
      %v2764 = vadd.f32 %v2711, 1.0
      %v2765 = vadd.f32 %v2713, 1.0
      %v2766 = vadd.f32 %v2715, 1.0
      %v2767 = vadd.f32 %v2717, 1.0
      %v2768 = vadd.f32 %v2719, 1.0
      %v2769 = vadd.f32 %v2721, 1.0
      %v2770 = vadd.f32 %v2723, 1.0
      %v2771 = vadd.f32 %v2725, 1.0
      %v2772 = vadd.f32 %v2727, 1.0
      %v2773 = vadd.f32 %v2729, 1.0
      %v2774 = vadd.f32 %v2731, 1.0
      %v2775 = vadd.f32 %v2733, 1.0
      %v2776 = vadd.f32 %v2735, 1.0
      %v2777 = vadd.f32 %v2737, 1.0
      %v2778 = vadd.f32 %v2739, 1.0
      %v2779 = vadd.f32 %v2741, 1.0
      %v2780 = vadd.f32 %v2743, 1.0
      %v2781 = vadd.f32 %v2745, 1.0
      %v2782 = vadd.f32 %v2747, 1.0
      %v2783 = vadd.f32 %v2749, 1.0
      %v2784 = vadd.f32 %v2751, 1.0
      %v2785 = vadd.f32 %v2753, 1.0
      %v2786 = vrcp.pop %v2754
      %v2787 = vmul.f32 %v2754, %v2786
      %v2788 = vsub.f32 1.0, %v2787
      %v2789 = vmul.f32 %v2786, %v2788
      %v2790 = vadd.f32 %v2786, %v2789
      %vm2791 = vweird.f32 %v2754
      %vm2792 = vweird.f32 %v2786
      %vm2793 = vmor %vm2791, %vm2792
      %v2794 = vsel %vm2793, %v2786, %v2790
      %v2795 = vand.u32 2147483647, %v2754
      %vm2796 = vcmp.eq.f32.partialorder %v2795, 8.507059e+37
      %v2797 = vand.u32 %v2754, 2147483648
      %v2798 = vor.u32 1.1754944e-38, %v2797
      %v2799 = vsel %vm2796, %v2798, %v2794
      %v2800 = vmul.f32 1.0, %v2799
      %v2801 = vrcp.pop %v2755
      %v2802 = vmul.f32 %v2755, %v2801
      %v2803 = vsub.f32 1.0, %v2802
      %v2804 = vmul.f32 %v2801, %v2803
      %v2805 = vadd.f32 %v2801, %v2804
      %vm2806 = vweird.f32 %v2755
      %vm2807 = vweird.f32 %v2801
      %vm2808 = vmor %vm2806, %vm2807
      %v2809 = vsel %vm2808, %v2801, %v2805
      %v2810 = vand.u32 2147483647, %v2755
      %vm2811 = vcmp.eq.f32.partialorder %v2810, 8.507059e+37
      %v2812 = vand.u32 %v2755, 2147483648
      %v2813 = vor.u32 1.1754944e-38, %v2812
      %v2814 = vsel %vm2811, %v2813, %v2809
      %v2815 = vmul.f32 1.0, %v2814
      %v2816 = vrcp.pop %v2756
      %v2817 = vmul.f32 %v2756, %v2816
      %v2818 = vsub.f32 1.0, %v2817
      %v2819 = vmul.f32 %v2816, %v2818
      %v2820 = vadd.f32 %v2816, %v2819
      %vm2821 = vweird.f32 %v2756
      %vm2822 = vweird.f32 %v2816
      %vm2823 = vmor %vm2821, %vm2822
      %v2824 = vsel %vm2823, %v2816, %v2820
      %v2825 = vand.u32 2147483647, %v2756
      %vm2826 = vcmp.eq.f32.partialorder %v2825, 8.507059e+37
      %v2827 = vand.u32 %v2756, 2147483648
      %v2828 = vor.u32 1.1754944e-38, %v2827
      %v2829 = vsel %vm2826, %v2828, %v2824
      %v2830 = vmul.f32 1.0, %v2829
      %v2831 = vrcp.pop %v2757
      %v2832 = vmul.f32 %v2757, %v2831
      %v2833 = vsub.f32 1.0, %v2832
      %v2834 = vmul.f32 %v2831, %v2833
      %v2835 = vadd.f32 %v2831, %v2834
      %vm2836 = vweird.f32 %v2757
      %vm2837 = vweird.f32 %v2831
      %vm2838 = vmor %vm2836, %vm2837
      %v2839 = vsel %vm2838, %v2831, %v2835
      %v2840 = vand.u32 2147483647, %v2757
      %vm2841 = vcmp.eq.f32.partialorder %v2840, 8.507059e+37
      %v2842 = vand.u32 %v2757, 2147483648
      %v2843 = vor.u32 1.1754944e-38, %v2842
      %v2844 = vsel %vm2841, %v2843, %v2839
      %v2845 = vmul.f32 1.0, %v2844
      %v2846 = vrcp.pop %v2758
      %v2847 = vmul.f32 %v2758, %v2846
      %v2848 = vsub.f32 1.0, %v2847
      %v2849 = vmul.f32 %v2846, %v2848
      %v2850 = vadd.f32 %v2846, %v2849
      %vm2851 = vweird.f32 %v2758
      %vm2852 = vweird.f32 %v2846
      %vm2853 = vmor %vm2851, %vm2852
      %v2854 = vsel %vm2853, %v2846, %v2850
      %v2855 = vand.u32 2147483647, %v2758
      %vm2856 = vcmp.eq.f32.partialorder %v2855, 8.507059e+37
      %v2857 = vand.u32 %v2758, 2147483648
      %v2858 = vor.u32 1.1754944e-38, %v2857
      %v2859 = vsel %vm2856, %v2858, %v2854
      %v2860 = vmul.f32 1.0, %v2859
      %v2861 = vrcp.pop %v2759
      %v2862 = vmul.f32 %v2759, %v2861
      %v2863 = vsub.f32 1.0, %v2862
      %v2864 = vmul.f32 %v2861, %v2863
      %v2865 = vadd.f32 %v2861, %v2864
      %vm2866 = vweird.f32 %v2759
      %vm2867 = vweird.f32 %v2861
      %vm2868 = vmor %vm2866, %vm2867
      %v2869 = vsel %vm2868, %v2861, %v2865
      %v2870 = vand.u32 2147483647, %v2759
      %vm2871 = vcmp.eq.f32.partialorder %v2870, 8.507059e+37
      %v2872 = vand.u32 %v2759, 2147483648
      %v2873 = vor.u32 1.1754944e-38, %v2872
      %v2874 = vsel %vm2871, %v2873, %v2869
      %v2875 = vmul.f32 1.0, %v2874
      %v2876 = vrcp.pop %v2760
      %v2877 = vmul.f32 %v2760, %v2876
      %v2878 = vsub.f32 1.0, %v2877
      %v2879 = vmul.f32 %v2876, %v2878
      %v2880 = vadd.f32 %v2876, %v2879
      %vm2881 = vweird.f32 %v2760
      %vm2882 = vweird.f32 %v2876
      %vm2883 = vmor %vm2881, %vm2882
      %v2884 = vsel %vm2883, %v2876, %v2880
      %v2885 = vand.u32 2147483647, %v2760
      %vm2886 = vcmp.eq.f32.partialorder %v2885, 8.507059e+37
      %v2887 = vand.u32 %v2760, 2147483648
      %v2888 = vor.u32 1.1754944e-38, %v2887
      %v2889 = vsel %vm2886, %v2888, %v2884
      %v2890 = vmul.f32 1.0, %v2889
      %v2891 = vrcp.pop %v2761
      %v2892 = vmul.f32 %v2761, %v2891
      %v2893 = vsub.f32 1.0, %v2892
      %v2894 = vmul.f32 %v2891, %v2893
      %v2895 = vadd.f32 %v2891, %v2894
      %vm2896 = vweird.f32 %v2761
      %vm2897 = vweird.f32 %v2891
      %vm2898 = vmor %vm2896, %vm2897
      %v2899 = vsel %vm2898, %v2891, %v2895
      %v2900 = vand.u32 2147483647, %v2761
      %vm2901 = vcmp.eq.f32.partialorder %v2900, 8.507059e+37
      %v2902 = vand.u32 %v2761, 2147483648
      %v2903 = vor.u32 1.1754944e-38, %v2902
      %v2904 = vsel %vm2901, %v2903, %v2899
      %v2905 = vmul.f32 1.0, %v2904
      %v2906 = vrcp.pop %v2762
      %v2907 = vmul.f32 %v2762, %v2906
      %v2908 = vsub.f32 1.0, %v2907
      %v2909 = vmul.f32 %v2906, %v2908
      %v2910 = vadd.f32 %v2906, %v2909
      %vm2911 = vweird.f32 %v2762
      %vm2912 = vweird.f32 %v2906
      %vm2913 = vmor %vm2911, %vm2912
      %v2914 = vsel %vm2913, %v2906, %v2910
      %v2915 = vand.u32 2147483647, %v2762
      %vm2916 = vcmp.eq.f32.partialorder %v2915, 8.507059e+37
      %v2917 = vand.u32 %v2762, 2147483648
      %v2918 = vor.u32 1.1754944e-38, %v2917
      %v2919 = vsel %vm2916, %v2918, %v2914
      %v2920 = vmul.f32 1.0, %v2919
      %v2921 = vrcp.pop %v2763
      %v2922 = vmul.f32 %v2763, %v2921
      %v2923 = vsub.f32 1.0, %v2922
      %v2924 = vmul.f32 %v2921, %v2923
      %v2925 = vadd.f32 %v2921, %v2924
      %vm2926 = vweird.f32 %v2763
      %vm2927 = vweird.f32 %v2921
      %vm2928 = vmor %vm2926, %vm2927
      %v2929 = vsel %vm2928, %v2921, %v2925
      %v2930 = vand.u32 2147483647, %v2763
      %vm2931 = vcmp.eq.f32.partialorder %v2930, 8.507059e+37
      %v2932 = vand.u32 %v2763, 2147483648
      %v2933 = vor.u32 1.1754944e-38, %v2932
      %v2934 = vsel %vm2931, %v2933, %v2929
      %v2935 = vmul.f32 1.0, %v2934
      %v2936 = vrcp.pop %v2764
      %v2937 = vmul.f32 %v2764, %v2936
      %v2938 = vsub.f32 1.0, %v2937
      %v2939 = vmul.f32 %v2936, %v2938
      %v2940 = vadd.f32 %v2936, %v2939
      %vm2941 = vweird.f32 %v2764
      %vm2942 = vweird.f32 %v2936
      %vm2943 = vmor %vm2941, %vm2942
      %v2944 = vsel %vm2943, %v2936, %v2940
      %v2945 = vand.u32 2147483647, %v2764
      %vm2946 = vcmp.eq.f32.partialorder %v2945, 8.507059e+37
      %v2947 = vand.u32 %v2764, 2147483648
      %v2948 = vor.u32 1.1754944e-38, %v2947
      %v2949 = vsel %vm2946, %v2948, %v2944
      %v2950 = vmul.f32 1.0, %v2949
      %v2951 = vrcp.pop %v2765
      %v2952 = vmul.f32 %v2765, %v2951
      %v2953 = vsub.f32 1.0, %v2952
      %v2954 = vmul.f32 %v2951, %v2953
      %v2955 = vadd.f32 %v2951, %v2954
      %vm2956 = vweird.f32 %v2765
      %vm2957 = vweird.f32 %v2951
      %vm2958 = vmor %vm2956, %vm2957
      %v2959 = vsel %vm2958, %v2951, %v2955
      %v2960 = vand.u32 2147483647, %v2765
      %vm2961 = vcmp.eq.f32.partialorder %v2960, 8.507059e+37
      %v2962 = vand.u32 %v2765, 2147483648
      %v2963 = vor.u32 1.1754944e-38, %v2962
      %v2964 = vsel %vm2961, %v2963, %v2959
      %v2965 = vmul.f32 1.0, %v2964
      %v2966 = vrcp.pop %v2766
      %v2967 = vmul.f32 %v2766, %v2966
      %v2968 = vsub.f32 1.0, %v2967
      %v2969 = vmul.f32 %v2966, %v2968
      %v2970 = vadd.f32 %v2966, %v2969
      %vm2971 = vweird.f32 %v2766
      %vm2972 = vweird.f32 %v2966
      %vm2973 = vmor %vm2971, %vm2972
      %v2974 = vsel %vm2973, %v2966, %v2970
      %v2975 = vand.u32 2147483647, %v2766
      %vm2976 = vcmp.eq.f32.partialorder %v2975, 8.507059e+37
      %v2977 = vand.u32 %v2766, 2147483648
      %v2978 = vor.u32 1.1754944e-38, %v2977
      %v2979 = vsel %vm2976, %v2978, %v2974
      %v2980 = vmul.f32 1.0, %v2979
      %v2981 = vrcp.pop %v2767
      %v2982 = vmul.f32 %v2767, %v2981
      %v2983 = vsub.f32 1.0, %v2982
      %v2984 = vmul.f32 %v2981, %v2983
      %v2985 = vadd.f32 %v2981, %v2984
      %vm2986 = vweird.f32 %v2767
      %vm2987 = vweird.f32 %v2981
      %vm2988 = vmor %vm2986, %vm2987
      %v2989 = vsel %vm2988, %v2981, %v2985
      %v2990 = vand.u32 2147483647, %v2767
      %vm2991 = vcmp.eq.f32.partialorder %v2990, 8.507059e+37
      %v2992 = vand.u32 %v2767, 2147483648
      %v2993 = vor.u32 1.1754944e-38, %v2992
      %v2994 = vsel %vm2991, %v2993, %v2989
      %v2995 = vmul.f32 1.0, %v2994
      %v2996 = vrcp.pop %v2768
      %v2997 = vmul.f32 %v2768, %v2996
      %v2998 = vsub.f32 1.0, %v2997
      %v2999 = vmul.f32 %v2996, %v2998
      %v3000 = vadd.f32 %v2996, %v2999
      %vm3001 = vweird.f32 %v2768
      %vm3002 = vweird.f32 %v2996
      %vm3003 = vmor %vm3001, %vm3002
      %v3004 = vsel %vm3003, %v2996, %v3000
      %v3005 = vand.u32 2147483647, %v2768
      %vm3006 = vcmp.eq.f32.partialorder %v3005, 8.507059e+37
      %v3007 = vand.u32 %v2768, 2147483648
      %v3008 = vor.u32 1.1754944e-38, %v3007
      %v3009 = vsel %vm3006, %v3008, %v3004
      %v3010 = vmul.f32 1.0, %v3009
      %v3011 = vrcp.pop %v2769
      %v3012 = vmul.f32 %v2769, %v3011
      %v3013 = vsub.f32 1.0, %v3012
      %v3014 = vmul.f32 %v3011, %v3013
      %v3015 = vadd.f32 %v3011, %v3014
      %vm3016 = vweird.f32 %v2769
      %vm3017 = vweird.f32 %v3011
      %vm3018 = vmor %vm3016, %vm3017
      %v3019 = vsel %vm3018, %v3011, %v3015
      %v3020 = vand.u32 2147483647, %v2769
      %vm3021 = vcmp.eq.f32.partialorder %v3020, 8.507059e+37
      %v3022 = vand.u32 %v2769, 2147483648
      %v3023 = vor.u32 1.1754944e-38, %v3022
      %v3024 = vsel %vm3021, %v3023, %v3019
      %v3025 = vmul.f32 1.0, %v3024
      %v3026 = vrcp.pop %v2770
      %v3027 = vmul.f32 %v2770, %v3026
      %v3028 = vsub.f32 1.0, %v3027
      %v3029 = vmul.f32 %v3026, %v3028
      %v3030 = vadd.f32 %v3026, %v3029
      %vm3031 = vweird.f32 %v2770
      %vm3032 = vweird.f32 %v3026
      %vm3033 = vmor %vm3031, %vm3032
      %v3034 = vsel %vm3033, %v3026, %v3030
      %v3035 = vand.u32 2147483647, %v2770
      %vm3036 = vcmp.eq.f32.partialorder %v3035, 8.507059e+37
      %v3037 = vand.u32 %v2770, 2147483648
      %v3038 = vor.u32 1.1754944e-38, %v3037
      %v3039 = vsel %vm3036, %v3038, %v3034
      %v3040 = vmul.f32 1.0, %v3039
      %v3041 = vrcp.pop %v2771
      %v3042 = vmul.f32 %v2771, %v3041
      %v3043 = vsub.f32 1.0, %v3042
      %v3044 = vmul.f32 %v3041, %v3043
      %v3045 = vadd.f32 %v3041, %v3044
      %vm3046 = vweird.f32 %v2771
      %vm3047 = vweird.f32 %v3041
      %vm3048 = vmor %vm3046, %vm3047
      %v3049 = vsel %vm3048, %v3041, %v3045
      %v3050 = vand.u32 2147483647, %v2771
      %vm3051 = vcmp.eq.f32.partialorder %v3050, 8.507059e+37
      %v3052 = vand.u32 %v2771, 2147483648
      %v3053 = vor.u32 1.1754944e-38, %v3052
      %v3054 = vsel %vm3051, %v3053, %v3049
      %v3055 = vmul.f32 1.0, %v3054
      %v3056 = vrcp.pop %v2772
      %v3057 = vmul.f32 %v2772, %v3056
      %v3058 = vsub.f32 1.0, %v3057
      %v3059 = vmul.f32 %v3056, %v3058
      %v3060 = vadd.f32 %v3056, %v3059
      %vm3061 = vweird.f32 %v2772
      %vm3062 = vweird.f32 %v3056
      %vm3063 = vmor %vm3061, %vm3062
      %v3064 = vsel %vm3063, %v3056, %v3060
      %v3065 = vand.u32 2147483647, %v2772
      %vm3066 = vcmp.eq.f32.partialorder %v3065, 8.507059e+37
      %v3067 = vand.u32 %v2772, 2147483648
      %v3068 = vor.u32 1.1754944e-38, %v3067
      %v3069 = vsel %vm3066, %v3068, %v3064
      %v3070 = vmul.f32 1.0, %v3069
      %v3071 = vrcp.pop %v2773
      %v3072 = vmul.f32 %v2773, %v3071
      %v3073 = vsub.f32 1.0, %v3072
      %v3074 = vmul.f32 %v3071, %v3073
      %v3075 = vadd.f32 %v3071, %v3074
      %vm3076 = vweird.f32 %v2773
      %vm3077 = vweird.f32 %v3071
      %vm3078 = vmor %vm3076, %vm3077
      %v3079 = vsel %vm3078, %v3071, %v3075
      %v3080 = vand.u32 2147483647, %v2773
      %vm3081 = vcmp.eq.f32.partialorder %v3080, 8.507059e+37
      %v3082 = vand.u32 %v2773, 2147483648
      %v3083 = vor.u32 1.1754944e-38, %v3082
      %v3084 = vsel %vm3081, %v3083, %v3079
      %v3085 = vmul.f32 1.0, %v3084
      %v3086 = vrcp.pop %v2774
      %v3087 = vmul.f32 %v2774, %v3086
      %v3088 = vsub.f32 1.0, %v3087
      %v3089 = vmul.f32 %v3086, %v3088
      %v3090 = vadd.f32 %v3086, %v3089
      %vm3091 = vweird.f32 %v2774
      %vm3092 = vweird.f32 %v3086
      %vm3093 = vmor %vm3091, %vm3092
      %v3094 = vsel %vm3093, %v3086, %v3090
      %v3095 = vand.u32 2147483647, %v2774
      %vm3096 = vcmp.eq.f32.partialorder %v3095, 8.507059e+37
      %v3097 = vand.u32 %v2774, 2147483648
      %v3098 = vor.u32 1.1754944e-38, %v3097
      %v3099 = vsel %vm3096, %v3098, %v3094
      %v3100 = vmul.f32 1.0, %v3099
      %v3101 = vrcp.pop %v2775
      %v3102 = vmul.f32 %v2775, %v3101
      %v3103 = vsub.f32 1.0, %v3102
      %v3104 = vmul.f32 %v3101, %v3103
      %v3105 = vadd.f32 %v3101, %v3104
      %vm3106 = vweird.f32 %v2775
      %vm3107 = vweird.f32 %v3101
      %vm3108 = vmor %vm3106, %vm3107
      %v3109 = vsel %vm3108, %v3101, %v3105
      %v3110 = vand.u32 2147483647, %v2775
      %vm3111 = vcmp.eq.f32.partialorder %v3110, 8.507059e+37
      %v3112 = vand.u32 %v2775, 2147483648
      %v3113 = vor.u32 1.1754944e-38, %v3112
      %v3114 = vsel %vm3111, %v3113, %v3109
      %v3115 = vmul.f32 1.0, %v3114
      %v3116 = vrcp.pop %v2776
      %v3117 = vmul.f32 %v2776, %v3116
      %v3118 = vsub.f32 1.0, %v3117
      %v3119 = vmul.f32 %v3116, %v3118
      %v3120 = vadd.f32 %v3116, %v3119
      %vm3121 = vweird.f32 %v2776
      %vm3122 = vweird.f32 %v3116
      %vm3123 = vmor %vm3121, %vm3122
      %v3124 = vsel %vm3123, %v3116, %v3120
      %v3125 = vand.u32 2147483647, %v2776
      %vm3126 = vcmp.eq.f32.partialorder %v3125, 8.507059e+37
      %v3127 = vand.u32 %v2776, 2147483648
      %v3128 = vor.u32 1.1754944e-38, %v3127
      %v3129 = vsel %vm3126, %v3128, %v3124
      %v3130 = vmul.f32 1.0, %v3129
      %v3131 = vrcp.pop %v2777
      %v3132 = vmul.f32 %v2777, %v3131
      %v3133 = vsub.f32 1.0, %v3132
      %v3134 = vmul.f32 %v3131, %v3133
      %v3135 = vadd.f32 %v3131, %v3134
      %vm3136 = vweird.f32 %v2777
      %vm3137 = vweird.f32 %v3131
      %vm3138 = vmor %vm3136, %vm3137
      %v3139 = vsel %vm3138, %v3131, %v3135
      %v3140 = vand.u32 2147483647, %v2777
      %vm3141 = vcmp.eq.f32.partialorder %v3140, 8.507059e+37
      %v3142 = vand.u32 %v2777, 2147483648
      %v3143 = vor.u32 1.1754944e-38, %v3142
      %v3144 = vsel %vm3141, %v3143, %v3139
      %v3145 = vmul.f32 1.0, %v3144
      %v3146 = vrcp.pop %v2778
      %v3147 = vmul.f32 %v2778, %v3146
      %v3148 = vsub.f32 1.0, %v3147
      %v3149 = vmul.f32 %v3146, %v3148
      %v3150 = vadd.f32 %v3146, %v3149
      %vm3151 = vweird.f32 %v2778
      %vm3152 = vweird.f32 %v3146
      %vm3153 = vmor %vm3151, %vm3152
      %v3154 = vsel %vm3153, %v3146, %v3150
      %v3155 = vand.u32 2147483647, %v2778
      %vm3156 = vcmp.eq.f32.partialorder %v3155, 8.507059e+37
      %v3157 = vand.u32 %v2778, 2147483648
      %v3158 = vor.u32 1.1754944e-38, %v3157
      %v3159 = vsel %vm3156, %v3158, %v3154
      %v3160 = vmul.f32 1.0, %v3159
      %v3161 = vrcp.pop %v2779
      %v3162 = vmul.f32 %v2779, %v3161
      %v3163 = vsub.f32 1.0, %v3162
      %v3164 = vmul.f32 %v3161, %v3163
      %v3165 = vadd.f32 %v3161, %v3164
      %vm3166 = vweird.f32 %v2779
      %vm3167 = vweird.f32 %v3161
      %vm3168 = vmor %vm3166, %vm3167
      %v3169 = vsel %vm3168, %v3161, %v3165
      %v3170 = vand.u32 2147483647, %v2779
      %vm3171 = vcmp.eq.f32.partialorder %v3170, 8.507059e+37
      %v3172 = vand.u32 %v2779, 2147483648
      %v3173 = vor.u32 1.1754944e-38, %v3172
      %v3174 = vsel %vm3171, %v3173, %v3169
      %v3175 = vmul.f32 1.0, %v3174
      %v3176 = vrcp.pop %v2780
      %v3177 = vmul.f32 %v2780, %v3176
      %v3178 = vsub.f32 1.0, %v3177
      %v3179 = vmul.f32 %v3176, %v3178
      %v3180 = vadd.f32 %v3176, %v3179
      %vm3181 = vweird.f32 %v2780
      %vm3182 = vweird.f32 %v3176
      %vm3183 = vmor %vm3181, %vm3182
      %v3184 = vsel %vm3183, %v3176, %v3180
      %v3185 = vand.u32 2147483647, %v2780
      %vm3186 = vcmp.eq.f32.partialorder %v3185, 8.507059e+37
      %v3187 = vand.u32 %v2780, 2147483648
      %v3188 = vor.u32 1.1754944e-38, %v3187
      %v3189 = vsel %vm3186, %v3188, %v3184
      %v3190 = vmul.f32 1.0, %v3189
      %v3191 = vrcp.pop %v2781
      %v3192 = vmul.f32 %v2781, %v3191
      %v3193 = vsub.f32 1.0, %v3192
      %v3194 = vmul.f32 %v3191, %v3193
      %v3195 = vadd.f32 %v3191, %v3194
      %vm3196 = vweird.f32 %v2781
      %vm3197 = vweird.f32 %v3191
      %vm3198 = vmor %vm3196, %vm3197
      %v3199 = vsel %vm3198, %v3191, %v3195
      %v3200 = vand.u32 2147483647, %v2781
      %vm3201 = vcmp.eq.f32.partialorder %v3200, 8.507059e+37
      %v3202 = vand.u32 %v2781, 2147483648
      %v3203 = vor.u32 1.1754944e-38, %v3202
      %v3204 = vsel %vm3201, %v3203, %v3199
      %v3205 = vmul.f32 1.0, %v3204
      %v3206 = vrcp.pop %v2782
      %v3207 = vmul.f32 %v2782, %v3206
      %v3208 = vsub.f32 1.0, %v3207
      %v3209 = vmul.f32 %v3206, %v3208
      %v3210 = vadd.f32 %v3206, %v3209
      %vm3211 = vweird.f32 %v2782
      %vm3212 = vweird.f32 %v3206
      %vm3213 = vmor %vm3211, %vm3212
      %v3214 = vsel %vm3213, %v3206, %v3210
      %v3215 = vand.u32 2147483647, %v2782
      %vm3216 = vcmp.eq.f32.partialorder %v3215, 8.507059e+37
      %v3217 = vand.u32 %v2782, 2147483648
      %v3218 = vor.u32 1.1754944e-38, %v3217
      %v3219 = vsel %vm3216, %v3218, %v3214
      %v3220 = vmul.f32 1.0, %v3219
      %v3221 = vrcp.pop %v2783
      %v3222 = vmul.f32 %v2783, %v3221
      %v3223 = vsub.f32 1.0, %v3222
      %v3224 = vmul.f32 %v3221, %v3223
      %v3225 = vadd.f32 %v3221, %v3224
      %vm3226 = vweird.f32 %v2783
      %vm3227 = vweird.f32 %v3221
      %vm3228 = vmor %vm3226, %vm3227
      %v3229 = vsel %vm3228, %v3221, %v3225
      %v3230 = vand.u32 2147483647, %v2783
      %vm3231 = vcmp.eq.f32.partialorder %v3230, 8.507059e+37
      %v3232 = vand.u32 %v2783, 2147483648
      %v3233 = vor.u32 1.1754944e-38, %v3232
      %v3234 = vsel %vm3231, %v3233, %v3229
      %v3235 = vmul.f32 1.0, %v3234
      %v3236 = vrcp.pop %v2784
      %v3237 = vmul.f32 %v2784, %v3236
      %v3238 = vsub.f32 1.0, %v3237
      %v3239 = vmul.f32 %v3236, %v3238
      %v3240 = vadd.f32 %v3236, %v3239
      %vm3241 = vweird.f32 %v2784
      %vm3242 = vweird.f32 %v3236
      %vm3243 = vmor %vm3241, %vm3242
      %v3244 = vsel %vm3243, %v3236, %v3240
      %v3245 = vand.u32 2147483647, %v2784
      %vm3246 = vcmp.eq.f32.partialorder %v3245, 8.507059e+37
      %v3247 = vand.u32 %v2784, 2147483648
      %v3248 = vor.u32 1.1754944e-38, %v3247
      %v3249 = vsel %vm3246, %v3248, %v3244
      %v3250 = vmul.f32 1.0, %v3249
      %v3251 = vrcp.pop %v2785
      %v3252 = vmul.f32 %v2785, %v3251
      %v3253 = vsub.f32 1.0, %v3252
      %v3254 = vmul.f32 %v3251, %v3253
      %v3255 = vadd.f32 %v3251, %v3254
      %vm3256 = vweird.f32 %v2785
      %vm3257 = vweird.f32 %v3251
      %vm3258 = vmor %vm3256, %vm3257
      %v3259 = vsel %vm3258, %v3251, %v3255
      %v3260 = vand.u32 2147483647, %v2785
      %vm3261 = vcmp.eq.f32.partialorder %v3260, 8.507059e+37
      %v3262 = vand.u32 %v2785, 2147483648
      %v3263 = vor.u32 1.1754944e-38, %v3262
      %v3264 = vsel %vm3261, %v3263, %v3259
      %v3265 = vmul.f32 1.0, %v3264
      %v3266 = vmax.f32 %v2626, 0.0
      %v3267 = vmax.f32 %v2627, 0.0
      %v3268 = vmax.f32 %v2628, 0.0
      %v3269 = vmax.f32 %v2629, 0.0
      %v3270 = vmax.f32 %v2630, 0.0
      %v3271 = vmax.f32 %v2631, 0.0
      %v3272 = vmax.f32 %v2632, 0.0
      %v3273 = vmax.f32 %v2633, 0.0
      %v3274 = vmax.f32 %v2634, 0.0
      %v3275 = vmax.f32 %v2635, 0.0
      %v3276 = vmax.f32 %v2636, 0.0
      %v3277 = vmax.f32 %v2637, 0.0
      %v3278 = vmax.f32 %v2638, 0.0
      %v3279 = vmax.f32 %v2639, 0.0
      %v3280 = vmax.f32 %v2640, 0.0
      %v3281 = vmax.f32 %v2641, 0.0
      %v3282 = vmax.f32 %v2642, 0.0
      %v3283 = vmax.f32 %v2643, 0.0
      %v3284 = vmax.f32 %v2644, 0.0
      %v3285 = vmax.f32 %v2645, 0.0
      %v3286 = vmax.f32 %v2646, 0.0
      %v3287 = vmax.f32 %v2647, 0.0
      %v3288 = vmax.f32 %v2648, 0.0
      %v3289 = vmax.f32 %v2649, 0.0
      %v3290 = vmax.f32 %v2650, 0.0
      %v3291 = vmax.f32 %v2651, 0.0
      %v3292 = vmax.f32 %v2652, 0.0
      %v3293 = vmax.f32 %v2653, 0.0
      %v3294 = vmax.f32 %v2654, 0.0
      %v3295 = vmax.f32 %v2655, 0.0
      %v3296 = vmax.f32 %v2656, 0.0
      %v3297 = vmax.f32 %v2657, 0.0
      %v3298 = vand.u32 2147483647, %v2626
      %v3299 = vand.u32 2147483647, %v2627
      %v3300 = vand.u32 2147483647, %v2628
      %v3301 = vand.u32 2147483647, %v2629
      %v3302 = vand.u32 2147483647, %v2630
      %v3303 = vand.u32 2147483647, %v2631
      %v3304 = vand.u32 2147483647, %v2632
      %v3305 = vand.u32 2147483647, %v2633
      %v3306 = vand.u32 2147483647, %v2634
      %v3307 = vand.u32 2147483647, %v2635
      %v3308 = vand.u32 2147483647, %v2636
      %v3309 = vand.u32 2147483647, %v2637
      %v3310 = vand.u32 2147483647, %v2638
      %v3311 = vand.u32 2147483647, %v2639
      %v3312 = vand.u32 2147483647, %v2640
      %v3313 = vand.u32 2147483647, %v2641
      %v3314 = vand.u32 2147483647, %v2642
      %v3315 = vand.u32 2147483647, %v2643
      %v3316 = vand.u32 2147483647, %v2644
      %v3317 = vand.u32 2147483647, %v2645
      %v3318 = vand.u32 2147483647, %v2646
      %v3319 = vand.u32 2147483647, %v2647
      %v3320 = vand.u32 2147483647, %v2648
      %v3321 = vand.u32 2147483647, %v2649
      %v3322 = vand.u32 2147483647, %v2650
      %v3323 = vand.u32 2147483647, %v2651
      %v3324 = vand.u32 2147483647, %v2652
      %v3325 = vand.u32 2147483647, %v2653
      %v3326 = vand.u32 2147483647, %v2654
      %v3327 = vand.u32 2147483647, %v2655
      %v3328 = vand.u32 2147483647, %v2656
      %v3329 = vand.u32 2147483647, %v2657
      %v3330 = vsub.f32 0.0, %v3298
      %v3331 = vsub.f32 0.0, %v3299
      %v3332 = vsub.f32 0.0, %v3300
      %v3333 = vsub.f32 0.0, %v3301
      %v3334 = vsub.f32 0.0, %v3302
      %v3335 = vsub.f32 0.0, %v3303
      %v3336 = vsub.f32 0.0, %v3304
      %v3337 = vsub.f32 0.0, %v3305
      %v3338 = vsub.f32 0.0, %v3306
      %v3339 = vsub.f32 0.0, %v3307
      %v3340 = vsub.f32 0.0, %v3308
      %v3341 = vsub.f32 0.0, %v3309
      %v3342 = vsub.f32 0.0, %v3310
      %v3343 = vsub.f32 0.0, %v3311
      %v3344 = vsub.f32 0.0, %v3312
      %v3345 = vsub.f32 0.0, %v3313
      %v3346 = vsub.f32 0.0, %v3314
      %v3347 = vsub.f32 0.0, %v3315
      %v3348 = vsub.f32 0.0, %v3316
      %v3349 = vsub.f32 0.0, %v3317
      %v3350 = vsub.f32 0.0, %v3318
      %v3351 = vsub.f32 0.0, %v3319
      %v3352 = vsub.f32 0.0, %v3320
      %v3353 = vsub.f32 0.0, %v3321
      %v3354 = vsub.f32 0.0, %v3322
      %v3355 = vsub.f32 0.0, %v3323
      %v3356 = vsub.f32 0.0, %v3324
      %v3357 = vsub.f32 0.0, %v3325
      %v3358 = vsub.f32 0.0, %v3326
      %v3359 = vsub.f32 0.0, %v3327
      %v3360 = vsub.f32 0.0, %v3328
      %v3361 = vsub.f32 0.0, %v3329
      %v3362 = vmul.f32 %v3330, 1.442695
      %v3363 = vpow.pop %v3362
      %v3364 = vmul.f32 %v3331, 1.442695
      %v3365 = vpow.pop %v3364
      %v3366 = vmul.f32 %v3332, 1.442695
      %v3367 = vpow.pop %v3366
      %v3368 = vmul.f32 %v3333, 1.442695
      %v3369 = vpow.pop %v3368
      %v3370 = vmul.f32 %v3334, 1.442695
      %v3371 = vpow.pop %v3370
      %v3372 = vmul.f32 %v3335, 1.442695
      %v3373 = vpow.pop %v3372
      %v3374 = vmul.f32 %v3336, 1.442695
      %v3375 = vpow.pop %v3374
      %v3376 = vmul.f32 %v3337, 1.442695
      %v3377 = vpow.pop %v3376
      %v3378 = vmul.f32 %v3338, 1.442695
      %v3379 = vpow.pop %v3378
      %v3380 = vmul.f32 %v3339, 1.442695
      %v3381 = vpow.pop %v3380
      %v3382 = vmul.f32 %v3340, 1.442695
      %v3383 = vpow.pop %v3382
      %v3384 = vmul.f32 %v3341, 1.442695
      %v3385 = vpow.pop %v3384
      %v3386 = vmul.f32 %v3342, 1.442695
      %v3387 = vpow.pop %v3386
      %v3388 = vmul.f32 %v3343, 1.442695
      %v3389 = vpow.pop %v3388
      %v3390 = vmul.f32 %v3344, 1.442695
      %v3391 = vpow.pop %v3390
      %v3392 = vmul.f32 %v3345, 1.442695
      %v3393 = vpow.pop %v3392
      %v3394 = vmul.f32 %v3346, 1.442695
      %v3395 = vpow.pop %v3394
      %v3396 = vmul.f32 %v3347, 1.442695
      %v3397 = vpow.pop %v3396
      %v3398 = vmul.f32 %v3348, 1.442695
      %v3399 = vpow.pop %v3398
      %v3400 = vmul.f32 %v3349, 1.442695
      %v3401 = vpow.pop %v3400
      %v3402 = vmul.f32 %v3350, 1.442695
      %v3403 = vpow.pop %v3402
      %v3404 = vmul.f32 %v3351, 1.442695
      %v3405 = vpow.pop %v3404
      %v3406 = vmul.f32 %v3352, 1.442695
      %v3407 = vpow.pop %v3406
      %v3408 = vmul.f32 %v3353, 1.442695
      %v3409 = vpow.pop %v3408
      %v3410 = vmul.f32 %v3354, 1.442695
      %v3411 = vpow.pop %v3410
      %v3412 = vmul.f32 %v3355, 1.442695
      %v3413 = vpow.pop %v3412
      %v3414 = vmul.f32 %v3356, 1.442695
      %v3415 = vpow.pop %v3414
      %v3416 = vmul.f32 %v3357, 1.442695
      %v3417 = vpow.pop %v3416
      %v3418 = vmul.f32 %v3358, 1.442695
      %v3419 = vpow.pop %v3418
      %v3420 = vmul.f32 %v3359, 1.442695
      %v3421 = vpow.pop %v3420
      %v3422 = vmul.f32 %v3360, 1.442695
      %v3423 = vpow.pop %v3422
      %v3424 = vmul.f32 %v3361, 1.442695
      %v3425 = vpow.pop %v3424
      %v3426 = vadd.f32 %v3363, 1.0
      %v3427 = vadd.f32 %v3365, 1.0
      %v3428 = vadd.f32 %v3367, 1.0
      %v3429 = vadd.f32 %v3369, 1.0
      %v3430 = vadd.f32 %v3371, 1.0
      %v3431 = vadd.f32 %v3373, 1.0
      %v3432 = vadd.f32 %v3375, 1.0
      %v3433 = vadd.f32 %v3377, 1.0
      %v3434 = vadd.f32 %v3379, 1.0
      %v3435 = vadd.f32 %v3381, 1.0
      %v3436 = vadd.f32 %v3383, 1.0
      %v3437 = vadd.f32 %v3385, 1.0
      %v3438 = vadd.f32 %v3387, 1.0
      %v3439 = vadd.f32 %v3389, 1.0
      %v3440 = vadd.f32 %v3391, 1.0
      %v3441 = vadd.f32 %v3393, 1.0
      %v3442 = vadd.f32 %v3395, 1.0
      %v3443 = vadd.f32 %v3397, 1.0
      %v3444 = vadd.f32 %v3399, 1.0
      %v3445 = vadd.f32 %v3401, 1.0
      %v3446 = vadd.f32 %v3403, 1.0
      %v3447 = vadd.f32 %v3405, 1.0
      %v3448 = vadd.f32 %v3407, 1.0
      %v3449 = vadd.f32 %v3409, 1.0
      %v3450 = vadd.f32 %v3411, 1.0
      %v3451 = vadd.f32 %v3413, 1.0
      %v3452 = vadd.f32 %v3415, 1.0
      %v3453 = vadd.f32 %v3417, 1.0
      %v3454 = vadd.f32 %v3419, 1.0
      %v3455 = vadd.f32 %v3421, 1.0
      %v3456 = vadd.f32 %v3423, 1.0
      %v3457 = vadd.f32 %v3425, 1.0
      %v3458 = vlog2.pop %v3426
      %v3459 = vmul.f32 %v3458, 0.6931472
      %v3460 = vlog2.pop %v3427
      %v3461 = vmul.f32 %v3460, 0.6931472
      %v3462 = vlog2.pop %v3428
      %v3463 = vmul.f32 %v3462, 0.6931472
      %v3464 = vlog2.pop %v3429
      %v3465 = vmul.f32 %v3464, 0.6931472
      %v3466 = vlog2.pop %v3430
      %v3467 = vmul.f32 %v3466, 0.6931472
      %v3468 = vlog2.pop %v3431
      %v3469 = vmul.f32 %v3468, 0.6931472
      %v3470 = vlog2.pop %v3432
      %v3471 = vmul.f32 %v3470, 0.6931472
      %v3472 = vlog2.pop %v3433
      %v3473 = vmul.f32 %v3472, 0.6931472
      %v3474 = vlog2.pop %v3434
      %v3475 = vmul.f32 %v3474, 0.6931472
      %v3476 = vlog2.pop %v3435
      %v3477 = vmul.f32 %v3476, 0.6931472
      %v3478 = vlog2.pop %v3436
      %v3479 = vmul.f32 %v3478, 0.6931472
      %v3480 = vlog2.pop %v3437
      %v3481 = vmul.f32 %v3480, 0.6931472
      %v3482 = vlog2.pop %v3438
      %v3483 = vmul.f32 %v3482, 0.6931472
      %v3484 = vlog2.pop %v3439
      %v3485 = vmul.f32 %v3484, 0.6931472
      %v3486 = vlog2.pop %v3440
      %v3487 = vmul.f32 %v3486, 0.6931472
      %v3488 = vlog2.pop %v3441
      %v3489 = vmul.f32 %v3488, 0.6931472
      %v3490 = vlog2.pop %v3442
      %v3491 = vmul.f32 %v3490, 0.6931472
      %v3492 = vlog2.pop %v3443
      %v3493 = vmul.f32 %v3492, 0.6931472
      %v3494 = vlog2.pop %v3444
      %v3495 = vmul.f32 %v3494, 0.6931472
      %v3496 = vlog2.pop %v3445
      %v3497 = vmul.f32 %v3496, 0.6931472
      %v3498 = vlog2.pop %v3446
      %v3499 = vmul.f32 %v3498, 0.6931472
      %v3500 = vlog2.pop %v3447
      %v3501 = vmul.f32 %v3500, 0.6931472
      %v3502 = vlog2.pop %v3448
      %v3503 = vmul.f32 %v3502, 0.6931472
      %v3504 = vlog2.pop %v3449
      %v3505 = vmul.f32 %v3504, 0.6931472
      %v3506 = vlog2.pop %v3450
      %v3507 = vmul.f32 %v3506, 0.6931472
      %v3508 = vlog2.pop %v3451
      %v3509 = vmul.f32 %v3508, 0.6931472
      %v3510 = vlog2.pop %v3452
      %v3511 = vmul.f32 %v3510, 0.6931472
      %v3512 = vlog2.pop %v3453
      %v3513 = vmul.f32 %v3512, 0.6931472
      %v3514 = vlog2.pop %v3454
      %v3515 = vmul.f32 %v3514, 0.6931472
      %v3516 = vlog2.pop %v3455
      %v3517 = vmul.f32 %v3516, 0.6931472
      %v3518 = vlog2.pop %v3456
      %v3519 = vmul.f32 %v3518, 0.6931472
      %v3520 = vlog2.pop %v3457
      %v3521 = vmul.f32 %v3520, 0.6931472
      %v3522 = vadd.f32 %v3266, %v3459
      %v3523 = vadd.f32 %v3267, %v3461
      %v3524 = vadd.f32 %v3268, %v3463
      %v3525 = vadd.f32 %v3269, %v3465
      %v3526 = vadd.f32 %v3270, %v3467
      %v3527 = vadd.f32 %v3271, %v3469
      %v3528 = vadd.f32 %v3272, %v3471
      %v3529 = vadd.f32 %v3273, %v3473
      %v3530 = vadd.f32 %v3274, %v3475
      %v3531 = vadd.f32 %v3275, %v3477
      %v3532 = vadd.f32 %v3276, %v3479
      %v3533 = vadd.f32 %v3277, %v3481
      %v3534 = vadd.f32 %v3278, %v3483
      %v3535 = vadd.f32 %v3279, %v3485
      %v3536 = vadd.f32 %v3280, %v3487
      %v3537 = vadd.f32 %v3281, %v3489
      %v3538 = vadd.f32 %v3282, %v3491
      %v3539 = vadd.f32 %v3283, %v3493
      %v3540 = vadd.f32 %v3284, %v3495
      %v3541 = vadd.f32 %v3285, %v3497
      %v3542 = vadd.f32 %v3286, %v3499
      %v3543 = vadd.f32 %v3287, %v3501
      %v3544 = vadd.f32 %v3288, %v3503
      %v3545 = vadd.f32 %v3289, %v3505
      %v3546 = vadd.f32 %v3290, %v3507
      %v3547 = vadd.f32 %v3291, %v3509
      %v3548 = vadd.f32 %v3292, %v3511
      %v3549 = vadd.f32 %v3293, %v3513
      %v3550 = vadd.f32 %v3294, %v3515
      %v3551 = vadd.f32 %v3295, %v3517
      %v3552 = vadd.f32 %v3296, %v3519
      %v3553 = vadd.f32 %v3297, %v3521
      %v3554 = vlaneseq
      %v3555 = vand.u32 %v3554, 127
      %vm3556 = vcmp.lt.s32.totalorder %v3555, 3
      %v3557 = vsel %vm3556, %v2800, %v3522
      %v3558 = vsel %vm3556, %v2815, %v3523
      %v3559 = vsel %vm3556, %v2830, %v3524
      %v3560 = vsel %vm3556, %v2845, %v3525
      %v3561 = vsel %vm3556, %v2860, %v3526
      %v3562 = vsel %vm3556, %v2875, %v3527
      %v3563 = vsel %vm3556, %v2890, %v3528
      %v3564 = vsel %vm3556, %v2905, %v3529
      %v3565 = vsel %vm3556, %v2920, %v3530
      %v3566 = vsel %vm3556, %v2935, %v3531
      %v3567 = vsel %vm3556, %v2950, %v3532
      %v3568 = vsel %vm3556, %v2965, %v3533
      %v3569 = vsel %vm3556, %v2980, %v3534
      %v3570 = vsel %vm3556, %v2995, %v3535
      %v3571 = vsel %vm3556, %v3010, %v3536
      %v3572 = vsel %vm3556, %v3025, %v3537
      %v3573 = vsel %vm3556, %v3040, %v3538
      %v3574 = vsel %vm3556, %v3055, %v3539
      %v3575 = vsel %vm3556, %v3070, %v3540
      %v3576 = vsel %vm3556, %v3085, %v3541
      %v3577 = vsel %vm3556, %v3100, %v3542
      %v3578 = vsel %vm3556, %v3115, %v3543
      %v3579 = vsel %vm3556, %v3130, %v3544
      %v3580 = vsel %vm3556, %v3145, %v3545
      %v3581 = vsel %vm3556, %v3160, %v3546
      %v3582 = vsel %vm3556, %v3175, %v3547
      %v3583 = vsel %vm3556, %v3190, %v3548
      %v3584 = vsel %vm3556, %v3205, %v3549
      %v3585 = vsel %vm3556, %v3220, %v3550
      %v3586 = vsel %vm3556, %v3235, %v3551
      %v3587 = vsel %vm3556, %v3250, %v3552
      %v3588 = vsel %vm3556, %v3265, %v3553
      %vm3589 = vcmask 31744
      %3590 = vst.msk [vmem:[%s572] sm:$0xff] %vm3589, %v3557
      %3591 = vst.msk [vmem:[%s572 + $0x8] sm:$0xff] %vm3589, %v3558
      %3592 = vst.msk [vmem:[%s572 + $0x10] sm:$0xff] %vm3589, %v3559
      %3593 = vst.msk [vmem:[%s572 + $0x18] sm:$0xff] %vm3589, %v3560
      %3594 = vst.msk [vmem:[%s572 + $0x20] sm:$0xff] %vm3589, %v3561
      %3595 = vst.msk [vmem:[%s572 + $0x28] sm:$0xff] %vm3589, %v3562
      %3596 = vst.msk [vmem:[%s572 + $0x30] sm:$0xff] %vm3589, %v3563
      %3597 = vst.msk [vmem:[%s572 + $0x38] sm:$0xff] %vm3589, %v3564
      %3598 = vst.msk [vmem:[%s572 + $0x40] sm:$0xff] %vm3589, %v3565
      %3599 = vst.msk [vmem:[%s572 + $0x48] sm:$0xff] %vm3589, %v3566
      %3600 = vst.msk [vmem:[%s572 + $0x50] sm:$0xff] %vm3589, %v3567
      %3601 = vst.msk [vmem:[%s572 + $0x58] sm:$0xff] %vm3589, %v3568
      %3602 = vst.msk [vmem:[%s572 + $0x60] sm:$0xff] %vm3589, %v3569
      %3603 = vst.msk [vmem:[%s572 + $0x68] sm:$0xff] %vm3589, %v3570
      %3604 = vst.msk [vmem:[%s572 + $0x70] sm:$0xff] %vm3589, %v3571
      %3605 = vst.msk [vmem:[%s572 + $0x78] sm:$0xff] %vm3589, %v3572
      %3606 = vst.msk [vmem:[%s572 + $0x80] sm:$0xff] %vm3589, %v3573
      %3607 = vst.msk [vmem:[%s572 + $0x88] sm:$0xff] %vm3589, %v3574
      %3608 = vst.msk [vmem:[%s572 + $0x90] sm:$0xff] %vm3589, %v3575
      %3609 = vst.msk [vmem:[%s572 + $0x98] sm:$0xff] %vm3589, %v3576
      %3610 = vst.msk [vmem:[%s572 + $0xa0] sm:$0xff] %vm3589, %v3577
      %3611 = vst.msk [vmem:[%s572 + $0xa8] sm:$0xff] %vm3589, %v3578
      %3612 = vst.msk [vmem:[%s572 + $0xb0] sm:$0xff] %vm3589, %v3579
      %3613 = vst.msk [vmem:[%s572 + $0xb8] sm:$0xff] %vm3589, %v3580
      %3614 = vst.msk [vmem:[%s572 + $0xc0] sm:$0xff] %vm3589, %v3581
      %3615 = vst.msk [vmem:[%s572 + $0xc8] sm:$0xff] %vm3589, %v3582
      %3616 = vst.msk [vmem:[%s572 + $0xd0] sm:$0xff] %vm3589, %v3583
      %3617 = vst.msk [vmem:[%s572 + $0xd8] sm:$0xff] %vm3589, %v3584
      %3618 = vst.msk [vmem:[%s572 + $0xe0] sm:$0xff] %vm3589, %v3585
      %3619 = vst.msk [vmem:[%s572 + $0xe8] sm:$0xff] %vm3589, %v3586
      %3620 = vst.msk [vmem:[%s572 + $0xf0] sm:$0xff] %vm3589, %v3587
      %3621 = vst.msk [vmem:[%s572 + $0xf8] sm:$0xff] %vm3589, %v3588
      %s3622 = smul.u32 32, %s28
      %p3623 = scmp.lt.s32.totalorder %s3622, 127
      %s3624 = scalar_select %p3623, %s3622, 127
      %s3625 = smul.addr %s3624, 8
      %s3626 = scalar_lea.vmem %s17, %s3625
      // Predicated region
      $region89: #{tpu_custom_call.1} parent=87 // pred_check
        %p3627 = pneg %p413
      $region90: #{tpu_custom_call.1} parent=87 // pred_check_branch
        %3629 = sbr.rel (%p3627) target = $region92
      $region91: #{tpu_custom_call.1} parent=87 // pred_region
        %s3630 = smul.u32 32, %s28
      $region92: #{tpu_custom_call.1} parent=87 // pred_fallthru
        _
    $region88: #{tpu_custom_call.1} parent=5 // pred_fallthru
      _
    %p3631 = scmp.le.s32.totalorder 2, %s23
    // Predicated region
    $region93: #{tpu_custom_call.1} parent=5 // pred_check
      %p3632 = pneg %p3631
    $region94: #{tpu_custom_call.1} parent=5 // pred_check_branch
      %3634 = sbr.rel (%p3632) target = $region96
    $region95: #{tpu_custom_call.1} parent=5 // pred_region
      %s3635 = ssub.s32 %s23, 2
      // Predicated region
      $region97: #{tpu_custom_call.1} parent=95 // pred_check
        %p3636 = pneg %p419
      $region98: #{tpu_custom_call.1} parent=95 // pred_check_branch
        %3638 = sbr.rel (%p3636) target = $region100
      $region99: #{tpu_custom_call.1} parent=95 // pred_region
        %s3639 = smul.u32 32, %s29
        %p3640 = scmp.lt.s32.totalorder %s3639, 127
        %s3641 = scalar_select %p3640, %s3639, 127
        %s3642 = smul.addr %s3641, 8
        %s3643 = scalar_lea.vmem %s17, %s3642
      $region100: #{tpu_custom_call.1} parent=95 // pred_fallthru
        _
    $region96: #{tpu_custom_call.1} parent=5 // pred_fallthru
      _
  $region6: #{tpu_custom_call.1} parent=0 // loop_footer
    %s27 = sadd.s32 1, %s23
  $region7: #{tpu_custom_call.1} parent=0 // loop_footer_branch
    %22 = sbr.rel target = $region3
  $region8: #{tpu_custom_call.1} parent=0 // loop_exit
    _

</llo_original>
